<compile_context>
chip_gen: v7x
topology: tpu7x:2x2x1
jax: 0.10.0
libtpu: 0.0.40
codegen_flags: <defaults>
</compile_context>

<pallas_src>
import numpy as np
import jax
import jax.numpy as jnp
from jax.experimental import pallas as pl
from jax.experimental.pallas import tpu as pltpu  # noqa: F401  (kept for TPU-specific knobs)

LEAKY_SLOPE = 0.01  # nn.LeakyReLU default


def _leaky_relu(x):
    return jnp.where(x > 0, x, LEAKY_SLOPE * x)


def make_kernel(S, B, O, L, NL):
    L2, L4, L6 = 2 * L, 4 * L, 6 * L
    f32 = jnp.float32

    def kernel(obs_ref, we1, be1, we2, be2, we3, be3,
               wih0, wih_deep, whh, b_i, b_hn, wfc, bfc, out_ref):
        # ---------- prologue: time-invariant, batched over all S*B rows ----------
        # load the (tiny) weights once
        whh_v = whh[...]            # (NL, 2L, 6L) block-diagonal per layer
        wih_deep_v = wih_deep[...]  # (max(NL-1,1), 2L, 6L)
        b_i_v = b_i[...]            # (NL, 1, 6L)   (r/z parts = b_ih + b_hh pre-summed)
        b_hn_v = b_hn[...]          # (NL, 1, 2L)   (b_hh of the n gate)
        wfc_v = wfc[...]            # (2L, L)
        bfc_v = bfc[...]            # (1, L)

        x = obs_ref[...]                                                       # (S*B, O)
        h = _leaky_relu(jnp.dot(x, we1[...], preferred_element_type=f32) + be1[...])
        h = _leaky_relu(jnp.dot(h, we2[...], preferred_element_type=f32) + be2[...])
        emb = jnp.dot(h, we3[...], preferred_element_type=f32) + be3[...]       # (S*B, L)
        # layer-0 fused input projection (both directions, all 3 gates) for all steps
        gi0_all = jnp.dot(emb, wih0[...], preferred_element_type=f32) + b_i_v[0]  # (S*B, 6L)

        # z_hat[0] = 0 (matches the PyTorch module)
        out_ref[0:B, :] = jnp.zeros((B, L), f32)

        # ---------- sequential recurrence over time (fully unrolled: S is static) ----------
        hs = [jnp.zeros((B, L2), f32) for _ in range(NL)]   # per layer: [fwd | bwd] state
        for k in range(1, S):
            x_in = None
            for l in range(NL):
                h_l = hs[l]
                if l == 0:
                    gi = gi0_all[k * B:(k + 1) * B, :]                          # precomputed
                else:
                    gi = jnp.dot(x_in, wih_deep_v[l - 1],
                                 preferred_element_type=f32) + b_i_v[l]
                gh = jnp.dot(h_l, whh_v[l], preferred_element_type=f32)         # (B, 6L)
                r = jax.nn.sigmoid(gi[:, :L2] + gh[:, :L2])
                z = jax.nn.sigmoid(gi[:, L2:L4] + gh[:, L2:L4])
                n = jnp.tanh(gi[:, L4:L6] + r * (gh[:, L4:L6] + b_hn_v[l]))
                h_new = (1.0 - z) * n + z * h_l
                hs[l] = h_new
                x_in = h_new                                                    # (B, 2L)
            pred = jnp.dot(x_in, wfc_v, preferred_element_type=f32) + bfc_v     # (B, L)
            out_ref[k * B:(k + 1) * B, :] = pred

    return kernel


def rnn_baseline_forward(obsrv, fused, n_layers, latent_dim):
    S, B, O = obsrv.shape
    L = latent_dim
    obs2d = obsrv.reshape(S * B, O)            # host-level reshape (layout plumbing only)
    kernel = make_kernel(S, B, O, L, n_layers)
    args = (obs2d,
            fused['we1'], fused['be1'], fused['we2'], fused['be2'],
            fused['we3'], fused['be3'],
            fused['wih0'], fused['wih_deep'], fused['whh'],
            fused['b_i'], fused['b_hn'], fused['wfc'], fused['bfc'])
    out2d = pl.pallas_call(
        kernel,
        out_shape=jax.ShapeDtypeStruct((S * B, L), jnp.float32),
        # No grid: single invocation, everything resident in VMEM (shapes are tiny,
        # so no double-buffering / pipelining concerns on any TPU generation).
    )(*args)
    return out2d.reshape(S, B, L)


# --------------------------- parameters ------------------------------------


def init_raw_params(key, O, L, NL):
    """Raw per-gate parameters, PyTorch-GRU-like layout. Gate order (r, z, n)."""
    def u(k, shape):
        return jax.random.uniform(k, shape, jnp.float32, minval=-0.25, maxval=0.25)

    keys = jax.random.split(key, 13)
    p = {}
    p['we1'] = u(keys[0], (O, O));     p['be1'] = u(keys[1], (1, O))
    p['we2'] = u(keys[2], (O, L));     p['be2'] = u(keys[3], (1, L))
    p['we3'] = u(keys[4], (L, L));     p['be3'] = u(keys[5], (1, L))
    # GRU: layer 0 input size L, deeper layers 2L (bidirectional concat input)
    p['wih0'] = u(keys[6], (2, 3, L, L))                    # [dir, gate, in, out]
    p['wih'] = u(keys[7], (max(NL - 1, 1), 2, 3, 2 * L, L))  # layers >= 1
    p['whh'] = u(keys[8], (NL, 2, 3, L, L))
    p['bih'] = u(keys[9], (NL, 2, 3, L))
    p['bhh'] = u(keys[10], (NL, 2, 3, L))
    p['wfc'] = u(keys[11], (2 * L, L)); p['bfc'] = u(keys[12], (1, L))
    return p


def pack_params(p, L, NL):
    """Host-side fusion: fused-gate + direction-packed weights for the kernel."""
    L2 = 2 * L

    def fuse_cols(arrs):  # list of (in, L) blocks -> (in, 6L), order [r_f,r_b,z_f,z_b,n_f,n_b]
        return jnp.concatenate(arrs, axis=-1)

    w0 = p['wih0']
    wih0_f = fuse_cols([w0[0, 0], w0[1, 0], w0[0, 1], w0[1, 1], w0[0, 2], w0[1, 2]])  # (L, 6L)

    deep = []
    for l in range(1, NL):
        w = p['wih'][l - 1]
        deep.append(fuse_cols([w[0, 0], w[1, 0], w[0, 1], w[1, 1], w[0, 2], w[1, 2]]))
    wih_deep = jnp.stack(deep) if deep else jnp.zeros((1, L2, 6 * L), jnp.float32)

    zero = jnp.zeros((L, L), jnp.float32)
    whh_list, bi_list, bhn_list = [], [], []
    for l in range(NL):
        w = p['whh'][l]
        # block-diagonal: rows 0:L multiply fwd hidden, rows L:2L multiply bwd hidden
        top = jnp.concatenate([w[0, 0], zero, w[0, 1], zero, w[0, 2], zero], axis=-1)
        bot = jnp.concatenate([zero, w[1, 0], zero, w[1, 1], zero, w[1, 2]], axis=-1)
        whh_list.append(jnp.concatenate([top, bot], axis=0))                   # (2L, 6L)

        bih, bhh = p['bih'][l], p['bhh'][l]
        bi = jnp.concatenate([bih[0, 0] + bhh[0, 0], bih[1, 0] + bhh[1, 0],
                              bih[0, 1] + bhh[0, 1], bih[1, 1] + bhh[1, 1],
                              bih[0, 2], bih[1, 2]], axis=-1)                  # (6L,)
        bi_list.append(bi[None, :])
        bhn_list.append(jnp.concatenate([bhh[0, 2], bhh[1, 2]], axis=-1)[None, :])  # (1, 2L)

    return dict(
        we1=p['we1'], be1=p['be1'], we2=p['we2'], be2=p['be2'],
        we3=p['we3'], be3=p['be3'],
        wih0=wih0_f, wih_deep=wih_deep,
        whh=jnp.stack(whh_list),          # (NL, 2L, 6L)
        b_i=jnp.stack(bi_list),           # (NL, 1, 6L)
        b_hn=jnp.stack(bhn_list),         # (NL, 1, 2L)
        wfc=p['wfc'], bfc=p['bfc'],
    )


# --------------------------- pure-JAX reference -----------------------------


def reference_forward(obsrv, p, NL, L):
    """Unfused reference with PyTorch-GRU semantics (for the correctness check)."""
    S, B, O = obsrv.shape
    z_hat = [jnp.zeros((B, L), jnp.float32)]
    h = [[jnp.zeros((B, L), jnp.float32) for _ in range(2)] for _ in range(NL)]
    for k in range(1, S):
        x = obsrv[k]
        e = _leaky_relu(x @ p['we1'] + p['be1'])
        e = _leaky_relu(e @ p['we2'] + p['be2'])
        emb = e @ p['we3'] + p['be3']
        layer_in = emb                                    # layer 0 input, (B, L)
        for l in range(NL):
            outs = []
            for d in range(2):
                hp = h[l][d]
                wih = p['wih0'][d] if l == 0 else p['wih'][l - 1][d]
                whh = p['whh'][l][d]
                bih = p['bih'][l][d]
                bhh = p['bhh'][l][d]
                gi = [layer_in @ wih[g] + bih[g] for g in range(3)]
                gh = [hp @ whh[g] + bhh[g] for g in range(3)]
                r = jax.nn.sigmoid(gi[0] + gh[0])
                z = jax.nn.sigmoid(gi[1] + gh[1])
                n = jnp.tanh(gi[2] + r * gh[2])
                hn = (1.0 - z) * n + z * hp
                h[l][d] = hn
                outs.append(hn)
            layer_in = jnp.concatenate(outs, axis=-1)     # (B, 2L)
        z_hat.append(layer_in @ p['wfc'] + p['bfc'])
    return jnp.stack(z_hat)                               # (S, B, L)


if __name__ == "__main__":
    # small shapes: seq=8, batch=8, obser_dim=8, latent_dim=16, n_layers=2 (bidirectional GRU)
    S, B, O, L, NL = 8, 8, 8, 16, 2
    key = jax.random.PRNGKey(0)
    k_obs, k_par = jax.random.split(key)
    obsrv = jax.random.normal(k_obs, (S, B, O), dtype=jnp.float32)

    raw = init_raw_params(k_par, O, L, NL)
    fused = pack_params(raw, L, NL)

    out = rnn_baseline_forward(obsrv, fused, NL, L)
    out = jax.block_until_ready(out)
    assert out.shape == (S, B, L)

    ref = jax.block_until_ready(reference_forward(obsrv, raw, NL, L))
    if not np.allclose(np.asarray(out), np.asarray(ref), rtol=1e-2, atol=1e-3):
        raise AssertionError("Pallas kernel output does not match JAX reference")

    print("KERNEL_OK")
</pallas_src>

<mosaic_0001>
module attributes {stable_mosaic.version = 11 : i64} {
  func.func @kernel(%arg0: memref<64x8xf32, #tpu.memory_space<vmem>>, %arg1: memref<8x8xf32, #tpu.memory_space<vmem>>, %arg2: memref<1x8xf32, #tpu.memory_space<vmem>>, %arg3: memref<8x16xf32, #tpu.memory_space<vmem>>, %arg4: memref<1x16xf32, #tpu.memory_space<vmem>>, %arg5: memref<16x16xf32, #tpu.memory_space<vmem>>, %arg6: memref<1x16xf32, #tpu.memory_space<vmem>>, %arg7: memref<16x96xf32, #tpu.memory_space<vmem>>, %arg8: memref<1x32x96xf32, #tpu.memory_space<vmem>>, %arg9: memref<2x32x96xf32, #tpu.memory_space<vmem>>, %arg10: memref<2x1x96xf32, #tpu.memory_space<vmem>>, %arg11: memref<2x1x32xf32, #tpu.memory_space<vmem>>, %arg12: memref<32x16xf32, #tpu.memory_space<vmem>>, %arg13: memref<1x16xf32, #tpu.memory_space<vmem>>, %arg14: memref<64x16xf32, #tpu.memory_space<vmem>>) attributes {dimension_semantics = [], scalar_prefetch = 0 : i64, scratch_operands = 0 : i64, tpu.core_type = #tpu.core_type<tc>} {
    %c0 = arith.constant 0 : index
    %c0_0 = arith.constant 0 : index
    %c0_1 = arith.constant 0 : index
    %0 = vector.load %arg9[%c0, %c0_0, %c0_1] : memref<2x32x96xf32, #tpu.memory_space<vmem>>, vector<2x32x96xf32>
    %c0_2 = arith.constant 0 : index
    %c0_3 = arith.constant 0 : index
    %c0_4 = arith.constant 0 : index
    %1 = vector.load %arg8[%c0_2, %c0_3, %c0_4] : memref<1x32x96xf32, #tpu.memory_space<vmem>>, vector<1x32x96xf32>
    %c0_5 = arith.constant 0 : index
    %c0_6 = arith.constant 0 : index
    %c0_7 = arith.constant 0 : index
    %2 = vector.load %arg10[%c0_5, %c0_6, %c0_7] : memref<2x1x96xf32, #tpu.memory_space<vmem>>, vector<2x1x96xf32>
    %c0_8 = arith.constant 0 : index
    %c0_9 = arith.constant 0 : index
    %c0_10 = arith.constant 0 : index
    %3 = vector.load %arg11[%c0_8, %c0_9, %c0_10] : memref<2x1x32xf32, #tpu.memory_space<vmem>>, vector<2x1x32xf32>
    %c0_11 = arith.constant 0 : index
    %c0_12 = arith.constant 0 : index
    %4 = vector.load %arg12[%c0_11, %c0_12] : memref<32x16xf32, #tpu.memory_space<vmem>>, vector<32x16xf32>
    %c0_13 = arith.constant 0 : index
    %c0_14 = arith.constant 0 : index
    %5 = vector.load %arg13[%c0_13, %c0_14] : memref<1x16xf32, #tpu.memory_space<vmem>>, vector<1x16xf32>
    %c0_15 = arith.constant 0 : index
    %c0_16 = arith.constant 0 : index
    %6 = vector.load %arg0[%c0_15, %c0_16] : memref<64x8xf32, #tpu.memory_space<vmem>>, vector<64x8xf32>
    %c0_17 = arith.constant 0 : index
    %c0_18 = arith.constant 0 : index
    %7 = vector.load %arg1[%c0_17, %c0_18] : memref<8x8xf32, #tpu.memory_space<vmem>>, vector<8x8xf32>
    %cst = arith.constant dense<0.000000e+00> : vector<64x8xf32>
    %8 = tpu.matmul %6, %7, %cst {dimension_numbers = #tpu.dot_dimension_numbers<[1], [0], [0], [1], [0, 0, 1, 1], [], []>} : vector<64x8xf32>, vector<8x8xf32>, vector<64x8xf32> -> vector<64x8xf32>
    %c0_19 = arith.constant 0 : index
    %c0_20 = arith.constant 0 : index
    %9 = vector.load %arg2[%c0_19, %c0_20] : memref<1x8xf32, #tpu.memory_space<vmem>>, vector<1x8xf32>
    %10 = vector.broadcast %9 : vector<1x8xf32> to vector<64x8xf32>
    %11 = arith.addf %8, %10 : vector<64x8xf32>
    %cst_21 = arith.constant 0.000000e+00 : f32
    %12 = vector.broadcast %cst_21 : f32 to vector<64x8xf32>
    %13 = arith.cmpf ogt, %11, %12 : vector<64x8xf32>
    %cst_22 = arith.constant 0.00999999977 : f32
    %14 = vector.broadcast %cst_22 : f32 to vector<64x8xf32>
    %15 = arith.mulf %14, %11 : vector<64x8xf32>
    %16 = arith.select %13, %11, %15 : vector<64x8xi1>, vector<64x8xf32>
    %c0_23 = arith.constant 0 : index
    %c0_24 = arith.constant 0 : index
    %17 = vector.load %arg3[%c0_23, %c0_24] : memref<8x16xf32, #tpu.memory_space<vmem>>, vector<8x16xf32>
    %cst_25 = arith.constant dense<0.000000e+00> : vector<64x16xf32>
    %18 = tpu.matmul %16, %17, %cst_25 {dimension_numbers = #tpu.dot_dimension_numbers<[1], [0], [0], [1], [0, 0, 1, 1], [], []>} : vector<64x8xf32>, vector<8x16xf32>, vector<64x16xf32> -> vector<64x16xf32>
    %c0_26 = arith.constant 0 : index
    %c0_27 = arith.constant 0 : index
    %19 = vector.load %arg4[%c0_26, %c0_27] : memref<1x16xf32, #tpu.memory_space<vmem>>, vector<1x16xf32>
    %20 = vector.broadcast %19 : vector<1x16xf32> to vector<64x16xf32>
    %21 = arith.addf %18, %20 : vector<64x16xf32>
    %cst_28 = arith.constant 0.000000e+00 : f32
    %22 = vector.broadcast %cst_28 : f32 to vector<64x16xf32>
    %23 = arith.cmpf ogt, %21, %22 : vector<64x16xf32>
    %cst_29 = arith.constant 0.00999999977 : f32
    %24 = vector.broadcast %cst_29 : f32 to vector<64x16xf32>
    %25 = arith.mulf %24, %21 : vector<64x16xf32>
    %26 = arith.select %23, %21, %25 : vector<64x16xi1>, vector<64x16xf32>
    %c0_30 = arith.constant 0 : index
    %c0_31 = arith.constant 0 : index
    %27 = vector.load %arg5[%c0_30, %c0_31] : memref<16x16xf32, #tpu.memory_space<vmem>>, vector<16x16xf32>
    %cst_32 = arith.constant dense<0.000000e+00> : vector<64x16xf32>
    %28 = tpu.matmul %26, %27, %cst_32 {dimension_numbers = #tpu.dot_dimension_numbers<[1], [0], [0], [1], [0, 0, 1, 1], [], []>} : vector<64x16xf32>, vector<16x16xf32>, vector<64x16xf32> -> vector<64x16xf32>
    %c0_33 = arith.constant 0 : index
    %c0_34 = arith.constant 0 : index
    %29 = vector.load %arg6[%c0_33, %c0_34] : memref<1x16xf32, #tpu.memory_space<vmem>>, vector<1x16xf32>
    %30 = vector.broadcast %29 : vector<1x16xf32> to vector<64x16xf32>
    %31 = arith.addf %28, %30 : vector<64x16xf32>
    %c0_35 = arith.constant 0 : index
    %c0_36 = arith.constant 0 : index
    %32 = vector.load %arg7[%c0_35, %c0_36] : memref<16x96xf32, #tpu.memory_space<vmem>>, vector<16x96xf32>
    %cst_37 = arith.constant dense<0.000000e+00> : vector<64x96xf32>
    %33 = tpu.matmul %31, %32, %cst_37 {dimension_numbers = #tpu.dot_dimension_numbers<[1], [0], [0], [1], [0, 0, 1, 1], [], []>} : vector<64x16xf32>, vector<16x96xf32>, vector<64x96xf32> -> vector<64x96xf32>
    %34 = vector.extract_strided_slice %2 {offsets = [0, 0, 0], sizes = [1, 1, 96], strides = [1, 1, 1]} : vector<2x1x96xf32> to vector<1x1x96xf32>
    %35 = vector.shape_cast %34 : vector<1x1x96xf32> to vector<1x96xf32>
    %36 = vector.broadcast %35 : vector<1x96xf32> to vector<64x96xf32>
    %37 = arith.addf %33, %36 : vector<64x96xf32>
    %cst_38 = arith.constant 0.000000e+00 : f32
    %38 = vector.broadcast %cst_38 : f32 to vector<8x16xf32>
    %c0_39 = arith.constant 0 : index
    %c0_40 = arith.constant 0 : index
    %39 = vector.load %arg14[%c0_39, %c0_40] : memref<64x16xf32, #tpu.memory_space<vmem>>, vector<8x16xf32>
    tpu.vector_store %arg14[%c0_39, %c0_40], %38 {strides = array<i32>} : memref<64x16xf32, #tpu.memory_space<vmem>>, vector<8x16xf32>,
    %cst_41 = arith.constant 0.000000e+00 : f32
    %40 = vector.broadcast %cst_41 : f32 to vector<8x32xf32>
    %cst_42 = arith.constant 0.000000e+00 : f32
    %41 = vector.broadcast %cst_42 : f32 to vector<8x32xf32>
    %42 = vector.extract_strided_slice %37 {offsets = [8, 0], sizes = [8, 96], strides = [1, 1]} : vector<64x96xf32> to vector<8x96xf32>
    %43 = vector.extract_strided_slice %0 {offsets = [0, 0, 0], sizes = [1, 32, 96], strides = [1, 1, 1]} : vector<2x32x96xf32> to vector<1x32x96xf32>
    %44 = vector.shape_cast %43 : vector<1x32x96xf32> to vector<32x96xf32>
    %cst_43 = arith.constant dense<0.000000e+00> : vector<8x96xf32>
    %45 = tpu.matmul %40, %44, %cst_43 {dimension_numbers = #tpu.dot_dimension_numbers<[1], [0], [0], [1], [0, 0, 1, 1], [], []>} : vector<8x32xf32>, vector<32x96xf32>, vector<8x96xf32> -> vector<8x96xf32>
    %46 = vector.extract_strided_slice %42 {offsets = [0, 0], sizes = [8, 32], strides = [1, 1]} : vector<8x96xf32> to vector<8x32xf32>
    %47 = vector.extract_strided_slice %45 {offsets = [0, 0], sizes = [8, 32], strides = [1, 1]} : vector<8x96xf32> to vector<8x32xf32>
    %48 = arith.addf %46, %47 : vector<8x32xf32>
    %49 = arith.negf %48 : vector<8x32xf32>
    %50 = math.exp %49 : vector<8x32xf32>
    %cst_44 = arith.constant 1.000000e+00 : f32
    %51 = vector.broadcast %cst_44 : f32 to vector<8x32xf32>
    %52 = arith.addf %51, %50 : vector<8x32xf32>
    %53 = arith.divf %51, %52 : vector<8x32xf32>
    %54 = vector.extract_strided_slice %42 {offsets = [0, 32], sizes = [8, 32], strides = [1, 1]} : vector<8x96xf32> to vector<8x32xf32>
    %55 = vector.extract_strided_slice %45 {offsets = [0, 32], sizes = [8, 32], strides = [1, 1]} : vector<8x96xf32> to vector<8x32xf32>
    %56 = arith.addf %54, %55 : vector<8x32xf32>
    %57 = arith.negf %56 : vector<8x32xf32>
    %58 = math.exp %57 : vector<8x32xf32>
    %cst_45 = arith.constant 1.000000e+00 : f32
    %59 = vector.broadcast %cst_45 : f32 to vector<8x32xf32>
    %60 = arith.addf %59, %58 : vector<8x32xf32>
    %61 = arith.divf %59, %60 : vector<8x32xf32>
    %62 = vector.extract_strided_slice %42 {offsets = [0, 64], sizes = [8, 32], strides = [1, 1]} : vector<8x96xf32> to vector<8x32xf32>
    %63 = vector.extract_strided_slice %45 {offsets = [0, 64], sizes = [8, 32], strides = [1, 1]} : vector<8x96xf32> to vector<8x32xf32>
    %64 = vector.extract_strided_slice %3 {offsets = [0, 0, 0], sizes = [1, 1, 32], strides = [1, 1, 1]} : vector<2x1x32xf32> to vector<1x1x32xf32>
    %65 = vector.shape_cast %64 : vector<1x1x32xf32> to vector<1x32xf32>
    %66 = vector.broadcast %65 : vector<1x32xf32> to vector<8x32xf32>
    %67 = arith.addf %63, %66 : vector<8x32xf32>
    %68 = arith.mulf %53, %67 : vector<8x32xf32>
    %69 = arith.addf %62, %68 : vector<8x32xf32>
    %70 = math.tanh %69 : vector<8x32xf32>
    %cst_46 = arith.constant 1.000000e+00 : f32
    %71 = vector.broadcast %cst_46 : f32 to vector<8x32xf32>
    %72 = arith.subf %71, %61 : vector<8x32xf32>
    %73 = arith.mulf %72, %70 : vector<8x32xf32>
    %74 = arith.mulf %61, %40 : vector<8x32xf32>
    %75 = arith.addf %73, %74 : vector<8x32xf32>
    %76 = vector.shape_cast %1 : vector<1x32x96xf32> to vector<32x96xf32>
    %cst_47 = arith.constant dense<0.000000e+00> : vector<8x96xf32>
    %77 = tpu.matmul %75, %76, %cst_47 {dimension_numbers = #tpu.dot_dimension_numbers<[1], [0], [0], [1], [0, 0, 1, 1], [], []>} : vector<8x32xf32>, vector<32x96xf32>, vector<8x96xf32> -> vector<8x96xf32>
    %78 = vector.extract_strided_slice %2 {offsets = [1, 0, 0], sizes = [1, 1, 96], strides = [1, 1, 1]} : vector<2x1x96xf32> to vector<1x1x96xf32>
    %79 = vector.shape_cast %78 : vector<1x1x96xf32> to vector<1x96xf32>
    %80 = vector.broadcast %79 : vector<1x96xf32> to vector<8x96xf32>
    %81 = arith.addf %77, %80 : vector<8x96xf32>
    %82 = vector.extract_strided_slice %0 {offsets = [1, 0, 0], sizes = [1, 32, 96], strides = [1, 1, 1]} : vector<2x32x96xf32> to vector<1x32x96xf32>
    %83 = vector.shape_cast %82 : vector<1x32x96xf32> to vector<32x96xf32>
    %cst_48 = arith.constant dense<0.000000e+00> : vector<8x96xf32>
    %84 = tpu.matmul %41, %83, %cst_48 {dimension_numbers = #tpu.dot_dimension_numbers<[1], [0], [0], [1], [0, 0, 1, 1], [], []>} : vector<8x32xf32>, vector<32x96xf32>, vector<8x96xf32> -> vector<8x96xf32>
    %85 = vector.extract_strided_slice %81 {offsets = [0, 0], sizes = [8, 32], strides = [1, 1]} : vector<8x96xf32> to vector<8x32xf32>
    %86 = vector.extract_strided_slice %84 {offsets = [0, 0], sizes = [8, 32], strides = [1, 1]} : vector<8x96xf32> to vector<8x32xf32>
    %87 = arith.addf %85, %86 : vector<8x32xf32>
    %88 = arith.negf %87 : vector<8x32xf32>
    %89 = math.exp %88 : vector<8x32xf32>
    %cst_49 = arith.constant 1.000000e+00 : f32
    %90 = vector.broadcast %cst_49 : f32 to vector<8x32xf32>
    %91 = arith.addf %90, %89 : vector<8x32xf32>
    %92 = arith.divf %90, %91 : vector<8x32xf32>
    %93 = vector.extract_strided_slice %81 {offsets = [0, 32], sizes = [8, 32], strides = [1, 1]} : vector<8x96xf32> to vector<8x32xf32>
    %94 = vector.extract_strided_slice %84 {offsets = [0, 32], sizes = [8, 32], strides = [1, 1]} : vector<8x96xf32> to vector<8x32xf32>
    %95 = arith.addf %93, %94 : vector<8x32xf32>
    %96 = arith.negf %95 : vector<8x32xf32>
    %97 = math.exp %96 : vector<8x32xf32>
    %cst_50 = arith.constant 1.000000e+00 : f32
    %98 = vector.broadcast %cst_50 : f32 to vector<8x32xf32>
    %99 = arith.addf %98, %97 : vector<8x32xf32>
    %100 = arith.divf %98, %99 : vector<8x32xf32>
    %101 = vector.extract_strided_slice %81 {offsets = [0, 64], sizes = [8, 32], strides = [1, 1]} : vector<8x96xf32> to vector<8x32xf32>
    %102 = vector.extract_strided_slice %84 {offsets = [0, 64], sizes = [8, 32], strides = [1, 1]} : vector<8x96xf32> to vector<8x32xf32>
    %103 = vector.extract_strided_slice %3 {offsets = [1, 0, 0], sizes = [1, 1, 32], strides = [1, 1, 1]} : vector<2x1x32xf32> to vector<1x1x32xf32>
    %104 = vector.shape_cast %103 : vector<1x1x32xf32> to vector<1x32xf32>
    %105 = vector.broadcast %104 : vector<1x32xf32> to vector<8x32xf32>
    %106 = arith.addf %102, %105 : vector<8x32xf32>
    %107 = arith.mulf %92, %106 : vector<8x32xf32>
    %108 = arith.addf %101, %107 : vector<8x32xf32>
    %109 = math.tanh %108 : vector<8x32xf32>
    %cst_51 = arith.constant 1.000000e+00 : f32
    %110 = vector.broadcast %cst_51 : f32 to vector<8x32xf32>
    %111 = arith.subf %110, %100 : vector<8x32xf32>
    %112 = arith.mulf %111, %109 : vector<8x32xf32>
    %113 = arith.mulf %100, %41 : vector<8x32xf32>
    %114 = arith.addf %112, %113 : vector<8x32xf32>
    %cst_52 = arith.constant dense<0.000000e+00> : vector<8x16xf32>
    %115 = tpu.matmul %114, %4, %cst_52 {dimension_numbers = #tpu.dot_dimension_numbers<[1], [0], [0], [1], [0, 0, 1, 1], [], []>} : vector<8x32xf32>, vector<32x16xf32>, vector<8x16xf32> -> vector<8x16xf32>
    %116 = vector.broadcast %5 : vector<1x16xf32> to vector<8x16xf32>
    %117 = arith.addf %115, %116 : vector<8x16xf32>
    %c8 = arith.constant 8 : index
    %c0_53 = arith.constant 0 : index
    %118 = vector.load %arg14[%c8, %c0_53] : memref<64x16xf32, #tpu.memory_space<vmem>>, vector<8x16xf32>
    tpu.vector_store %arg14[%c8, %c0_53], %117 {strides = array<i32>} : memref<64x16xf32, #tpu.memory_space<vmem>>, vector<8x16xf32>,
    %119 = vector.extract_strided_slice %37 {offsets = [16, 0], sizes = [8, 96], strides = [1, 1]} : vector<64x96xf32> to vector<8x96xf32>
    %120 = vector.extract_strided_slice %0 {offsets = [0, 0, 0], sizes = [1, 32, 96], strides = [1, 1, 1]} : vector<2x32x96xf32> to vector<1x32x96xf32>
    %121 = vector.shape_cast %120 : vector<1x32x96xf32> to vector<32x96xf32>
    %cst_54 = arith.constant dense<0.000000e+00> : vector<8x96xf32>
    %122 = tpu.matmul %75, %121, %cst_54 {dimension_numbers = #tpu.dot_dimension_numbers<[1], [0], [0], [1], [0, 0, 1, 1], [], []>} : vector<8x32xf32>, vector<32x96xf32>, vector<8x96xf32> -> vector<8x96xf32>
    %123 = vector.extract_strided_slice %119 {offsets = [0, 0], sizes = [8, 32], strides = [1, 1]} : vector<8x96xf32> to vector<8x32xf32>
    %124 = vector.extract_strided_slice %122 {offsets = [0, 0], sizes = [8, 32], strides = [1, 1]} : vector<8x96xf32> to vector<8x32xf32>
    %125 = arith.addf %123, %124 : vector<8x32xf32>
    %126 = arith.negf %125 : vector<8x32xf32>
    %127 = math.exp %126 : vector<8x32xf32>
    %cst_55 = arith.constant 1.000000e+00 : f32
    %128 = vector.broadcast %cst_55 : f32 to vector<8x32xf32>
    %129 = arith.addf %128, %127 : vector<8x32xf32>
    %130 = arith.divf %128, %129 : vector<8x32xf32>
    %131 = vector.extract_strided_slice %119 {offsets = [0, 32], sizes = [8, 32], strides = [1, 1]} : vector<8x96xf32> to vector<8x32xf32>
    %132 = vector.extract_strided_slice %122 {offsets = [0, 32], sizes = [8, 32], strides = [1, 1]} : vector<8x96xf32> to vector<8x32xf32>
    %133 = arith.addf %131, %132 : vector<8x32xf32>
    %134 = arith.negf %133 : vector<8x32xf32>
    %135 = math.exp %134 : vector<8x32xf32>
    %cst_56 = arith.constant 1.000000e+00 : f32
    %136 = vector.broadcast %cst_56 : f32 to vector<8x32xf32>
    %137 = arith.addf %136, %135 : vector<8x32xf32>
    %138 = arith.divf %136, %137 : vector<8x32xf32>
    %139 = vector.extract_strided_slice %119 {offsets = [0, 64], sizes = [8, 32], strides = [1, 1]} : vector<8x96xf32> to vector<8x32xf32>
    %140 = vector.extract_strided_slice %122 {offsets = [0, 64], sizes = [8, 32], strides = [1, 1]} : vector<8x96xf32> to vector<8x32xf32>
    %141 = vector.extract_strided_slice %3 {offsets = [0, 0, 0], sizes = [1, 1, 32], strides = [1, 1, 1]} : vector<2x1x32xf32> to vector<1x1x32xf32>
    %142 = vector.shape_cast %141 : vector<1x1x32xf32> to vector<1x32xf32>
    %143 = vector.broadcast %142 : vector<1x32xf32> to vector<8x32xf32>
    %144 = arith.addf %140, %143 : vector<8x32xf32>
    %145 = arith.mulf %130, %144 : vector<8x32xf32>
    %146 = arith.addf %139, %145 : vector<8x32xf32>
    %147 = math.tanh %146 : vector<8x32xf32>
    %cst_57 = arith.constant 1.000000e+00 : f32
    %148 = vector.broadcast %cst_57 : f32 to vector<8x32xf32>
    %149 = arith.subf %148, %138 : vector<8x32xf32>
    %150 = arith.mulf %149, %147 : vector<8x32xf32>
    %151 = arith.mulf %138, %75 : vector<8x32xf32>
    %152 = arith.addf %150, %151 : vector<8x32xf32>
    %153 = vector.shape_cast %1 : vector<1x32x96xf32> to vector<32x96xf32>
    %cst_58 = arith.constant dense<0.000000e+00> : vector<8x96xf32>
    %154 = tpu.matmul %152, %153, %cst_58 {dimension_numbers = #tpu.dot_dimension_numbers<[1], [0], [0], [1], [0, 0, 1, 1], [], []>} : vector<8x32xf32>, vector<32x96xf32>, vector<8x96xf32> -> vector<8x96xf32>
    %155 = vector.extract_strided_slice %2 {offsets = [1, 0, 0], sizes = [1, 1, 96], strides = [1, 1, 1]} : vector<2x1x96xf32> to vector<1x1x96xf32>
    %156 = vector.shape_cast %155 : vector<1x1x96xf32> to vector<1x96xf32>
    %157 = vector.broadcast %156 : vector<1x96xf32> to vector<8x96xf32>
    %158 = arith.addf %154, %157 : vector<8x96xf32>
    %159 = vector.extract_strided_slice %0 {offsets = [1, 0, 0], sizes = [1, 32, 96], strides = [1, 1, 1]} : vector<2x32x96xf32> to vector<1x32x96xf32>
    %160 = vector.shape_cast %159 : vector<1x32x96xf32> to vector<32x96xf32>
    %cst_59 = arith.constant dense<0.000000e+00> : vector<8x96xf32>
    %161 = tpu.matmul %114, %160, %cst_59 {dimension_numbers = #tpu.dot_dimension_numbers<[1], [0], [0], [1], [0, 0, 1, 1], [], []>} : vector<8x32xf32>, vector<32x96xf32>, vector<8x96xf32> -> vector<8x96xf32>
    %162 = vector.extract_strided_slice %158 {offsets = [0, 0], sizes = [8, 32], strides = [1, 1]} : vector<8x96xf32> to vector<8x32xf32>
    %163 = vector.extract_strided_slice %161 {offsets = [0, 0], sizes = [8, 32], strides = [1, 1]} : vector<8x96xf32> to vector<8x32xf32>
    %164 = arith.addf %162, %163 : vector<8x32xf32>
    %165 = arith.negf %164 : vector<8x32xf32>
    %166 = math.exp %165 : vector<8x32xf32>
    %cst_60 = arith.constant 1.000000e+00 : f32
    %167 = vector.broadcast %cst_60 : f32 to vector<8x32xf32>
    %168 = arith.addf %167, %166 : vector<8x32xf32>
    %169 = arith.divf %167, %168 : vector<8x32xf32>
    %170 = vector.extract_strided_slice %158 {offsets = [0, 32], sizes = [8, 32], strides = [1, 1]} : vector<8x96xf32> to vector<8x32xf32>
    %171 = vector.extract_strided_slice %161 {offsets = [0, 32], sizes = [8, 32], strides = [1, 1]} : vector<8x96xf32> to vector<8x32xf32>
    %172 = arith.addf %170, %171 : vector<8x32xf32>
    %173 = arith.negf %172 : vector<8x32xf32>
    %174 = math.exp %173 : vector<8x32xf32>
    %cst_61 = arith.constant 1.000000e+00 : f32
    %175 = vector.broadcast %cst_61 : f32 to vector<8x32xf32>
    %176 = arith.addf %175, %174 : vector<8x32xf32>
    %177 = arith.divf %175, %176 : vector<8x32xf32>
    %178 = vector.extract_strided_slice %158 {offsets = [0, 64], sizes = [8, 32], strides = [1, 1]} : vector<8x96xf32> to vector<8x32xf32>
    %179 = vector.extract_strided_slice %161 {offsets = [0, 64], sizes = [8, 32], strides = [1, 1]} : vector<8x96xf32> to vector<8x32xf32>
    %180 = vector.extract_strided_slice %3 {offsets = [1, 0, 0], sizes = [1, 1, 32], strides = [1, 1, 1]} : vector<2x1x32xf32> to vector<1x1x32xf32>
    %181 = vector.shape_cast %180 : vector<1x1x32xf32> to vector<1x32xf32>
    %182 = vector.broadcast %181 : vector<1x32xf32> to vector<8x32xf32>
    %183 = arith.addf %179, %182 : vector<8x32xf32>
    %184 = arith.mulf %169, %183 : vector<8x32xf32>
    %185 = arith.addf %178, %184 : vector<8x32xf32>
    %186 = math.tanh %185 : vector<8x32xf32>
    %cst_62 = arith.constant 1.000000e+00 : f32
    %187 = vector.broadcast %cst_62 : f32 to vector<8x32xf32>
    %188 = arith.subf %187, %177 : vector<8x32xf32>
    %189 = arith.mulf %188, %186 : vector<8x32xf32>
    %190 = arith.mulf %177, %114 : vector<8x32xf32>
    %191 = arith.addf %189, %190 : vector<8x32xf32>
    %cst_63 = arith.constant dense<0.000000e+00> : vector<8x16xf32>
    %192 = tpu.matmul %191, %4, %cst_63 {dimension_numbers = #tpu.dot_dimension_numbers<[1], [0], [0], [1], [0, 0, 1, 1], [], []>} : vector<8x32xf32>, vector<32x16xf32>, vector<8x16xf32> -> vector<8x16xf32>
    %193 = vector.broadcast %5 : vector<1x16xf32> to vector<8x16xf32>
    %194 = arith.addf %192, %193 : vector<8x16xf32>
    %c16 = arith.constant 16 : index
    %c0_64 = arith.constant 0 : index
    %195 = vector.load %arg14[%c16, %c0_64] : memref<64x16xf32, #tpu.memory_space<vmem>>, vector<8x16xf32>
    tpu.vector_store %arg14[%c16, %c0_64], %194 {strides = array<i32>} : memref<64x16xf32, #tpu.memory_space<vmem>>, vector<8x16xf32>,
    %196 = vector.extract_strided_slice %37 {offsets = [24, 0], sizes = [8, 96], strides = [1, 1]} : vector<64x96xf32> to vector<8x96xf32>
    %197 = vector.extract_strided_slice %0 {offsets = [0, 0, 0], sizes = [1, 32, 96], strides = [1, 1, 1]} : vector<2x32x96xf32> to vector<1x32x96xf32>
    %198 = vector.shape_cast %197 : vector<1x32x96xf32> to vector<32x96xf32>
    %cst_65 = arith.constant dense<0.000000e+00> : vector<8x96xf32>
    %199 = tpu.matmul %152, %198, %cst_65 {dimension_numbers = #tpu.dot_dimension_numbers<[1], [0], [0], [1], [0, 0, 1, 1], [], []>} : vector<8x32xf32>, vector<32x96xf32>, vector<8x96xf32> -> vector<8x96xf32>
    %200 = vector.extract_strided_slice %196 {offsets = [0, 0], sizes = [8, 32], strides = [1, 1]} : vector<8x96xf32> to vector<8x32xf32>
    %201 = vector.extract_strided_slice %199 {offsets = [0, 0], sizes = [8, 32], strides = [1, 1]} : vector<8x96xf32> to vector<8x32xf32>
    %202 = arith.addf %200, %201 : vector<8x32xf32>
    %203 = arith.negf %202 : vector<8x32xf32>
    %204 = math.exp %203 : vector<8x32xf32>
    %cst_66 = arith.constant 1.000000e+00 : f32
    %205 = vector.broadcast %cst_66 : f32 to vector<8x32xf32>
    %206 = arith.addf %205, %204 : vector<8x32xf32>
    %207 = arith.divf %205, %206 : vector<8x32xf32>
    %208 = vector.extract_strided_slice %196 {offsets = [0, 32], sizes = [8, 32], strides = [1, 1]} : vector<8x96xf32> to vector<8x32xf32>
    %209 = vector.extract_strided_slice %199 {offsets = [0, 32], sizes = [8, 32], strides = [1, 1]} : vector<8x96xf32> to vector<8x32xf32>
    %210 = arith.addf %208, %209 : vector<8x32xf32>
    %211 = arith.negf %210 : vector<8x32xf32>
    %212 = math.exp %211 : vector<8x32xf32>
    %cst_67 = arith.constant 1.000000e+00 : f32
    %213 = vector.broadcast %cst_67 : f32 to vector<8x32xf32>
    %214 = arith.addf %213, %212 : vector<8x32xf32>
    %215 = arith.divf %213, %214 : vector<8x32xf32>
    %216 = vector.extract_strided_slice %196 {offsets = [0, 64], sizes = [8, 32], strides = [1, 1]} : vector<8x96xf32> to vector<8x32xf32>
    %217 = vector.extract_strided_slice %199 {offsets = [0, 64], sizes = [8, 32], strides = [1, 1]} : vector<8x96xf32> to vector<8x32xf32>
    %218 = vector.extract_strided_slice %3 {offsets = [0, 0, 0], sizes = [1, 1, 32], strides = [1, 1, 1]} : vector<2x1x32xf32> to vector<1x1x32xf32>
    %219 = vector.shape_cast %218 : vector<1x1x32xf32> to vector<1x32xf32>
    %220 = vector.broadcast %219 : vector<1x32xf32> to vector<8x32xf32>
    %221 = arith.addf %217, %220 : vector<8x32xf32>
    %222 = arith.mulf %207, %221 : vector<8x32xf32>
    %223 = arith.addf %216, %222 : vector<8x32xf32>
    %224 = math.tanh %223 : vector<8x32xf32>
    %cst_68 = arith.constant 1.000000e+00 : f32
    %225 = vector.broadcast %cst_68 : f32 to vector<8x32xf32>
    %226 = arith.subf %225, %215 : vector<8x32xf32>
    %227 = arith.mulf %226, %224 : vector<8x32xf32>
    %228 = arith.mulf %215, %152 : vector<8x32xf32>
    %229 = arith.addf %227, %228 : vector<8x32xf32>
    %230 = vector.shape_cast %1 : vector<1x32x96xf32> to vector<32x96xf32>
    %cst_69 = arith.constant dense<0.000000e+00> : vector<8x96xf32>
    %231 = tpu.matmul %229, %230, %cst_69 {dimension_numbers = #tpu.dot_dimension_numbers<[1], [0], [0], [1], [0, 0, 1, 1], [], []>} : vector<8x32xf32>, vector<32x96xf32>, vector<8x96xf32> -> vector<8x96xf32>
    %232 = vector.extract_strided_slice %2 {offsets = [1, 0, 0], sizes = [1, 1, 96], strides = [1, 1, 1]} : vector<2x1x96xf32> to vector<1x1x96xf32>
    %233 = vector.shape_cast %232 : vector<1x1x96xf32> to vector<1x96xf32>
    %234 = vector.broadcast %233 : vector<1x96xf32> to vector<8x96xf32>
    %235 = arith.addf %231, %234 : vector<8x96xf32>
    %236 = vector.extract_strided_slice %0 {offsets = [1, 0, 0], sizes = [1, 32, 96], strides = [1, 1, 1]} : vector<2x32x96xf32> to vector<1x32x96xf32>
    %237 = vector.shape_cast %236 : vector<1x32x96xf32> to vector<32x96xf32>
    %cst_70 = arith.constant dense<0.000000e+00> : vector<8x96xf32>
    %238 = tpu.matmul %191, %237, %cst_70 {dimension_numbers = #tpu.dot_dimension_numbers<[1], [0], [0], [1], [0, 0, 1, 1], [], []>} : vector<8x32xf32>, vector<32x96xf32>, vector<8x96xf32> -> vector<8x96xf32>
    %239 = vector.extract_strided_slice %235 {offsets = [0, 0], sizes = [8, 32], strides = [1, 1]} : vector<8x96xf32> to vector<8x32xf32>
    %240 = vector.extract_strided_slice %238 {offsets = [0, 0], sizes = [8, 32], strides = [1, 1]} : vector<8x96xf32> to vector<8x32xf32>
    %241 = arith.addf %239, %240 : vector<8x32xf32>
    %242 = arith.negf %241 : vector<8x32xf32>
    %243 = math.exp %242 : vector<8x32xf32>
    %cst_71 = arith.constant 1.000000e+00 : f32
    %244 = vector.broadcast %cst_71 : f32 to vector<8x32xf32>
    %245 = arith.addf %244, %243 : vector<8x32xf32>
    %246 = arith.divf %244, %245 : vector<8x32xf32>
    %247 = vector.extract_strided_slice %235 {offsets = [0, 32], sizes = [8, 32], strides = [1, 1]} : vector<8x96xf32> to vector<8x32xf32>
    %248 = vector.extract_strided_slice %238 {offsets = [0, 32], sizes = [8, 32], strides = [1, 1]} : vector<8x96xf32> to vector<8x32xf32>
    %249 = arith.addf %247, %248 : vector<8x32xf32>
    %250 = arith.negf %249 : vector<8x32xf32>
    %251 = math.exp %250 : vector<8x32xf32>
    %cst_72 = arith.constant 1.000000e+00 : f32
    %252 = vector.broadcast %cst_72 : f32 to vector<8x32xf32>
    %253 = arith.addf %252, %251 : vector<8x32xf32>
    %254 = arith.divf %252, %253 : vector<8x32xf32>
    %255 = vector.extract_strided_slice %235 {offsets = [0, 64], sizes = [8, 32], strides = [1, 1]} : vector<8x96xf32> to vector<8x32xf32>
    %256 = vector.extract_strided_slice %238 {offsets = [0, 64], sizes = [8, 32], strides = [1, 1]} : vector<8x96xf32> to vector<8x32xf32>
    %257 = vector.extract_strided_slice %3 {offsets = [1, 0, 0], sizes = [1, 1, 32], strides = [1, 1, 1]} : vector<2x1x32xf32> to vector<1x1x32xf32>
    %258 = vector.shape_cast %257 : vector<1x1x32xf32> to vector<1x32xf32>
    %259 = vector.broadcast %258 : vector<1x32xf32> to vector<8x32xf32>
    %260 = arith.addf %256, %259 : vector<8x32xf32>
    %261 = arith.mulf %246, %260 : vector<8x32xf32>
    %262 = arith.addf %255, %261 : vector<8x32xf32>
    %263 = math.tanh %262 : vector<8x32xf32>
    %cst_73 = arith.constant 1.000000e+00 : f32
    %264 = vector.broadcast %cst_73 : f32 to vector<8x32xf32>
    %265 = arith.subf %264, %254 : vector<8x32xf32>
    %266 = arith.mulf %265, %263 : vector<8x32xf32>
    %267 = arith.mulf %254, %191 : vector<8x32xf32>
    %268 = arith.addf %266, %267 : vector<8x32xf32>
    %cst_74 = arith.constant dense<0.000000e+00> : vector<8x16xf32>
    %269 = tpu.matmul %268, %4, %cst_74 {dimension_numbers = #tpu.dot_dimension_numbers<[1], [0], [0], [1], [0, 0, 1, 1], [], []>} : vector<8x32xf32>, vector<32x16xf32>, vector<8x16xf32> -> vector<8x16xf32>
    %270 = vector.broadcast %5 : vector<1x16xf32> to vector<8x16xf32>
    %271 = arith.addf %269, %270 : vector<8x16xf32>
    %c24 = arith.constant 24 : index
    %c0_75 = arith.constant 0 : index
    %272 = vector.load %arg14[%c24, %c0_75] : memref<64x16xf32, #tpu.memory_space<vmem>>, vector<8x16xf32>
    tpu.vector_store %arg14[%c24, %c0_75], %271 {strides = array<i32>} : memref<64x16xf32, #tpu.memory_space<vmem>>, vector<8x16xf32>,
    %273 = vector.extract_strided_slice %37 {offsets = [32, 0], sizes = [8, 96], strides = [1, 1]} : vector<64x96xf32> to vector<8x96xf32>
    %274 = vector.extract_strided_slice %0 {offsets = [0, 0, 0], sizes = [1, 32, 96], strides = [1, 1, 1]} : vector<2x32x96xf32> to vector<1x32x96xf32>
    %275 = vector.shape_cast %274 : vector<1x32x96xf32> to vector<32x96xf32>
    %cst_76 = arith.constant dense<0.000000e+00> : vector<8x96xf32>
    %276 = tpu.matmul %229, %275, %cst_76 {dimension_numbers = #tpu.dot_dimension_numbers<[1], [0], [0], [1], [0, 0, 1, 1], [], []>} : vector<8x32xf32>, vector<32x96xf32>, vector<8x96xf32> -> vector<8x96xf32>
    %277 = vector.extract_strided_slice %273 {offsets = [0, 0], sizes = [8, 32], strides = [1, 1]} : vector<8x96xf32> to vector<8x32xf32>
    %278 = vector.extract_strided_slice %276 {offsets = [0, 0], sizes = [8, 32], strides = [1, 1]} : vector<8x96xf32> to vector<8x32xf32>
    %279 = arith.addf %277, %278 : vector<8x32xf32>
    %280 = arith.negf %279 : vector<8x32xf32>
    %281 = math.exp %280 : vector<8x32xf32>
    %cst_77 = arith.constant 1.000000e+00 : f32
    %282 = vector.broadcast %cst_77 : f32 to vector<8x32xf32>
    %283 = arith.addf %282, %281 : vector<8x32xf32>
    %284 = arith.divf %282, %283 : vector<8x32xf32>
    %285 = vector.extract_strided_slice %273 {offsets = [0, 32], sizes = [8, 32], strides = [1, 1]} : vector<8x96xf32> to vector<8x32xf32>
    %286 = vector.extract_strided_slice %276 {offsets = [0, 32], sizes = [8, 32], strides = [1, 1]} : vector<8x96xf32> to vector<8x32xf32>
    %287 = arith.addf %285, %286 : vector<8x32xf32>
    %288 = arith.negf %287 : vector<8x32xf32>
    %289 = math.exp %288 : vector<8x32xf32>
    %cst_78 = arith.constant 1.000000e+00 : f32
    %290 = vector.broadcast %cst_78 : f32 to vector<8x32xf32>
    %291 = arith.addf %290, %289 : vector<8x32xf32>
    %292 = arith.divf %290, %291 : vector<8x32xf32>
    %293 = vector.extract_strided_slice %273 {offsets = [0, 64], sizes = [8, 32], strides = [1, 1]} : vector<8x96xf32> to vector<8x32xf32>
    %294 = vector.extract_strided_slice %276 {offsets = [0, 64], sizes = [8, 32], strides = [1, 1]} : vector<8x96xf32> to vector<8x32xf32>
    %295 = vector.extract_strided_slice %3 {offsets = [0, 0, 0], sizes = [1, 1, 32], strides = [1, 1, 1]} : vector<2x1x32xf32> to vector<1x1x32xf32>
    %296 = vector.shape_cast %295 : vector<1x1x32xf32> to vector<1x32xf32>
    %297 = vector.broadcast %296 : vector<1x32xf32> to vector<8x32xf32>
    %298 = arith.addf %294, %297 : vector<8x32xf32>
    %299 = arith.mulf %284, %298 : vector<8x32xf32>
    %300 = arith.addf %293, %299 : vector<8x32xf32>
    %301 = math.tanh %300 : vector<8x32xf32>
    %cst_79 = arith.constant 1.000000e+00 : f32
    %302 = vector.broadcast %cst_79 : f32 to vector<8x32xf32>
    %303 = arith.subf %302, %292 : vector<8x32xf32>
    %304 = arith.mulf %303, %301 : vector<8x32xf32>
    %305 = arith.mulf %292, %229 : vector<8x32xf32>
    %306 = arith.addf %304, %305 : vector<8x32xf32>
    %307 = vector.shape_cast %1 : vector<1x32x96xf32> to vector<32x96xf32>
    %cst_80 = arith.constant dense<0.000000e+00> : vector<8x96xf32>
    %308 = tpu.matmul %306, %307, %cst_80 {dimension_numbers = #tpu.dot_dimension_numbers<[1], [0], [0], [1], [0, 0, 1, 1], [], []>} : vector<8x32xf32>, vector<32x96xf32>, vector<8x96xf32> -> vector<8x96xf32>
    %309 = vector.extract_strided_slice %2 {offsets = [1, 0, 0], sizes = [1, 1, 96], strides = [1, 1, 1]} : vector<2x1x96xf32> to vector<1x1x96xf32>
    %310 = vector.shape_cast %309 : vector<1x1x96xf32> to vector<1x96xf32>
    %311 = vector.broadcast %310 : vector<1x96xf32> to vector<8x96xf32>
    %312 = arith.addf %308, %311 : vector<8x96xf32>
    %313 = vector.extract_strided_slice %0 {offsets = [1, 0, 0], sizes = [1, 32, 96], strides = [1, 1, 1]} : vector<2x32x96xf32> to vector<1x32x96xf32>
    %314 = vector.shape_cast %313 : vector<1x32x96xf32> to vector<32x96xf32>
    %cst_81 = arith.constant dense<0.000000e+00> : vector<8x96xf32>
    %315 = tpu.matmul %268, %314, %cst_81 {dimension_numbers = #tpu.dot_dimension_numbers<[1], [0], [0], [1], [0, 0, 1, 1], [], []>} : vector<8x32xf32>, vector<32x96xf32>, vector<8x96xf32> -> vector<8x96xf32>
    %316 = vector.extract_strided_slice %312 {offsets = [0, 0], sizes = [8, 32], strides = [1, 1]} : vector<8x96xf32> to vector<8x32xf32>
    %317 = vector.extract_strided_slice %315 {offsets = [0, 0], sizes = [8, 32], strides = [1, 1]} : vector<8x96xf32> to vector<8x32xf32>
    %318 = arith.addf %316, %317 : vector<8x32xf32>
    %319 = arith.negf %318 : vector<8x32xf32>
    %320 = math.exp %319 : vector<8x32xf32>
    %cst_82 = arith.constant 1.000000e+00 : f32
    %321 = vector.broadcast %cst_82 : f32 to vector<8x32xf32>
    %322 = arith.addf %321, %320 : vector<8x32xf32>
    %323 = arith.divf %321, %322 : vector<8x32xf32>
    %324 = vector.extract_strided_slice %312 {offsets = [0, 32], sizes = [8, 32], strides = [1, 1]} : vector<8x96xf32> to vector<8x32xf32>
    %325 = vector.extract_strided_slice %315 {offsets = [0, 32], sizes = [8, 32], strides = [1, 1]} : vector<8x96xf32> to vector<8x32xf32>
    %326 = arith.addf %324, %325 : vector<8x32xf32>
    %327 = arith.negf %326 : vector<8x32xf32>
    %328 = math.exp %327 : vector<8x32xf32>
    %cst_83 = arith.constant 1.000000e+00 : f32
    %329 = vector.broadcast %cst_83 : f32 to vector<8x32xf32>
    %330 = arith.addf %329, %328 : vector<8x32xf32>
    %331 = arith.divf %329, %330 : vector<8x32xf32>
    %332 = vector.extract_strided_slice %312 {offsets = [0, 64], sizes = [8, 32], strides = [1, 1]} : vector<8x96xf32> to vector<8x32xf32>
    %333 = vector.extract_strided_slice %315 {offsets = [0, 64], sizes = [8, 32], strides = [1, 1]} : vector<8x96xf32> to vector<8x32xf32>
    %334 = vector.extract_strided_slice %3 {offsets = [1, 0, 0], sizes = [1, 1, 32], strides = [1, 1, 1]} : vector<2x1x32xf32> to vector<1x1x32xf32>
    %335 = vector.shape_cast %334 : vector<1x1x32xf32> to vector<1x32xf32>
    %336 = vector.broadcast %335 : vector<1x32xf32> to vector<8x32xf32>
    %337 = arith.addf %333, %336 : vector<8x32xf32>
    %338 = arith.mulf %323, %337 : vector<8x32xf32>
    %339 = arith.addf %332, %338 : vector<8x32xf32>
    %340 = math.tanh %339 : vector<8x32xf32>
    %cst_84 = arith.constant 1.000000e+00 : f32
    %341 = vector.broadcast %cst_84 : f32 to vector<8x32xf32>
    %342 = arith.subf %341, %331 : vector<8x32xf32>
    %343 = arith.mulf %342, %340 : vector<8x32xf32>
    %344 = arith.mulf %331, %268 : vector<8x32xf32>
    %345 = arith.addf %343, %344 : vector<8x32xf32>
    %cst_85 = arith.constant dense<0.000000e+00> : vector<8x16xf32>
    %346 = tpu.matmul %345, %4, %cst_85 {dimension_numbers = #tpu.dot_dimension_numbers<[1], [0], [0], [1], [0, 0, 1, 1], [], []>} : vector<8x32xf32>, vector<32x16xf32>, vector<8x16xf32> -> vector<8x16xf32>
    %347 = vector.broadcast %5 : vector<1x16xf32> to vector<8x16xf32>
    %348 = arith.addf %346, %347 : vector<8x16xf32>
    %c32 = arith.constant 32 : index
    %c0_86 = arith.constant 0 : index
    %349 = vector.load %arg14[%c32, %c0_86] : memref<64x16xf32, #tpu.memory_space<vmem>>, vector<8x16xf32>
    tpu.vector_store %arg14[%c32, %c0_86], %348 {strides = array<i32>} : memref<64x16xf32, #tpu.memory_space<vmem>>, vector<8x16xf32>,
    %350 = vector.extract_strided_slice %37 {offsets = [40, 0], sizes = [8, 96], strides = [1, 1]} : vector<64x96xf32> to vector<8x96xf32>
    %351 = vector.extract_strided_slice %0 {offsets = [0, 0, 0], sizes = [1, 32, 96], strides = [1, 1, 1]} : vector<2x32x96xf32> to vector<1x32x96xf32>
    %352 = vector.shape_cast %351 : vector<1x32x96xf32> to vector<32x96xf32>
    %cst_87 = arith.constant dense<0.000000e+00> : vector<8x96xf32>
    %353 = tpu.matmul %306, %352, %cst_87 {dimension_numbers = #tpu.dot_dimension_numbers<[1], [0], [0], [1], [0, 0, 1, 1], [], []>} : vector<8x32xf32>, vector<32x96xf32>, vector<8x96xf32> -> vector<8x96xf32>
    %354 = vector.extract_strided_slice %350 {offsets = [0, 0], sizes = [8, 32], strides = [1, 1]} : vector<8x96xf32> to vector<8x32xf32>
    %355 = vector.extract_strided_slice %353 {offsets = [0, 0], sizes = [8, 32], strides = [1, 1]} : vector<8x96xf32> to vector<8x32xf32>
    %356 = arith.addf %354, %355 : vector<8x32xf32>
    %357 = arith.negf %356 : vector<8x32xf32>
    %358 = math.exp %357 : vector<8x32xf32>
    %cst_88 = arith.constant 1.000000e+00 : f32
    %359 = vector.broadcast %cst_88 : f32 to vector<8x32xf32>
    %360 = arith.addf %359, %358 : vector<8x32xf32>
    %361 = arith.divf %359, %360 : vector<8x32xf32>
    %362 = vector.extract_strided_slice %350 {offsets = [0, 32], sizes = [8, 32], strides = [1, 1]} : vector<8x96xf32> to vector<8x32xf32>
    %363 = vector.extract_strided_slice %353 {offsets = [0, 32], sizes = [8, 32], strides = [1, 1]} : vector<8x96xf32> to vector<8x32xf32>
    %364 = arith.addf %362, %363 : vector<8x32xf32>
    %365 = arith.negf %364 : vector<8x32xf32>
    %366 = math.exp %365 : vector<8x32xf32>
    %cst_89 = arith.constant 1.000000e+00 : f32
    %367 = vector.broadcast %cst_89 : f32 to vector<8x32xf32>
    %368 = arith.addf %367, %366 : vector<8x32xf32>
    %369 = arith.divf %367, %368 : vector<8x32xf32>
    %370 = vector.extract_strided_slice %350 {offsets = [0, 64], sizes = [8, 32], strides = [1, 1]} : vector<8x96xf32> to vector<8x32xf32>
    %371 = vector.extract_strided_slice %353 {offsets = [0, 64], sizes = [8, 32], strides = [1, 1]} : vector<8x96xf32> to vector<8x32xf32>
    %372 = vector.extract_strided_slice %3 {offsets = [0, 0, 0], sizes = [1, 1, 32], strides = [1, 1, 1]} : vector<2x1x32xf32> to vector<1x1x32xf32>
    %373 = vector.shape_cast %372 : vector<1x1x32xf32> to vector<1x32xf32>
    %374 = vector.broadcast %373 : vector<1x32xf32> to vector<8x32xf32>
    %375 = arith.addf %371, %374 : vector<8x32xf32>
    %376 = arith.mulf %361, %375 : vector<8x32xf32>
    %377 = arith.addf %370, %376 : vector<8x32xf32>
    %378 = math.tanh %377 : vector<8x32xf32>
    %cst_90 = arith.constant 1.000000e+00 : f32
    %379 = vector.broadcast %cst_90 : f32 to vector<8x32xf32>
    %380 = arith.subf %379, %369 : vector<8x32xf32>
    %381 = arith.mulf %380, %378 : vector<8x32xf32>
    %382 = arith.mulf %369, %306 : vector<8x32xf32>
    %383 = arith.addf %381, %382 : vector<8x32xf32>
    %384 = vector.shape_cast %1 : vector<1x32x96xf32> to vector<32x96xf32>
    %cst_91 = arith.constant dense<0.000000e+00> : vector<8x96xf32>
    %385 = tpu.matmul %383, %384, %cst_91 {dimension_numbers = #tpu.dot_dimension_numbers<[1], [0], [0], [1], [0, 0, 1, 1], [], []>} : vector<8x32xf32>, vector<32x96xf32>, vector<8x96xf32> -> vector<8x96xf32>
    %386 = vector.extract_strided_slice %2 {offsets = [1, 0, 0], sizes = [1, 1, 96], strides = [1, 1, 1]} : vector<2x1x96xf32> to vector<1x1x96xf32>
    %387 = vector.shape_cast %386 : vector<1x1x96xf32> to vector<1x96xf32>
    %388 = vector.broadcast %387 : vector<1x96xf32> to vector<8x96xf32>
    %389 = arith.addf %385, %388 : vector<8x96xf32>
    %390 = vector.extract_strided_slice %0 {offsets = [1, 0, 0], sizes = [1, 32, 96], strides = [1, 1, 1]} : vector<2x32x96xf32> to vector<1x32x96xf32>
    %391 = vector.shape_cast %390 : vector<1x32x96xf32> to vector<32x96xf32>
    %cst_92 = arith.constant dense<0.000000e+00> : vector<8x96xf32>
    %392 = tpu.matmul %345, %391, %cst_92 {dimension_numbers = #tpu.dot_dimension_numbers<[1], [0], [0], [1], [0, 0, 1, 1], [], []>} : vector<8x32xf32>, vector<32x96xf32>, vector<8x96xf32> -> vector<8x96xf32>
    %393 = vector.extract_strided_slice %389 {offsets = [0, 0], sizes = [8, 32], strides = [1, 1]} : vector<8x96xf32> to vector<8x32xf32>
    %394 = vector.extract_strided_slice %392 {offsets = [0, 0], sizes = [8, 32], strides = [1, 1]} : vector<8x96xf32> to vector<8x32xf32>
    %395 = arith.addf %393, %394 : vector<8x32xf32>
    %396 = arith.negf %395 : vector<8x32xf32>
    %397 = math.exp %396 : vector<8x32xf32>
    %cst_93 = arith.constant 1.000000e+00 : f32
    %398 = vector.broadcast %cst_93 : f32 to vector<8x32xf32>
    %399 = arith.addf %398, %397 : vector<8x32xf32>
    %400 = arith.divf %398, %399 : vector<8x32xf32>
    %401 = vector.extract_strided_slice %389 {offsets = [0, 32], sizes = [8, 32], strides = [1, 1]} : vector<8x96xf32> to vector<8x32xf32>
    %402 = vector.extract_strided_slice %392 {offsets = [0, 32], sizes = [8, 32], strides = [1, 1]} : vector<8x96xf32> to vector<8x32xf32>
    %403 = arith.addf %401, %402 : vector<8x32xf32>
    %404 = arith.negf %403 : vector<8x32xf32>
    %405 = math.exp %404 : vector<8x32xf32>
    %cst_94 = arith.constant 1.000000e+00 : f32
    %406 = vector.broadcast %cst_94 : f32 to vector<8x32xf32>
    %407 = arith.addf %406, %405 : vector<8x32xf32>
    %408 = arith.divf %406, %407 : vector<8x32xf32>
    %409 = vector.extract_strided_slice %389 {offsets = [0, 64], sizes = [8, 32], strides = [1, 1]} : vector<8x96xf32> to vector<8x32xf32>
    %410 = vector.extract_strided_slice %392 {offsets = [0, 64], sizes = [8, 32], strides = [1, 1]} : vector<8x96xf32> to vector<8x32xf32>
    %411 = vector.extract_strided_slice %3 {offsets = [1, 0, 0], sizes = [1, 1, 32], strides = [1, 1, 1]} : vector<2x1x32xf32> to vector<1x1x32xf32>
    %412 = vector.shape_cast %411 : vector<1x1x32xf32> to vector<1x32xf32>
    %413 = vector.broadcast %412 : vector<1x32xf32> to vector<8x32xf32>
    %414 = arith.addf %410, %413 : vector<8x32xf32>
    %415 = arith.mulf %400, %414 : vector<8x32xf32>
    %416 = arith.addf %409, %415 : vector<8x32xf32>
    %417 = math.tanh %416 : vector<8x32xf32>
    %cst_95 = arith.constant 1.000000e+00 : f32
    %418 = vector.broadcast %cst_95 : f32 to vector<8x32xf32>
    %419 = arith.subf %418, %408 : vector<8x32xf32>
    %420 = arith.mulf %419, %417 : vector<8x32xf32>
    %421 = arith.mulf %408, %345 : vector<8x32xf32>
    %422 = arith.addf %420, %421 : vector<8x32xf32>
    %cst_96 = arith.constant dense<0.000000e+00> : vector<8x16xf32>
    %423 = tpu.matmul %422, %4, %cst_96 {dimension_numbers = #tpu.dot_dimension_numbers<[1], [0], [0], [1], [0, 0, 1, 1], [], []>} : vector<8x32xf32>, vector<32x16xf32>, vector<8x16xf32> -> vector<8x16xf32>
    %424 = vector.broadcast %5 : vector<1x16xf32> to vector<8x16xf32>
    %425 = arith.addf %423, %424 : vector<8x16xf32>
    %c40 = arith.constant 40 : index
    %c0_97 = arith.constant 0 : index
    %426 = vector.load %arg14[%c40, %c0_97] : memref<64x16xf32, #tpu.memory_space<vmem>>, vector<8x16xf32>
    tpu.vector_store %arg14[%c40, %c0_97], %425 {strides = array<i32>} : memref<64x16xf32, #tpu.memory_space<vmem>>, vector<8x16xf32>,
    %427 = vector.extract_strided_slice %37 {offsets = [48, 0], sizes = [8, 96], strides = [1, 1]} : vector<64x96xf32> to vector<8x96xf32>
    %428 = vector.extract_strided_slice %0 {offsets = [0, 0, 0], sizes = [1, 32, 96], strides = [1, 1, 1]} : vector<2x32x96xf32> to vector<1x32x96xf32>
    %429 = vector.shape_cast %428 : vector<1x32x96xf32> to vector<32x96xf32>
    %cst_98 = arith.constant dense<0.000000e+00> : vector<8x96xf32>
    %430 = tpu.matmul %383, %429, %cst_98 {dimension_numbers = #tpu.dot_dimension_numbers<[1], [0], [0], [1], [0, 0, 1, 1], [], []>} : vector<8x32xf32>, vector<32x96xf32>, vector<8x96xf32> -> vector<8x96xf32>
    %431 = vector.extract_strided_slice %427 {offsets = [0, 0], sizes = [8, 32], strides = [1, 1]} : vector<8x96xf32> to vector<8x32xf32>
    %432 = vector.extract_strided_slice %430 {offsets = [0, 0], sizes = [8, 32], strides = [1, 1]} : vector<8x96xf32> to vector<8x32xf32>
    %433 = arith.addf %431, %432 : vector<8x32xf32>
    %434 = arith.negf %433 : vector<8x32xf32>
    %435 = math.exp %434 : vector<8x32xf32>
    %cst_99 = arith.constant 1.000000e+00 : f32
    %436 = vector.broadcast %cst_99 : f32 to vector<8x32xf32>
    %437 = arith.addf %436, %435 : vector<8x32xf32>
    %438 = arith.divf %436, %437 : vector<8x32xf32>
    %439 = vector.extract_strided_slice %427 {offsets = [0, 32], sizes = [8, 32], strides = [1, 1]} : vector<8x96xf32> to vector<8x32xf32>
    %440 = vector.extract_strided_slice %430 {offsets = [0, 32], sizes = [8, 32], strides = [1, 1]} : vector<8x96xf32> to vector<8x32xf32>
    %441 = arith.addf %439, %440 : vector<8x32xf32>
    %442 = arith.negf %441 : vector<8x32xf32>
    %443 = math.exp %442 : vector<8x32xf32>
    %cst_100 = arith.constant 1.000000e+00 : f32
    %444 = vector.broadcast %cst_100 : f32 to vector<8x32xf32>
    %445 = arith.addf %444, %443 : vector<8x32xf32>
    %446 = arith.divf %444, %445 : vector<8x32xf32>
    %447 = vector.extract_strided_slice %427 {offsets = [0, 64], sizes = [8, 32], strides = [1, 1]} : vector<8x96xf32> to vector<8x32xf32>
    %448 = vector.extract_strided_slice %430 {offsets = [0, 64], sizes = [8, 32], strides = [1, 1]} : vector<8x96xf32> to vector<8x32xf32>
    %449 = vector.extract_strided_slice %3 {offsets = [0, 0, 0], sizes = [1, 1, 32], strides = [1, 1, 1]} : vector<2x1x32xf32> to vector<1x1x32xf32>
    %450 = vector.shape_cast %449 : vector<1x1x32xf32> to vector<1x32xf32>
    %451 = vector.broadcast %450 : vector<1x32xf32> to vector<8x32xf32>
    %452 = arith.addf %448, %451 : vector<8x32xf32>
    %453 = arith.mulf %438, %452 : vector<8x32xf32>
    %454 = arith.addf %447, %453 : vector<8x32xf32>
    %455 = math.tanh %454 : vector<8x32xf32>
    %cst_101 = arith.constant 1.000000e+00 : f32
    %456 = vector.broadcast %cst_101 : f32 to vector<8x32xf32>
    %457 = arith.subf %456, %446 : vector<8x32xf32>
    %458 = arith.mulf %457, %455 : vector<8x32xf32>
    %459 = arith.mulf %446, %383 : vector<8x32xf32>
    %460 = arith.addf %458, %459 : vector<8x32xf32>
    %461 = vector.shape_cast %1 : vector<1x32x96xf32> to vector<32x96xf32>
    %cst_102 = arith.constant dense<0.000000e+00> : vector<8x96xf32>
    %462 = tpu.matmul %460, %461, %cst_102 {dimension_numbers = #tpu.dot_dimension_numbers<[1], [0], [0], [1], [0, 0, 1, 1], [], []>} : vector<8x32xf32>, vector<32x96xf32>, vector<8x96xf32> -> vector<8x96xf32>
    %463 = vector.extract_strided_slice %2 {offsets = [1, 0, 0], sizes = [1, 1, 96], strides = [1, 1, 1]} : vector<2x1x96xf32> to vector<1x1x96xf32>
    %464 = vector.shape_cast %463 : vector<1x1x96xf32> to vector<1x96xf32>
    %465 = vector.broadcast %464 : vector<1x96xf32> to vector<8x96xf32>
    %466 = arith.addf %462, %465 : vector<8x96xf32>
    %467 = vector.extract_strided_slice %0 {offsets = [1, 0, 0], sizes = [1, 32, 96], strides = [1, 1, 1]} : vector<2x32x96xf32> to vector<1x32x96xf32>
    %468 = vector.shape_cast %467 : vector<1x32x96xf32> to vector<32x96xf32>
    %cst_103 = arith.constant dense<0.000000e+00> : vector<8x96xf32>
    %469 = tpu.matmul %422, %468, %cst_103 {dimension_numbers = #tpu.dot_dimension_numbers<[1], [0], [0], [1], [0, 0, 1, 1], [], []>} : vector<8x32xf32>, vector<32x96xf32>, vector<8x96xf32> -> vector<8x96xf32>
    %470 = vector.extract_strided_slice %466 {offsets = [0, 0], sizes = [8, 32], strides = [1, 1]} : vector<8x96xf32> to vector<8x32xf32>
    %471 = vector.extract_strided_slice %469 {offsets = [0, 0], sizes = [8, 32], strides = [1, 1]} : vector<8x96xf32> to vector<8x32xf32>
    %472 = arith.addf %470, %471 : vector<8x32xf32>
    %473 = arith.negf %472 : vector<8x32xf32>
    %474 = math.exp %473 : vector<8x32xf32>
    %cst_104 = arith.constant 1.000000e+00 : f32
    %475 = vector.broadcast %cst_104 : f32 to vector<8x32xf32>
    %476 = arith.addf %475, %474 : vector<8x32xf32>
    %477 = arith.divf %475, %476 : vector<8x32xf32>
    %478 = vector.extract_strided_slice %466 {offsets = [0, 32], sizes = [8, 32], strides = [1, 1]} : vector<8x96xf32> to vector<8x32xf32>
    %479 = vector.extract_strided_slice %469 {offsets = [0, 32], sizes = [8, 32], strides = [1, 1]} : vector<8x96xf32> to vector<8x32xf32>
    %480 = arith.addf %478, %479 : vector<8x32xf32>
    %481 = arith.negf %480 : vector<8x32xf32>
    %482 = math.exp %481 : vector<8x32xf32>
    %cst_105 = arith.constant 1.000000e+00 : f32
    %483 = vector.broadcast %cst_105 : f32 to vector<8x32xf32>
    %484 = arith.addf %483, %482 : vector<8x32xf32>
    %485 = arith.divf %483, %484 : vector<8x32xf32>
    %486 = vector.extract_strided_slice %466 {offsets = [0, 64], sizes = [8, 32], strides = [1, 1]} : vector<8x96xf32> to vector<8x32xf32>
    %487 = vector.extract_strided_slice %469 {offsets = [0, 64], sizes = [8, 32], strides = [1, 1]} : vector<8x96xf32> to vector<8x32xf32>
    %488 = vector.extract_strided_slice %3 {offsets = [1, 0, 0], sizes = [1, 1, 32], strides = [1, 1, 1]} : vector<2x1x32xf32> to vector<1x1x32xf32>
    %489 = vector.shape_cast %488 : vector<1x1x32xf32> to vector<1x32xf32>
    %490 = vector.broadcast %489 : vector<1x32xf32> to vector<8x32xf32>
    %491 = arith.addf %487, %490 : vector<8x32xf32>
    %492 = arith.mulf %477, %491 : vector<8x32xf32>
    %493 = arith.addf %486, %492 : vector<8x32xf32>
    %494 = math.tanh %493 : vector<8x32xf32>
    %cst_106 = arith.constant 1.000000e+00 : f32
    %495 = vector.broadcast %cst_106 : f32 to vector<8x32xf32>
    %496 = arith.subf %495, %485 : vector<8x32xf32>
    %497 = arith.mulf %496, %494 : vector<8x32xf32>
    %498 = arith.mulf %485, %422 : vector<8x32xf32>
    %499 = arith.addf %497, %498 : vector<8x32xf32>
    %cst_107 = arith.constant dense<0.000000e+00> : vector<8x16xf32>
    %500 = tpu.matmul %499, %4, %cst_107 {dimension_numbers = #tpu.dot_dimension_numbers<[1], [0], [0], [1], [0, 0, 1, 1], [], []>} : vector<8x32xf32>, vector<32x16xf32>, vector<8x16xf32> -> vector<8x16xf32>
    %501 = vector.broadcast %5 : vector<1x16xf32> to vector<8x16xf32>
    %502 = arith.addf %500, %501 : vector<8x16xf32>
    %c48 = arith.constant 48 : index
    %c0_108 = arith.constant 0 : index
    %503 = vector.load %arg14[%c48, %c0_108] : memref<64x16xf32, #tpu.memory_space<vmem>>, vector<8x16xf32>
    tpu.vector_store %arg14[%c48, %c0_108], %502 {strides = array<i32>} : memref<64x16xf32, #tpu.memory_space<vmem>>, vector<8x16xf32>,
    %504 = vector.extract_strided_slice %37 {offsets = [56, 0], sizes = [8, 96], strides = [1, 1]} : vector<64x96xf32> to vector<8x96xf32>
    %505 = vector.extract_strided_slice %0 {offsets = [0, 0, 0], sizes = [1, 32, 96], strides = [1, 1, 1]} : vector<2x32x96xf32> to vector<1x32x96xf32>
    %506 = vector.shape_cast %505 : vector<1x32x96xf32> to vector<32x96xf32>
    %cst_109 = arith.constant dense<0.000000e+00> : vector<8x96xf32>
    %507 = tpu.matmul %460, %506, %cst_109 {dimension_numbers = #tpu.dot_dimension_numbers<[1], [0], [0], [1], [0, 0, 1, 1], [], []>} : vector<8x32xf32>, vector<32x96xf32>, vector<8x96xf32> -> vector<8x96xf32>
    %508 = vector.extract_strided_slice %504 {offsets = [0, 0], sizes = [8, 32], strides = [1, 1]} : vector<8x96xf32> to vector<8x32xf32>
    %509 = vector.extract_strided_slice %507 {offsets = [0, 0], sizes = [8, 32], strides = [1, 1]} : vector<8x96xf32> to vector<8x32xf32>
    %510 = arith.addf %508, %509 : vector<8x32xf32>
    %511 = arith.negf %510 : vector<8x32xf32>
    %512 = math.exp %511 : vector<8x32xf32>
    %cst_110 = arith.constant 1.000000e+00 : f32
    %513 = vector.broadcast %cst_110 : f32 to vector<8x32xf32>
    %514 = arith.addf %513, %512 : vector<8x32xf32>
    %515 = arith.divf %513, %514 : vector<8x32xf32>
    %516 = vector.extract_strided_slice %504 {offsets = [0, 32], sizes = [8, 32], strides = [1, 1]} : vector<8x96xf32> to vector<8x32xf32>
    %517 = vector.extract_strided_slice %507 {offsets = [0, 32], sizes = [8, 32], strides = [1, 1]} : vector<8x96xf32> to vector<8x32xf32>
    %518 = arith.addf %516, %517 : vector<8x32xf32>
    %519 = arith.negf %518 : vector<8x32xf32>
    %520 = math.exp %519 : vector<8x32xf32>
    %cst_111 = arith.constant 1.000000e+00 : f32
    %521 = vector.broadcast %cst_111 : f32 to vector<8x32xf32>
    %522 = arith.addf %521, %520 : vector<8x32xf32>
    %523 = arith.divf %521, %522 : vector<8x32xf32>
    %524 = vector.extract_strided_slice %504 {offsets = [0, 64], sizes = [8, 32], strides = [1, 1]} : vector<8x96xf32> to vector<8x32xf32>
    %525 = vector.extract_strided_slice %507 {offsets = [0, 64], sizes = [8, 32], strides = [1, 1]} : vector<8x96xf32> to vector<8x32xf32>
    %526 = vector.extract_strided_slice %3 {offsets = [0, 0, 0], sizes = [1, 1, 32], strides = [1, 1, 1]} : vector<2x1x32xf32> to vector<1x1x32xf32>
    %527 = vector.shape_cast %526 : vector<1x1x32xf32> to vector<1x32xf32>
    %528 = vector.broadcast %527 : vector<1x32xf32> to vector<8x32xf32>
    %529 = arith.addf %525, %528 : vector<8x32xf32>
    %530 = arith.mulf %515, %529 : vector<8x32xf32>
    %531 = arith.addf %524, %530 : vector<8x32xf32>
    %532 = math.tanh %531 : vector<8x32xf32>
    %cst_112 = arith.constant 1.000000e+00 : f32
    %533 = vector.broadcast %cst_112 : f32 to vector<8x32xf32>
    %534 = arith.subf %533, %523 : vector<8x32xf32>
    %535 = arith.mulf %534, %532 : vector<8x32xf32>
    %536 = arith.mulf %523, %460 : vector<8x32xf32>
    %537 = arith.addf %535, %536 : vector<8x32xf32>
    %538 = vector.shape_cast %1 : vector<1x32x96xf32> to vector<32x96xf32>
    %cst_113 = arith.constant dense<0.000000e+00> : vector<8x96xf32>
    %539 = tpu.matmul %537, %538, %cst_113 {dimension_numbers = #tpu.dot_dimension_numbers<[1], [0], [0], [1], [0, 0, 1, 1], [], []>} : vector<8x32xf32>, vector<32x96xf32>, vector<8x96xf32> -> vector<8x96xf32>
    %540 = vector.extract_strided_slice %2 {offsets = [1, 0, 0], sizes = [1, 1, 96], strides = [1, 1, 1]} : vector<2x1x96xf32> to vector<1x1x96xf32>
    %541 = vector.shape_cast %540 : vector<1x1x96xf32> to vector<1x96xf32>
    %542 = vector.broadcast %541 : vector<1x96xf32> to vector<8x96xf32>
    %543 = arith.addf %539, %542 : vector<8x96xf32>
    %544 = vector.extract_strided_slice %0 {offsets = [1, 0, 0], sizes = [1, 32, 96], strides = [1, 1, 1]} : vector<2x32x96xf32> to vector<1x32x96xf32>
    %545 = vector.shape_cast %544 : vector<1x32x96xf32> to vector<32x96xf32>
    %cst_114 = arith.constant dense<0.000000e+00> : vector<8x96xf32>
    %546 = tpu.matmul %499, %545, %cst_114 {dimension_numbers = #tpu.dot_dimension_numbers<[1], [0], [0], [1], [0, 0, 1, 1], [], []>} : vector<8x32xf32>, vector<32x96xf32>, vector<8x96xf32> -> vector<8x96xf32>
    %547 = vector.extract_strided_slice %543 {offsets = [0, 0], sizes = [8, 32], strides = [1, 1]} : vector<8x96xf32> to vector<8x32xf32>
    %548 = vector.extract_strided_slice %546 {offsets = [0, 0], sizes = [8, 32], strides = [1, 1]} : vector<8x96xf32> to vector<8x32xf32>
    %549 = arith.addf %547, %548 : vector<8x32xf32>
    %550 = arith.negf %549 : vector<8x32xf32>
    %551 = math.exp %550 : vector<8x32xf32>
    %cst_115 = arith.constant 1.000000e+00 : f32
    %552 = vector.broadcast %cst_115 : f32 to vector<8x32xf32>
    %553 = arith.addf %552, %551 : vector<8x32xf32>
    %554 = arith.divf %552, %553 : vector<8x32xf32>
    %555 = vector.extract_strided_slice %543 {offsets = [0, 32], sizes = [8, 32], strides = [1, 1]} : vector<8x96xf32> to vector<8x32xf32>
    %556 = vector.extract_strided_slice %546 {offsets = [0, 32], sizes = [8, 32], strides = [1, 1]} : vector<8x96xf32> to vector<8x32xf32>
    %557 = arith.addf %555, %556 : vector<8x32xf32>
    %558 = arith.negf %557 : vector<8x32xf32>
    %559 = math.exp %558 : vector<8x32xf32>
    %cst_116 = arith.constant 1.000000e+00 : f32
    %560 = vector.broadcast %cst_116 : f32 to vector<8x32xf32>
    %561 = arith.addf %560, %559 : vector<8x32xf32>
    %562 = arith.divf %560, %561 : vector<8x32xf32>
    %563 = vector.extract_strided_slice %543 {offsets = [0, 64], sizes = [8, 32], strides = [1, 1]} : vector<8x96xf32> to vector<8x32xf32>
    %564 = vector.extract_strided_slice %546 {offsets = [0, 64], sizes = [8, 32], strides = [1, 1]} : vector<8x96xf32> to vector<8x32xf32>
    %565 = vector.extract_strided_slice %3 {offsets = [1, 0, 0], sizes = [1, 1, 32], strides = [1, 1, 1]} : vector<2x1x32xf32> to vector<1x1x32xf32>
    %566 = vector.shape_cast %565 : vector<1x1x32xf32> to vector<1x32xf32>
    %567 = vector.broadcast %566 : vector<1x32xf32> to vector<8x32xf32>
    %568 = arith.addf %564, %567 : vector<8x32xf32>
    %569 = arith.mulf %554, %568 : vector<8x32xf32>
    %570 = arith.addf %563, %569 : vector<8x32xf32>
    %571 = math.tanh %570 : vector<8x32xf32>
    %cst_117 = arith.constant 1.000000e+00 : f32
    %572 = vector.broadcast %cst_117 : f32 to vector<8x32xf32>
    %573 = arith.subf %572, %562 : vector<8x32xf32>
    %574 = arith.mulf %573, %571 : vector<8x32xf32>
    %575 = arith.mulf %562, %499 : vector<8x32xf32>
    %576 = arith.addf %574, %575 : vector<8x32xf32>
    %cst_118 = arith.constant dense<0.000000e+00> : vector<8x16xf32>
    %577 = tpu.matmul %576, %4, %cst_118 {dimension_numbers = #tpu.dot_dimension_numbers<[1], [0], [0], [1], [0, 0, 1, 1], [], []>} : vector<8x32xf32>, vector<32x16xf32>, vector<8x16xf32> -> vector<8x16xf32>
    %578 = vector.broadcast %5 : vector<1x16xf32> to vector<8x16xf32>
    %579 = arith.addf %577, %578 : vector<8x16xf32>
    %c56 = arith.constant 56 : index
    %c0_119 = arith.constant 0 : index
    %580 = vector.load %arg14[%c56, %c0_119] : memref<64x16xf32, #tpu.memory_space<vmem>>, vector<8x16xf32>
    tpu.vector_store %arg14[%c56, %c0_119], %579 {strides = array<i32>} : memref<64x16xf32, #tpu.memory_space<vmem>>, vector<8x16xf32>,
    return
  }
}

</mosaic_0001>

<llo_original>
// kernel: tpu_custom_call.1
$region0: #{tpu_custom_call.1}
  #allocation0 [shape = 'u32[]', space=smem, size = 0x4, offset = 0x4, fixed_abs, tag = 'smem constant byte address 0x4 - core index']
  #allocation1 [shape = 'u32[144,128]{1,0:T(1,128)}', space=vmem, size = 0x12000, scoped, tag = 'internal scratch']
  %s0 = inlined_call_operand.vmem [shape: f32[64,8], index: 0, kind: input, shape index: {}]
  %s1 = inlined_call_operand.hbm [shape: f32[8,8], index: 1, kind: input, shape index: {}]
  %s2 = inlined_call_operand.vmem [shape: f32[1,8], index: 2, kind: input, shape index: {}]
  %s3 = inlined_call_operand.hbm [shape: f32[8,16], index: 3, kind: input, shape index: {}]
  %s4 = inlined_call_operand.vmem [shape: f32[1,16], index: 4, kind: input, shape index: {}]
  %s5 = inlined_call_operand.vmem [shape: f32[16,16], index: 5, kind: input, shape index: {}]
  %s6 = inlined_call_operand.hbm [shape: f32[1,16], index: 6, kind: input, shape index: {}]
  %s7 = inlined_call_operand.vmem [shape: f32[16,96], index: 7, kind: input, shape index: {}]
  %s8 = inlined_call_operand.vmem [shape: f32[1,32,96], index: 8, kind: input, shape index: {}]
  %s9 = inlined_call_operand.vmem [shape: f32[2,32,96], index: 9, kind: input, shape index: {}]
  %s10 = inlined_call_operand.vmem [shape: f32[2,1,96], index: 10, kind: input, shape index: {}]
  %s11 = inlined_call_operand.vmem [shape: f32[2,1,32], index: 11, kind: input, shape index: {}]
  %s12 = inlined_call_operand.vmem [shape: f32[32,16], index: 12, kind: input, shape index: {}]
  %s13 = inlined_call_operand.vmem [shape: f32[1,16], index: 13, kind: input, shape index: {}]
  %s14 = inlined_call_operand.vmem [shape: f32[64,16], index: 14, kind: output, shape index: {}]
  %s15 = sld [smem:[#allocation0]]
  $region78: #{tpu_custom_call.1} parent=0
    _
  %s17 = ssub.s32 1, %s15
  %s18 = scalar_select 0, %s17, %s15
  $region1: #{tpu_custom_call.1} parent=0
    #allocation2 [shape = 'u8[4096]{0}', space=vmem, size = 0x1000, scoped, tag = 'input window, operand 1, single buffered']
    #allocation3 [shape = 's32[1]{0}', space=sflag, size = 0x4, scoped, tag = 'scoped memory for tpu_custom_call.1']
    #allocation4 [shape = 'u8[4096]{0}', space=vmem, size = 0x1000, scoped, tag = 'input window, operand 3, single buffered']
    #allocation5 [shape = 's32[1]{0}', space=sflag, size = 0x4, scoped, tag = 'scoped memory for tpu_custom_call.1']
    #allocation6 [shape = 'u8[512]{0}', space=vmem, size = 0x400, scoped, tag = 'input window, operand 6, single buffered']
    %19 = vsyncpa [#allocation3], 0
    %20 = vsyncpa [#allocation5], 0
    // Predicated region
    $region2: #{tpu_custom_call.1} parent=1 // pred_check
      _
    $region3: #{tpu_custom_call.1} parent=1 // pred_check_branch
      %22 = sbr.rel (0) target = $region5
    $region4: #{tpu_custom_call.1} parent=1 // pred_region
      _
    $region5: #{tpu_custom_call.1} parent=1 // pred_fallthru
      _
    // Predicated region
    $region6: #{tpu_custom_call.1} parent=1 // pred_check
      _
    $region7: #{tpu_custom_call.1} parent=1 // pred_check_branch
      %24 = sbr.rel (0) target = $region9
    $region8: #{tpu_custom_call.1} parent=1 // pred_region
      %s26 = ssub.s32 128, 128
      %27 = vsyncadd [#allocation3], %s26
      %s29 = sshll.u32 [#allocation2], 4
      %s30 = int_to_ptr.vmem [resolvable:$true] %s29
      %32 = dma.hbm_to_vmem [thread:$0]  %s1, 128, %s30, [#allocation3]
    $region9: #{tpu_custom_call.1} parent=1 // pred_fallthru
      _
    // Predicated region
    $region10: #{tpu_custom_call.1} parent=1 // pred_check
      _
    $region11: #{tpu_custom_call.1} parent=1 // pred_check_branch
      %34 = sbr.rel (0) target = $region13
    $region12: #{tpu_custom_call.1} parent=1 // pred_region
      _
    $region13: #{tpu_custom_call.1} parent=1 // pred_fallthru
      _
    // Predicated region
    $region14: #{tpu_custom_call.1} parent=1 // pred_check
      _
    $region15: #{tpu_custom_call.1} parent=1 // pred_check_branch
      %36 = sbr.rel (0) target = $region17
    $region16: #{tpu_custom_call.1} parent=1 // pred_region
      %s38 = ssub.s32 128, 128
      %39 = vsyncadd [#allocation5], %s38
      %s41 = sshll.u32 [#allocation4], 4
      %s42 = int_to_ptr.vmem [resolvable:$true] %s41
      %44 = dma.hbm_to_vmem [thread:$0]  %s3, 128, %s42, [#allocation5]
    $region17: #{tpu_custom_call.1} parent=1 // pred_fallthru
      _
    // Predicated region
    $region18: #{tpu_custom_call.1} parent=1 // pred_check
      _
    $region19: #{tpu_custom_call.1} parent=1 // pred_check_branch
      %46 = sbr.rel (0) target = $region21
    $region20: #{tpu_custom_call.1} parent=1 // pred_region
      _
    $region21: #{tpu_custom_call.1} parent=1 // pred_fallthru
      _
    // Predicated region
    $region22: #{tpu_custom_call.1} parent=1 // pred_check
      _
    $region23: #{tpu_custom_call.1} parent=1 // pred_check_branch
      %48 = sbr.rel (0) target = $region25
    $region24: #{tpu_custom_call.1} parent=1 // pred_region
      _
    $region25: #{tpu_custom_call.1} parent=1 // pred_fallthru
      _
    // Predicated region
    $region26: #{tpu_custom_call.1} parent=1 // pred_check
      _
    $region27: #{tpu_custom_call.1} parent=1 // pred_check_branch
      %50 = sbr.rel (0) target = $region29
    $region28: #{tpu_custom_call.1} parent=1 // pred_region
      %s52 = ssub.s32 16, 16
      %53 = vsyncadd [#allocation5], %s52
      %s55 = sshll.u32 [#allocation6], 4
      %s56 = int_to_ptr.vmem [resolvable:$true] %s55
      %58 = dma.hbm_to_vmem [thread:$0]  %s6, 16, %s56, [#allocation5]
    $region29: #{tpu_custom_call.1} parent=1 // pred_fallthru
      _
    // Predicated region
    $region30: #{tpu_custom_call.1} parent=1 // pred_check
      _
    $region31: #{tpu_custom_call.1} parent=1 // pred_check_branch
      %60 = sbr.rel (0) target = $region33
    $region32: #{tpu_custom_call.1} parent=1 // pred_region
      _
    $region33: #{tpu_custom_call.1} parent=1 // pred_fallthru
      _
    // Predicated region
    $region34: #{tpu_custom_call.1} parent=1 // pred_check
      _
    $region35: #{tpu_custom_call.1} parent=1 // pred_check_branch
      %62 = sbr.rel (0) target = $region37
    $region36: #{tpu_custom_call.1} parent=1 // pred_region
      _
    $region37: #{tpu_custom_call.1} parent=1 // pred_fallthru
      _
    // Predicated region
    $region38: #{tpu_custom_call.1} parent=1 // pred_check
      _
    $region39: #{tpu_custom_call.1} parent=1 // pred_check_branch
      %64 = sbr.rel (0) target = $region41
    $region40: #{tpu_custom_call.1} parent=1 // pred_region
      _
    $region41: #{tpu_custom_call.1} parent=1 // pred_fallthru
      _
    // Predicated region
    $region42: #{tpu_custom_call.1} parent=1 // pred_check
      _
    $region43: #{tpu_custom_call.1} parent=1 // pred_check_branch
      %66 = sbr.rel (0) target = $region45
    $region44: #{tpu_custom_call.1} parent=1 // pred_region
      _
    $region45: #{tpu_custom_call.1} parent=1 // pred_fallthru
      _
    // Predicated region
    $region46: #{tpu_custom_call.1} parent=1 // pred_check
      _
    $region47: #{tpu_custom_call.1} parent=1 // pred_check_branch
      %68 = sbr.rel (0) target = $region49
    $region48: #{tpu_custom_call.1} parent=1 // pred_region
      _
    $region49: #{tpu_custom_call.1} parent=1 // pred_fallthru
      _
    // Predicated region
    $region50: #{tpu_custom_call.1} parent=1 // pred_check
      _
    $region51: #{tpu_custom_call.1} parent=1 // pred_check_branch
      %70 = sbr.rel (0) target = $region53
    $region52: #{tpu_custom_call.1} parent=1 // pred_region
      _
    $region53: #{tpu_custom_call.1} parent=1 // pred_fallthru
      _
    // Predicated region
    $region54: #{tpu_custom_call.1} parent=1 // pred_check
      _
    $region55: #{tpu_custom_call.1} parent=1 // pred_check_branch
      %72 = sbr.rel (0) target = $region57
    $region56: #{tpu_custom_call.1} parent=1 // pred_region
      _
    $region57: #{tpu_custom_call.1} parent=1 // pred_fallthru
      _
    // Predicated region
    $region58: #{tpu_custom_call.1} parent=1 // pred_check
      _
    $region59: #{tpu_custom_call.1} parent=1 // pred_check_branch
      %74 = sbr.rel (0) target = $region61
    $region60: #{tpu_custom_call.1} parent=1 // pred_region
      %75 = dma.done [#allocation3], 128
    $region61: #{tpu_custom_call.1} parent=1 // pred_fallthru
      _
    // Predicated region
    $region62: #{tpu_custom_call.1} parent=1 // pred_check
      _
    $region63: #{tpu_custom_call.1} parent=1 // pred_check_branch
      %77 = sbr.rel (0) target = $region65
    $region64: #{tpu_custom_call.1} parent=1 // pred_region
      %78 = dma.done [#allocation5], 128
    $region65: #{tpu_custom_call.1} parent=1 // pred_fallthru
      _
    // Predicated region
    $region66: #{tpu_custom_call.1} parent=1 // pred_check
      _
    $region67: #{tpu_custom_call.1} parent=1 // pred_check_branch
      %80 = sbr.rel (0) target = $region69
    $region68: #{tpu_custom_call.1} parent=1 // pred_region
      %81 = dma.done [#allocation5], 16
    $region69: #{tpu_custom_call.1} parent=1 // pred_fallthru
      _
    %v82 = vld [vmem:[%s9] sm:$0xff]
    %v83 = vld [vmem:[%s9 + $0x8] sm:$0xff]
    %v84 = vld [vmem:[%s9 + $0x10] sm:$0xff]
    %v85 = vld [vmem:[%s9 + $0x18] sm:$0xff]
    %v86 = vld [vmem:[%s9 + $0x20] sm:$0xff]
    %v87 = vld [vmem:[%s9 + $0x28] sm:$0xff]
    %v88 = vld [vmem:[%s9 + $0x30] sm:$0xff]
    %v89 = vld [vmem:[%s9 + $0x38] sm:$0xff]
    %v90 = vld [vmem:[%s8] sm:$0xff]
    %v91 = vld [vmem:[%s8 + $0x8] sm:$0xff]
    %v92 = vld [vmem:[%s8 + $0x10] sm:$0xff]
    %v93 = vld [vmem:[%s8 + $0x18] sm:$0xff]
    %v94 = vld [vmem:[%s10] sm:$0x1]
    %v95 = vld [vmem:[%s10 + $0x1] sm:$0x1]
    %v96 = vld [vmem:[%s11] sm:$0x1]
    %v97 = vld [vmem:[%s11 + $0x1] sm:$0x1]
    %v98 = vld [vmem:[%s12] sm:$0xff]
    %v99 = vld [vmem:[%s12 + $0x8] sm:$0xff]
    %v100 = vld [vmem:[%s12 + $0x10] sm:$0xff]
    %v101 = vld [vmem:[%s12 + $0x18] sm:$0xff]
    %v102 = vld [vmem:[%s13] sm:$0x1]
    %v103 = vld [vmem:[%s0] sm:$0xff]
    %v104 = vld [vmem:[%s0 + $0x8] sm:$0xff]
    %v105 = vld [vmem:[%s0 + $0x10] sm:$0xff]
    %v106 = vld [vmem:[%s0 + $0x18] sm:$0xff]
    %v107 = vld [vmem:[%s0 + $0x20] sm:$0xff]
    %v108 = vld [vmem:[%s0 + $0x28] sm:$0xff]
    %v109 = vld [vmem:[%s0 + $0x30] sm:$0xff]
    %v110 = vld [vmem:[%s0 + $0x38] sm:$0xff]
    %v111 = vld [vmem:[#allocation2] sm:$0xff]
    %v112 = vld [vmem:[%s2] sm:$0x1]
    %v114 = vlaneseq
    %v115 = vshrl.u32 %v114, 7
    %v116 = vsub.s32 0, %v115
    %v117 = vrot.slane %v112, %v116
    %vm119 = vcmask 64512
    %v121 = vsel %vm119, %v103, 0
    %v124 = vsel %vm119, %v104, 0
    %v127 = vsel %vm119, %v105, 0
    %v130 = vsel %vm119, %v106, 0
    %v133 = vsel %vm119, %v107, 0
    %v136 = vsel %vm119, %v108, 0
    %v139 = vsel %vm119, %v109, 0
    %v142 = vsel %vm119, %v110, 0
    %144 = vmatprep.subr.mxu0 0.0
    %145 = vmatpush1.msra.mxu0 %v111
    %146 = vmatprep.subr.mxu0 0.0
    %147 = vmatpush1.msra.mxu0 0.0
    %148 = vmatprep.subr.mxu0 0.0
    %149 = vmatpush1.msra.mxu0 0.0
    %150 = vmatprep.subr.mxu0 0.0
    %151 = vmatpush1.msra.mxu0 0.0
    %152 = vmatprep.subr.mxu0 0.0
    %153 = vmatpush1.msra.mxu0 0.0
    %154 = vmatprep.subr.mxu0 0.0
    %155 = vmatpush1.msra.mxu0 0.0
    %156 = vmatprep.subr.mxu0 0.0
    %157 = vmatpush1.msra.mxu0 0.0
    %158 = vmatprep.subr.mxu0 0.0
    %159 = vmatpush1.msra.mxu0 0.0
    %160 = vmatprep.subr.mxu0 0.0
    %161 = vmatpush1.msra.mxu0 0.0
    %162 = vmatprep.subr.mxu0 0.0
    %163 = vmatpush1.msra.mxu0 0.0
    %164 = vmatprep.subr.mxu0 0.0
    %165 = vmatpush1.msra.mxu0 0.0
    %166 = vmatprep.subr.mxu0 0.0
    %167 = vmatpush1.msra.mxu0 0.0
    %168 = vmatprep.subr.mxu0 0.0
    %169 = vmatpush1.msra.mxu0 0.0
    %170 = vmatprep.subr.mxu0 0.0
    %171 = vmatpush1.msra.mxu0 0.0
    %172 = vmatprep.subr.mxu0 0.0
    %173 = vmatpush1.msra.mxu0 0.0
    %174 = vmatprep.subr.mxu0 0.0
    %175 = vmatpush1.msra.mxu0 0.0
    %176 = vmatprep.subr.mxu0 0.0
    %177 = vmatpush1.msra.mxu0 0.0
    %178 = vmatprep.subr.mxu0 0.0
    %179 = vmatpush1.msra.mxu0 0.0
    %180 = vmatprep.subr.mxu0 0.0
    %181 = vmatpush1.msra.mxu0 0.0
    %182 = vmatprep.subr.mxu0 0.0
    %183 = vmatpush1.msra.mxu0 0.0
    %184 = vmatprep.subr.mxu0 0.0
    %185 = vmatpush1.msra.mxu0 0.0
    %186 = vmatprep.subr.mxu0 0.0
    %187 = vmatpush1.msra.mxu0 0.0
    %188 = vmatprep.subr.mxu0 0.0
    %189 = vmatpush1.msra.mxu0 0.0
    %190 = vmatprep.subr.mxu0 0.0
    %191 = vmatpush1.msra.mxu0 0.0
    %192 = vmatprep.subr.mxu0 0.0
    %193 = vmatpush1.msra.mxu0 0.0
    %194 = vmatprep.subr.mxu0 0.0
    %195 = vmatpush1.msra.mxu0 0.0
    %196 = vmatprep.subr.mxu0 0.0
    %197 = vmatpush1.msra.mxu0 0.0
    %198 = vmatprep.subr.mxu0 0.0
    %199 = vmatpush1.msra.mxu0 0.0
    %200 = vmatprep.subr.mxu0 0.0
    %201 = vmatpush1.msra.mxu0 0.0
    %202 = vmatprep.subr.mxu0 0.0
    %203 = vmatpush1.msra.mxu0 0.0
    %204 = vmatprep.subr.mxu0 0.0
    %205 = vmatpush1.msra.mxu0 0.0
    %206 = vmatprep.subr.mxu0 0.0
    %207 = vmatpush1.msra.mxu0 0.0
    %208 = vmatprep.mubr.f32.mxu0 0.0
    %209 = vmatmul.mubr.f32.gmra.mrb[0].mxu0 %v121
    %v210 = vpop.f32.mrb[0].mxu0
    %v211 = vadd.f32 %v117, %v210
    %v212 = vpop.f32.mrb[0].mxu0
    %213 = vmatprep.mubr.f32.mxu0 0.0
    %214 = vmatmul.mubr.f32.gmra.mrb[0].mxu0 %v124
    %v215 = vpop.f32.mrb[0].mxu0
    %v216 = vadd.f32 %v117, %v215
    %v217 = vpop.f32.mrb[0].mxu0
    %218 = vmatprep.mubr.f32.mxu0 0.0
    %219 = vmatmul.mubr.f32.gmra.mrb[0].mxu0 %v127
    %v220 = vpop.f32.mrb[0].mxu0
    %v221 = vadd.f32 %v117, %v220
    %v222 = vpop.f32.mrb[0].mxu0
    %223 = vmatprep.mubr.f32.mxu0 0.0
    %224 = vmatmul.mubr.f32.gmra.mrb[0].mxu0 %v130
    %v225 = vpop.f32.mrb[0].mxu0
    %v226 = vadd.f32 %v117, %v225
    %v227 = vpop.f32.mrb[0].mxu0
    %228 = vmatprep.mubr.f32.mxu0 0.0
    %229 = vmatmul.mubr.f32.gmra.mrb[0].mxu0 %v133
    %v230 = vpop.f32.mrb[0].mxu0
    %v231 = vadd.f32 %v117, %v230
    %v232 = vpop.f32.mrb[0].mxu0
    %233 = vmatprep.mubr.f32.mxu0 0.0
    %234 = vmatmul.mubr.f32.gmra.mrb[0].mxu0 %v136
    %v235 = vpop.f32.mrb[0].mxu0
    %v236 = vadd.f32 %v117, %v235
    %v237 = vpop.f32.mrb[0].mxu0
    %238 = vmatprep.mubr.f32.mxu0 0.0
    %239 = vmatmul.mubr.f32.gmra.mrb[0].mxu0 %v139
    %v240 = vpop.f32.mrb[0].mxu0
    %v241 = vadd.f32 %v117, %v240
    %v242 = vpop.f32.mrb[0].mxu0
    %243 = vmatprep.mubr.f32.mxu0 0.0
    %244 = vmatmul.mubr.f32.gmra.mrb[0].mxu0 %v142
    %v245 = vpop.f32.mrb[0].mxu0
    %v246 = vadd.f32 %v117, %v245
    %v247 = vpop.f32.mrb[0].mxu0
    %248 = vdwg.mxu0
    %vm249 = vcmp.gt.f32.partialorder %v211, 0.0
    %vm250 = vcmp.gt.f32.partialorder %v216, 0.0
    %vm251 = vcmp.gt.f32.partialorder %v221, 0.0
    %vm252 = vcmp.gt.f32.partialorder %v226, 0.0
    %vm253 = vcmp.gt.f32.partialorder %v231, 0.0
    %vm254 = vcmp.gt.f32.partialorder %v236, 0.0
    %vm255 = vcmp.gt.f32.partialorder %v241, 0.0
    %vm256 = vcmp.gt.f32.partialorder %v246, 0.0
    %v257 = vmul.f32 %v211, 0.01
    %v258 = vmul.f32 %v216, 0.01
    %v259 = vmul.f32 %v221, 0.01
    %v260 = vmul.f32 %v226, 0.01
    %v261 = vmul.f32 %v231, 0.01
    %v262 = vmul.f32 %v236, 0.01
    %v263 = vmul.f32 %v241, 0.01
    %v264 = vmul.f32 %v246, 0.01
    %v265 = vsel %vm249, %v211, %v257
    %v266 = vsel %vm250, %v216, %v258
    %v267 = vsel %vm251, %v221, %v259
    %v268 = vsel %vm252, %v226, %v260
    %v269 = vsel %vm253, %v231, %v261
    %v270 = vsel %vm254, %v236, %v262
    %v271 = vsel %vm255, %v241, %v263
    %v272 = vsel %vm256, %v246, %v264
    %v273 = vld [vmem:[#allocation4] sm:$0xff]
    %v274 = vld [vmem:[%s4] sm:$0x1]
    %v276 = vlaneseq
    %v277 = vshrl.u32 %v276, 7
    %v278 = vsub.s32 0, %v277
    %v279 = vrot.slane %v274, %v278
    %v282 = vsel %vm119, %v265, 0
    %v285 = vsel %vm119, %v266, 0
    %v288 = vsel %vm119, %v267, 0
    %v291 = vsel %vm119, %v268, 0
    %v294 = vsel %vm119, %v269, 0
    %v297 = vsel %vm119, %v270, 0
    %v300 = vsel %vm119, %v271, 0
    %v303 = vsel %vm119, %v272, 0
    %305 = vmatprep.subr.mxu0 0.0
    %306 = vmatpush1.msra.mxu0 %v273
    %307 = vmatprep.subr.mxu0 0.0
    %308 = vmatpush1.msra.mxu0 0.0
    %309 = vmatprep.subr.mxu0 0.0
    %310 = vmatpush1.msra.mxu0 0.0
    %311 = vmatprep.subr.mxu0 0.0
    %312 = vmatpush1.msra.mxu0 0.0
    %313 = vmatprep.subr.mxu0 0.0
    %314 = vmatpush1.msra.mxu0 0.0
    %315 = vmatprep.subr.mxu0 0.0
    %316 = vmatpush1.msra.mxu0 0.0
    %317 = vmatprep.subr.mxu0 0.0
    %318 = vmatpush1.msra.mxu0 0.0
    %319 = vmatprep.subr.mxu0 0.0
    %320 = vmatpush1.msra.mxu0 0.0
    %321 = vmatprep.subr.mxu0 0.0
    %322 = vmatpush1.msra.mxu0 0.0
    %323 = vmatprep.subr.mxu0 0.0
    %324 = vmatpush1.msra.mxu0 0.0
    %325 = vmatprep.subr.mxu0 0.0
    %326 = vmatpush1.msra.mxu0 0.0
    %327 = vmatprep.subr.mxu0 0.0
    %328 = vmatpush1.msra.mxu0 0.0
    %329 = vmatprep.subr.mxu0 0.0
    %330 = vmatpush1.msra.mxu0 0.0
    %331 = vmatprep.subr.mxu0 0.0
    %332 = vmatpush1.msra.mxu0 0.0
    %333 = vmatprep.subr.mxu0 0.0
    %334 = vmatpush1.msra.mxu0 0.0
    %335 = vmatprep.subr.mxu0 0.0
    %336 = vmatpush1.msra.mxu0 0.0
    %337 = vmatprep.subr.mxu0 0.0
    %338 = vmatpush1.msra.mxu0 0.0
    %339 = vmatprep.subr.mxu0 0.0
    %340 = vmatpush1.msra.mxu0 0.0
    %341 = vmatprep.subr.mxu0 0.0
    %342 = vmatpush1.msra.mxu0 0.0
    %343 = vmatprep.subr.mxu0 0.0
    %344 = vmatpush1.msra.mxu0 0.0
    %345 = vmatprep.subr.mxu0 0.0
    %346 = vmatpush1.msra.mxu0 0.0
    %347 = vmatprep.subr.mxu0 0.0
    %348 = vmatpush1.msra.mxu0 0.0
    %349 = vmatprep.subr.mxu0 0.0
    %350 = vmatpush1.msra.mxu0 0.0
    %351 = vmatprep.subr.mxu0 0.0
    %352 = vmatpush1.msra.mxu0 0.0
    %353 = vmatprep.subr.mxu0 0.0
    %354 = vmatpush1.msra.mxu0 0.0
    %355 = vmatprep.subr.mxu0 0.0
    %356 = vmatpush1.msra.mxu0 0.0
    %357 = vmatprep.subr.mxu0 0.0
    %358 = vmatpush1.msra.mxu0 0.0
    %359 = vmatprep.subr.mxu0 0.0
    %360 = vmatpush1.msra.mxu0 0.0
    %361 = vmatprep.subr.mxu0 0.0
    %362 = vmatpush1.msra.mxu0 0.0
    %363 = vmatprep.subr.mxu0 0.0
    %364 = vmatpush1.msra.mxu0 0.0
    %365 = vmatprep.subr.mxu0 0.0
    %366 = vmatpush1.msra.mxu0 0.0
    %367 = vmatprep.subr.mxu0 0.0
    %368 = vmatpush1.msra.mxu0 0.0
    %369 = vmatprep.mubr.f32.mxu0 0.0
    %370 = vmatmul.mubr.f32.gmra.mrb[0].mxu0 %v282
    %v371 = vpop.f32.mrb[0].mxu0
    %v372 = vadd.f32 %v279, %v371
    %v373 = vpop.f32.mrb[0].mxu0
    %374 = vmatprep.mubr.f32.mxu0 0.0
    %375 = vmatmul.mubr.f32.gmra.mrb[0].mxu0 %v285
    %v376 = vpop.f32.mrb[0].mxu0
    %v377 = vadd.f32 %v279, %v376
    %v378 = vpop.f32.mrb[0].mxu0
    %379 = vmatprep.mubr.f32.mxu0 0.0
    %380 = vmatmul.mubr.f32.gmra.mrb[0].mxu0 %v288
    %v381 = vpop.f32.mrb[0].mxu0
    %v382 = vadd.f32 %v279, %v381
    %v383 = vpop.f32.mrb[0].mxu0
    %384 = vmatprep.mubr.f32.mxu0 0.0
    %385 = vmatmul.mubr.f32.gmra.mrb[0].mxu0 %v291
    %v386 = vpop.f32.mrb[0].mxu0
    %v387 = vadd.f32 %v279, %v386
    %v388 = vpop.f32.mrb[0].mxu0
    %389 = vmatprep.mubr.f32.mxu0 0.0
    %390 = vmatmul.mubr.f32.gmra.mrb[0].mxu0 %v294
    %v391 = vpop.f32.mrb[0].mxu0
    %v392 = vadd.f32 %v279, %v391
    %v393 = vpop.f32.mrb[0].mxu0
    %394 = vmatprep.mubr.f32.mxu0 0.0
    %395 = vmatmul.mubr.f32.gmra.mrb[0].mxu0 %v297
    %v396 = vpop.f32.mrb[0].mxu0
    %v397 = vadd.f32 %v279, %v396
    %v398 = vpop.f32.mrb[0].mxu0
    %399 = vmatprep.mubr.f32.mxu0 0.0
    %400 = vmatmul.mubr.f32.gmra.mrb[0].mxu0 %v300
    %v401 = vpop.f32.mrb[0].mxu0
    %v402 = vadd.f32 %v279, %v401
    %v403 = vpop.f32.mrb[0].mxu0
    %404 = vmatprep.mubr.f32.mxu0 0.0
    %405 = vmatmul.mubr.f32.gmra.mrb[0].mxu0 %v303
    %v406 = vpop.f32.mrb[0].mxu0
    %v407 = vadd.f32 %v279, %v406
    %v408 = vpop.f32.mrb[0].mxu0
    %409 = vdwg.mxu0
    %vm410 = vcmp.gt.f32.partialorder %v372, 0.0
    %vm411 = vcmp.gt.f32.partialorder %v377, 0.0
    %vm412 = vcmp.gt.f32.partialorder %v382, 0.0
    %vm413 = vcmp.gt.f32.partialorder %v387, 0.0
    %vm414 = vcmp.gt.f32.partialorder %v392, 0.0
    %vm415 = vcmp.gt.f32.partialorder %v397, 0.0
    %vm416 = vcmp.gt.f32.partialorder %v402, 0.0
    %vm417 = vcmp.gt.f32.partialorder %v407, 0.0
    %v418 = vmul.f32 %v372, 0.01
    %v419 = vmul.f32 %v377, 0.01
    %v420 = vmul.f32 %v382, 0.01
    %v421 = vmul.f32 %v387, 0.01
    %v422 = vmul.f32 %v392, 0.01
    %v423 = vmul.f32 %v397, 0.01
    %v424 = vmul.f32 %v402, 0.01
    %v425 = vmul.f32 %v407, 0.01
    %v426 = vsel %vm410, %v372, %v418
    %v427 = vsel %vm411, %v377, %v419
    %v428 = vsel %vm412, %v382, %v420
    %v429 = vsel %vm413, %v387, %v421
    %v430 = vsel %vm414, %v392, %v422
    %v431 = vsel %vm415, %v397, %v423
    %v432 = vsel %vm416, %v402, %v424
    %v433 = vsel %vm417, %v407, %v425
    %v434 = vld [vmem:[%s5] sm:$0xff]
    %v435 = vld [vmem:[%s5 + $0x8] sm:$0xff]
    %v436 = vld [vmem:[#allocation6] sm:$0x1]
    %v438 = vlaneseq
    %v439 = vshrl.u32 %v438, 7
    %v440 = vsub.s32 0, %v439
    %v441 = vrot.slane %v436, %v440
    %vm443 = vcmask 130048
    %v445 = vsel %vm443, %v426, 0
    %v448 = vsel %vm443, %v427, 0
    %v451 = vsel %vm443, %v428, 0
    %v454 = vsel %vm443, %v429, 0
    %v457 = vsel %vm443, %v430, 0
    %v460 = vsel %vm443, %v431, 0
    %v463 = vsel %vm443, %v432, 0
    %v466 = vsel %vm443, %v433, 0
    %468 = vmatprep.subr.mxu0 0.0
    %469 = vmatpush1.msra.mxu0 %v434
    %470 = vmatprep.subr.mxu0 0.0
    %471 = vmatpush1.msra.mxu0 %v435
    %472 = vmatprep.subr.mxu0 0.0
    %473 = vmatpush1.msra.mxu0 0.0
    %474 = vmatprep.subr.mxu0 0.0
    %475 = vmatpush1.msra.mxu0 0.0
    %476 = vmatprep.subr.mxu0 0.0
    %477 = vmatpush1.msra.mxu0 0.0
    %478 = vmatprep.subr.mxu0 0.0
    %479 = vmatpush1.msra.mxu0 0.0
    %480 = vmatprep.subr.mxu0 0.0
    %481 = vmatpush1.msra.mxu0 0.0
    %482 = vmatprep.subr.mxu0 0.0
    %483 = vmatpush1.msra.mxu0 0.0
    %484 = vmatprep.subr.mxu0 0.0
    %485 = vmatpush1.msra.mxu0 0.0
    %486 = vmatprep.subr.mxu0 0.0
    %487 = vmatpush1.msra.mxu0 0.0
    %488 = vmatprep.subr.mxu0 0.0
    %489 = vmatpush1.msra.mxu0 0.0
    %490 = vmatprep.subr.mxu0 0.0
    %491 = vmatpush1.msra.mxu0 0.0
    %492 = vmatprep.subr.mxu0 0.0
    %493 = vmatpush1.msra.mxu0 0.0
    %494 = vmatprep.subr.mxu0 0.0
    %495 = vmatpush1.msra.mxu0 0.0
    %496 = vmatprep.subr.mxu0 0.0
    %497 = vmatpush1.msra.mxu0 0.0
    %498 = vmatprep.subr.mxu0 0.0
    %499 = vmatpush1.msra.mxu0 0.0
    %500 = vmatprep.subr.mxu0 0.0
    %501 = vmatpush1.msra.mxu0 0.0
    %502 = vmatprep.subr.mxu0 0.0
    %503 = vmatpush1.msra.mxu0 0.0
    %504 = vmatprep.subr.mxu0 0.0
    %505 = vmatpush1.msra.mxu0 0.0
    %506 = vmatprep.subr.mxu0 0.0
    %507 = vmatpush1.msra.mxu0 0.0
    %508 = vmatprep.subr.mxu0 0.0
    %509 = vmatpush1.msra.mxu0 0.0
    %510 = vmatprep.subr.mxu0 0.0
    %511 = vmatpush1.msra.mxu0 0.0
    %512 = vmatprep.subr.mxu0 0.0
    %513 = vmatpush1.msra.mxu0 0.0
    %514 = vmatprep.subr.mxu0 0.0
    %515 = vmatpush1.msra.mxu0 0.0
    %516 = vmatprep.subr.mxu0 0.0
    %517 = vmatpush1.msra.mxu0 0.0
    %518 = vmatprep.subr.mxu0 0.0
    %519 = vmatpush1.msra.mxu0 0.0
    %520 = vmatprep.subr.mxu0 0.0
    %521 = vmatpush1.msra.mxu0 0.0
    %522 = vmatprep.subr.mxu0 0.0
    %523 = vmatpush1.msra.mxu0 0.0
    %524 = vmatprep.subr.mxu0 0.0
    %525 = vmatpush1.msra.mxu0 0.0
    %526 = vmatprep.subr.mxu0 0.0
    %527 = vmatpush1.msra.mxu0 0.0
    %528 = vmatprep.subr.mxu0 0.0
    %529 = vmatpush1.msra.mxu0 0.0
    %530 = vmatprep.subr.mxu0 0.0
    %531 = vmatpush1.msra.mxu0 0.0
    %532 = vmatprep.mubr.f32.mxu0 0.0
    %533 = vmatmul.mubr.f32.gmra.mrb[0].mxu0 %v445
    %v534 = vpop.f32.mrb[0].mxu0
    %v535 = vadd.f32 %v441, %v534
    %v536 = vpop.f32.mrb[0].mxu0
    %537 = vmatprep.mubr.f32.mxu0 0.0
    %538 = vmatmul.mubr.f32.gmra.mrb[0].mxu0 %v448
    %v539 = vpop.f32.mrb[0].mxu0
    %v540 = vadd.f32 %v441, %v539
    %v541 = vpop.f32.mrb[0].mxu0
    %542 = vmatprep.mubr.f32.mxu0 0.0
    %543 = vmatmul.mubr.f32.gmra.mrb[0].mxu0 %v451
    %v544 = vpop.f32.mrb[0].mxu0
    %v545 = vadd.f32 %v441, %v544
    %v546 = vpop.f32.mrb[0].mxu0
    %547 = vmatprep.mubr.f32.mxu0 0.0
    %548 = vmatmul.mubr.f32.gmra.mrb[0].mxu0 %v454
    %v549 = vpop.f32.mrb[0].mxu0
    %v550 = vadd.f32 %v441, %v549
    %v551 = vpop.f32.mrb[0].mxu0
    %552 = vmatprep.mubr.f32.mxu0 0.0
    %553 = vmatmul.mubr.f32.gmra.mrb[0].mxu0 %v457
    %v554 = vpop.f32.mrb[0].mxu0
    %v555 = vadd.f32 %v441, %v554
    %v556 = vpop.f32.mrb[0].mxu0
    %557 = vmatprep.mubr.f32.mxu0 0.0
    %558 = vmatmul.mubr.f32.gmra.mrb[0].mxu0 %v460
    %v559 = vpop.f32.mrb[0].mxu0
    %v560 = vadd.f32 %v441, %v559
    %v561 = vpop.f32.mrb[0].mxu0
    %562 = vmatprep.mubr.f32.mxu0 0.0
    %563 = vmatmul.mubr.f32.gmra.mrb[0].mxu0 %v463
    %v564 = vpop.f32.mrb[0].mxu0
    %v565 = vadd.f32 %v441, %v564
    %v566 = vpop.f32.mrb[0].mxu0
    %567 = vmatprep.mubr.f32.mxu0 0.0
    %568 = vmatmul.mubr.f32.gmra.mrb[0].mxu0 %v466
    %v569 = vpop.f32.mrb[0].mxu0
    %v570 = vadd.f32 %v441, %v569
    %v571 = vpop.f32.mrb[0].mxu0
    %572 = vdwg.mxu0
    %v573 = vld [vmem:[%s7] sm:$0xff]
    %v574 = vld [vmem:[%s7 + $0x8] sm:$0xff]
    %v576 = vlaneseq
    %v577 = vshrl.u32 %v576, 7
    %v578 = vsub.s32 0, %v577
    %v579 = vrot.slane %v94, %v578
    %v582 = vsel %vm443, %v535, 0
    %v585 = vsel %vm443, %v540, 0
    %v588 = vsel %vm443, %v545, 0
    %v591 = vsel %vm443, %v550, 0
    %v594 = vsel %vm443, %v555, 0
    %v597 = vsel %vm443, %v560, 0
    %v600 = vsel %vm443, %v565, 0
    %v603 = vsel %vm443, %v570, 0
    %605 = vmatprep.subr.mxu0 0.0
    %606 = vmatpush1.msra.mxu0 %v573
    %607 = vmatprep.subr.mxu0 0.0
    %608 = vmatpush1.msra.mxu0 %v574
    %609 = vmatprep.subr.mxu0 0.0
    %610 = vmatpush1.msra.mxu0 0.0
    %611 = vmatprep.subr.mxu0 0.0
    %612 = vmatpush1.msra.mxu0 0.0
    %613 = vmatprep.subr.mxu0 0.0
    %614 = vmatpush1.msra.mxu0 0.0
    %615 = vmatprep.subr.mxu0 0.0
    %616 = vmatpush1.msra.mxu0 0.0
    %617 = vmatprep.subr.mxu0 0.0
    %618 = vmatpush1.msra.mxu0 0.0
    %619 = vmatprep.subr.mxu0 0.0
    %620 = vmatpush1.msra.mxu0 0.0
    %621 = vmatprep.subr.mxu0 0.0
    %622 = vmatpush1.msra.mxu0 0.0
    %623 = vmatprep.subr.mxu0 0.0
    %624 = vmatpush1.msra.mxu0 0.0
    %625 = vmatprep.subr.mxu0 0.0
    %626 = vmatpush1.msra.mxu0 0.0
    %627 = vmatprep.subr.mxu0 0.0
    %628 = vmatpush1.msra.mxu0 0.0
    %629 = vmatprep.subr.mxu0 0.0
    %630 = vmatpush1.msra.mxu0 0.0
    %631 = vmatprep.subr.mxu0 0.0
    %632 = vmatpush1.msra.mxu0 0.0
    %633 = vmatprep.subr.mxu0 0.0
    %634 = vmatpush1.msra.mxu0 0.0
    %635 = vmatprep.subr.mxu0 0.0
    %636 = vmatpush1.msra.mxu0 0.0
    %637 = vmatprep.subr.mxu0 0.0
    %638 = vmatpush1.msra.mxu0 0.0
    %639 = vmatprep.subr.mxu0 0.0
    %640 = vmatpush1.msra.mxu0 0.0
    %641 = vmatprep.subr.mxu0 0.0
    %642 = vmatpush1.msra.mxu0 0.0
    %643 = vmatprep.subr.mxu0 0.0
    %644 = vmatpush1.msra.mxu0 0.0
    %645 = vmatprep.subr.mxu0 0.0
    %646 = vmatpush1.msra.mxu0 0.0
    %647 = vmatprep.subr.mxu0 0.0
    %648 = vmatpush1.msra.mxu0 0.0
    %649 = vmatprep.subr.mxu0 0.0
    %650 = vmatpush1.msra.mxu0 0.0
    %651 = vmatprep.subr.mxu0 0.0
    %652 = vmatpush1.msra.mxu0 0.0
    %653 = vmatprep.subr.mxu0 0.0
    %654 = vmatpush1.msra.mxu0 0.0
    %655 = vmatprep.subr.mxu0 0.0
    %656 = vmatpush1.msra.mxu0 0.0
    %657 = vmatprep.subr.mxu0 0.0
    %658 = vmatpush1.msra.mxu0 0.0
    %659 = vmatprep.subr.mxu0 0.0
    %660 = vmatpush1.msra.mxu0 0.0
    %661 = vmatprep.subr.mxu0 0.0
    %662 = vmatpush1.msra.mxu0 0.0
    %663 = vmatprep.subr.mxu0 0.0
    %664 = vmatpush1.msra.mxu0 0.0
    %665 = vmatprep.subr.mxu0 0.0
    %666 = vmatpush1.msra.mxu0 0.0
    %667 = vmatprep.subr.mxu0 0.0
    %668 = vmatpush1.msra.mxu0 0.0
    %669 = vmatprep.mubr.f32.mxu0 0.0
    %670 = vmatmul.mubr.f32.gmra.mrb[0].mxu0 %v582
    %v671 = vpop.f32.mrb[0].mxu0
    %v672 = vpop.f32.mrb[0].mxu0
    %673 = vmatprep.mubr.f32.mxu0 0.0
    %674 = vmatmul.mubr.f32.gmra.mrb[0].mxu0 %v585
    %v675 = vpop.f32.mrb[0].mxu0
    %v676 = vadd.f32 %v579, %v675
    %v677 = vpop.f32.mrb[0].mxu0
    %678 = vmatprep.mubr.f32.mxu0 0.0
    %679 = vmatmul.mubr.f32.gmra.mrb[0].mxu0 %v588
    %v680 = vpop.f32.mrb[0].mxu0
    %v681 = vadd.f32 %v579, %v680
    %v682 = vpop.f32.mrb[0].mxu0
    %683 = vmatprep.mubr.f32.mxu0 0.0
    %684 = vmatmul.mubr.f32.gmra.mrb[0].mxu0 %v591
    %v685 = vpop.f32.mrb[0].mxu0
    %v686 = vadd.f32 %v579, %v685
    %v687 = vpop.f32.mrb[0].mxu0
    %688 = vmatprep.mubr.f32.mxu0 0.0
    %689 = vmatmul.mubr.f32.gmra.mrb[0].mxu0 %v594
    %v690 = vpop.f32.mrb[0].mxu0
    %v691 = vadd.f32 %v579, %v690
    %v692 = vpop.f32.mrb[0].mxu0
    %693 = vmatprep.mubr.f32.mxu0 0.0
    %694 = vmatmul.mubr.f32.gmra.mrb[0].mxu0 %v597
    %v695 = vpop.f32.mrb[0].mxu0
    %v696 = vadd.f32 %v579, %v695
    %v697 = vpop.f32.mrb[0].mxu0
    %698 = vmatprep.mubr.f32.mxu0 0.0
    %699 = vmatmul.mubr.f32.gmra.mrb[0].mxu0 %v600
    %v700 = vpop.f32.mrb[0].mxu0
    %v701 = vadd.f32 %v579, %v700
    %v702 = vpop.f32.mrb[0].mxu0
    %703 = vmatprep.mubr.f32.mxu0 0.0
    %704 = vmatmul.mubr.f32.gmra.mrb[0].mxu0 %v603
    %v705 = vpop.f32.mrb[0].mxu0
    %v706 = vadd.f32 %v579, %v705
    %v707 = vpop.f32.mrb[0].mxu0
    %708 = vdwg.mxu0
    %709 = vst.msk [vmem:[%s14] sm:$0xff] %vm443, 0.0
    %vm710 = vcmask 261120
    %v712 = vsel %vm710, 0.0, 0
    %714 = vmatprep.subr.mxu0 0.0
    %715 = vmatpush1.msra.mxu0 %v82
    %716 = vmatprep.subr.mxu0 0.0
    %717 = vmatpush1.msra.mxu0 %v83
    %718 = vmatprep.subr.mxu0 0.0
    %719 = vmatpush1.msra.mxu0 %v84
    %720 = vmatprep.subr.mxu0 0.0
    %721 = vmatpush1.msra.mxu0 %v85
    %722 = vmatprep.subr.mxu0 0.0
    %723 = vmatpush1.msra.mxu0 0.0
    %724 = vmatprep.subr.mxu0 0.0
    %725 = vmatpush1.msra.mxu0 0.0
    %726 = vmatprep.subr.mxu0 0.0
    %727 = vmatpush1.msra.mxu0 0.0
    %728 = vmatprep.subr.mxu0 0.0
    %729 = vmatpush1.msra.mxu0 0.0
    %730 = vmatprep.subr.mxu0 0.0
    %731 = vmatpush1.msra.mxu0 0.0
    %732 = vmatprep.subr.mxu0 0.0
    %733 = vmatpush1.msra.mxu0 0.0
    %734 = vmatprep.subr.mxu0 0.0
    %735 = vmatpush1.msra.mxu0 0.0
    %736 = vmatprep.subr.mxu0 0.0
    %737 = vmatpush1.msra.mxu0 0.0
    %738 = vmatprep.subr.mxu0 0.0
    %739 = vmatpush1.msra.mxu0 0.0
    %740 = vmatprep.subr.mxu0 0.0
    %741 = vmatpush1.msra.mxu0 0.0
    %742 = vmatprep.subr.mxu0 0.0
    %743 = vmatpush1.msra.mxu0 0.0
    %744 = vmatprep.subr.mxu0 0.0
    %745 = vmatpush1.msra.mxu0 0.0
    %746 = vmatprep.subr.mxu0 0.0
    %747 = vmatpush1.msra.mxu0 0.0
    %748 = vmatprep.subr.mxu0 0.0
    %749 = vmatpush1.msra.mxu0 0.0
    %750 = vmatprep.subr.mxu0 0.0
    %751 = vmatpush1.msra.mxu0 0.0
    %752 = vmatprep.subr.mxu0 0.0
    %753 = vmatpush1.msra.mxu0 0.0
    %754 = vmatprep.subr.mxu0 0.0
    %755 = vmatpush1.msra.mxu0 0.0
    %756 = vmatprep.subr.mxu0 0.0
    %757 = vmatpush1.msra.mxu0 0.0
    %758 = vmatprep.subr.mxu0 0.0
    %759 = vmatpush1.msra.mxu0 0.0
    %760 = vmatprep.subr.mxu0 0.0
    %761 = vmatpush1.msra.mxu0 0.0
    %762 = vmatprep.subr.mxu0 0.0
    %763 = vmatpush1.msra.mxu0 0.0
    %764 = vmatprep.subr.mxu0 0.0
    %765 = vmatpush1.msra.mxu0 0.0
    %766 = vmatprep.subr.mxu0 0.0
    %767 = vmatpush1.msra.mxu0 0.0
    %768 = vmatprep.subr.mxu0 0.0
    %769 = vmatpush1.msra.mxu0 0.0
    %770 = vmatprep.subr.mxu0 0.0
    %771 = vmatpush1.msra.mxu0 0.0
    %772 = vmatprep.subr.mxu0 0.0
    %773 = vmatpush1.msra.mxu0 0.0
    %774 = vmatprep.subr.mxu0 0.0
    %775 = vmatpush1.msra.mxu0 0.0
    %776 = vmatprep.subr.mxu0 0.0
    %777 = vmatpush1.msra.mxu0 0.0
    %778 = vmatprep.mubr.f32.mxu0 0.0
    %779 = vmatmul.mubr.f32.gmra.mrb[0].mxu0 %v712
    %v780 = vpop.f32.mrb[0].mxu0
    %v781 = vadd.f32 0.0, %v780
    %v782 = vpop.f32.mrb[0].mxu0
    %783 = vdwg.mxu0
    %v784 = vadd.f32 %v676, %v781
    %v785 = vxor.u32 %v784, 2147483648
    %v786 = vmul.f32 %v785, 1.442695
    %v787 = vpow.pop %v786
    %v788 = vadd.f32 %v787, 1.0
    %v789 = vrcp.pop %v788
    %v790 = vmul.f32 1.0, %v789
    %v792 = vlaneseq
    %v793 = vshrl.u32 %v792, 7
    %v794 = vsub.s32 0, %v793
    %v795 = vrot.slane %v96, %v794
    %796 = vrot.lane.b32.xlu0 %v795, 64
    %v797 = vpop.permute.xlu0 %796
    %v799 = vadd.f32 %v781, %v797
    %801 = vrot.lane.b32.xlu0 %v799, 64
    %v802 = vpop.permute.xlu0 %801
    %v804 = vmul.f32 %v790, %v802
    %806 = vrot.lane.b32.xlu0 %v804, 64
    %v807 = vpop.permute.xlu0 %806
    %v809 = vadd.f32 %v676, %v807
    %v810 = vtanh.pop %v809
    %v811 = vsub.f32 1.0, %v790
    %813 = vrot.lane.b32.xlu0 %v810, 96
    %v814 = vpop.permute.xlu0 %813
    %v816 = vmul.f32 %v811, %v814
    %v817 = vmul.f32 %v790, 0.0
    %v818 = vadd.f32 %v816, %v817
    %v820 = vlaneseq
    %v821 = vshrl.u32 %v820, 7
    %v822 = vsub.s32 0, %v821
    %v823 = vrot.slane %v95, %v822
    %826 = vrot.lane.b32.xlu0 %v818, 96
    %v827 = vpop.permute.xlu0 %826
    %v828 = vsel %vm710, %v827, 0
    %830 = vmatprep.subr.mxu0 0.0
    %831 = vmatpush1.msra.mxu0 %v90
    %832 = vmatprep.subr.mxu0 0.0
    %833 = vmatpush1.msra.mxu0 %v91
    %834 = vmatprep.subr.mxu0 0.0
    %835 = vmatpush1.msra.mxu0 %v92
    %836 = vmatprep.subr.mxu0 0.0
    %837 = vmatpush1.msra.mxu0 %v93
    %838 = vmatprep.subr.mxu0 0.0
    %839 = vmatpush1.msra.mxu0 0.0
    %840 = vmatprep.subr.mxu0 0.0
    %841 = vmatpush1.msra.mxu0 0.0
    %842 = vmatprep.subr.mxu0 0.0
    %843 = vmatpush1.msra.mxu0 0.0
    %844 = vmatprep.subr.mxu0 0.0
    %845 = vmatpush1.msra.mxu0 0.0
    %846 = vmatprep.subr.mxu0 0.0
    %847 = vmatpush1.msra.mxu0 0.0
    %848 = vmatprep.subr.mxu0 0.0
    %849 = vmatpush1.msra.mxu0 0.0
    %850 = vmatprep.subr.mxu0 0.0
    %851 = vmatpush1.msra.mxu0 0.0
    %852 = vmatprep.subr.mxu0 0.0
    %853 = vmatpush1.msra.mxu0 0.0
    %854 = vmatprep.subr.mxu0 0.0
    %855 = vmatpush1.msra.mxu0 0.0
    %856 = vmatprep.subr.mxu0 0.0
    %857 = vmatpush1.msra.mxu0 0.0
    %858 = vmatprep.subr.mxu0 0.0
    %859 = vmatpush1.msra.mxu0 0.0
    %860 = vmatprep.subr.mxu0 0.0
    %861 = vmatpush1.msra.mxu0 0.0
    %862 = vmatprep.subr.mxu0 0.0
    %863 = vmatpush1.msra.mxu0 0.0
    %864 = vmatprep.subr.mxu0 0.0
    %865 = vmatpush1.msra.mxu0 0.0
    %866 = vmatprep.subr.mxu0 0.0
    %867 = vmatpush1.msra.mxu0 0.0
    %868 = vmatprep.subr.mxu0 0.0
    %869 = vmatpush1.msra.mxu0 0.0
    %870 = vmatprep.subr.mxu0 0.0
    %871 = vmatpush1.msra.mxu0 0.0
    %872 = vmatprep.subr.mxu0 0.0
    %873 = vmatpush1.msra.mxu0 0.0
    %874 = vmatprep.subr.mxu0 0.0
    %875 = vmatpush1.msra.mxu0 0.0
    %876 = vmatprep.subr.mxu0 0.0
    %877 = vmatpush1.msra.mxu0 0.0
    %878 = vmatprep.subr.mxu0 0.0
    %879 = vmatpush1.msra.mxu0 0.0
    %880 = vmatprep.subr.mxu0 0.0
    %881 = vmatpush1.msra.mxu0 0.0
    %882 = vmatprep.subr.mxu0 0.0
    %883 = vmatpush1.msra.mxu0 0.0
    %884 = vmatprep.subr.mxu0 0.0
    %885 = vmatpush1.msra.mxu0 0.0
    %886 = vmatprep.subr.mxu0 0.0
    %887 = vmatpush1.msra.mxu0 0.0
    %888 = vmatprep.subr.mxu0 0.0
    %889 = vmatpush1.msra.mxu0 0.0
    %890 = vmatprep.subr.mxu0 0.0
    %891 = vmatpush1.msra.mxu0 0.0
    %892 = vmatprep.subr.mxu0 0.0
    %893 = vmatpush1.msra.mxu0 0.0
    %894 = vmatprep.mubr.f32.mxu0 0.0
    %895 = vmatmul.mubr.f32.gmra.mrb[0].mxu0 %v828
    %v896 = vpop.f32.mrb[0].mxu0
    %v897 = vadd.f32 %v823, %v896
    %v898 = vpop.f32.mrb[0].mxu0
    %899 = vdwg.mxu0
    %900 = vmatprep.subr.mxu0 0.0
    %901 = vmatpush1.msra.mxu0 %v86
    %902 = vmatprep.subr.mxu0 0.0
    %903 = vmatpush1.msra.mxu0 %v87
    %904 = vmatprep.subr.mxu0 0.0
    %905 = vmatpush1.msra.mxu0 %v88
    %906 = vmatprep.subr.mxu0 0.0
    %907 = vmatpush1.msra.mxu0 %v89
    %908 = vmatprep.subr.mxu0 0.0
    %909 = vmatpush1.msra.mxu0 0.0
    %910 = vmatprep.subr.mxu0 0.0
    %911 = vmatpush1.msra.mxu0 0.0
    %912 = vmatprep.subr.mxu0 0.0
    %913 = vmatpush1.msra.mxu0 0.0
    %914 = vmatprep.subr.mxu0 0.0
    %915 = vmatpush1.msra.mxu0 0.0
    %916 = vmatprep.subr.mxu0 0.0
    %917 = vmatpush1.msra.mxu0 0.0
    %918 = vmatprep.subr.mxu0 0.0
    %919 = vmatpush1.msra.mxu0 0.0
    %920 = vmatprep.subr.mxu0 0.0
    %921 = vmatpush1.msra.mxu0 0.0
    %922 = vmatprep.subr.mxu0 0.0
    %923 = vmatpush1.msra.mxu0 0.0
    %924 = vmatprep.subr.mxu0 0.0
    %925 = vmatpush1.msra.mxu0 0.0
    %926 = vmatprep.subr.mxu0 0.0
    %927 = vmatpush1.msra.mxu0 0.0
    %928 = vmatprep.subr.mxu0 0.0
    %929 = vmatpush1.msra.mxu0 0.0
    %930 = vmatprep.subr.mxu0 0.0
    %931 = vmatpush1.msra.mxu0 0.0
    %932 = vmatprep.subr.mxu0 0.0
    %933 = vmatpush1.msra.mxu0 0.0
    %934 = vmatprep.subr.mxu0 0.0
    %935 = vmatpush1.msra.mxu0 0.0
    %936 = vmatprep.subr.mxu0 0.0
    %937 = vmatpush1.msra.mxu0 0.0
    %938 = vmatprep.subr.mxu0 0.0
    %939 = vmatpush1.msra.mxu0 0.0
    %940 = vmatprep.subr.mxu0 0.0
    %941 = vmatpush1.msra.mxu0 0.0
    %942 = vmatprep.subr.mxu0 0.0
    %943 = vmatpush1.msra.mxu0 0.0
    %944 = vmatprep.subr.mxu0 0.0
    %945 = vmatpush1.msra.mxu0 0.0
    %946 = vmatprep.subr.mxu0 0.0
    %947 = vmatpush1.msra.mxu0 0.0
    %948 = vmatprep.subr.mxu0 0.0
    %949 = vmatpush1.msra.mxu0 0.0
    %950 = vmatprep.subr.mxu0 0.0
    %951 = vmatpush1.msra.mxu0 0.0
    %952 = vmatprep.subr.mxu0 0.0
    %953 = vmatpush1.msra.mxu0 0.0
    %954 = vmatprep.subr.mxu0 0.0
    %955 = vmatpush1.msra.mxu0 0.0
    %956 = vmatprep.subr.mxu0 0.0
    %957 = vmatpush1.msra.mxu0 0.0
    %958 = vmatprep.subr.mxu0 0.0
    %959 = vmatpush1.msra.mxu0 0.0
    %960 = vmatprep.subr.mxu0 0.0
    %961 = vmatpush1.msra.mxu0 0.0
    %962 = vmatprep.subr.mxu0 0.0
    %963 = vmatpush1.msra.mxu0 0.0
    %964 = vmatprep.mubr.f32.mxu0 0.0
    %965 = vmatmul.mubr.f32.gmra.mrb[0].mxu0 %v712
    %v966 = vpop.f32.mrb[0].mxu0
    %v967 = vadd.f32 0.0, %v966
    %v968 = vpop.f32.mrb[0].mxu0
    %969 = vdwg.mxu0
    %v970 = vadd.f32 %v897, %v967
    %v971 = vxor.u32 %v970, 2147483648
    %v972 = vmul.f32 %v971, 1.442695
    %v973 = vpow.pop %v972
    %v974 = vadd.f32 %v973, 1.0
    %v975 = vrcp.pop %v974
    %v976 = vmul.f32 1.0, %v975
    %v978 = vlaneseq
    %v979 = vshrl.u32 %v978, 7
    %v980 = vsub.s32 0, %v979
    %v981 = vrot.slane %v97, %v980
    %982 = vrot.lane.b32.xlu0 %v981, 64
    %v983 = vpop.permute.xlu0 %982
    %v985 = vadd.f32 %v967, %v983
    %987 = vrot.lane.b32.xlu0 %v985, 64
    %v988 = vpop.permute.xlu0 %987
    %v990 = vmul.f32 %v976, %v988
    %992 = vrot.lane.b32.xlu0 %v990, 64
    %v993 = vpop.permute.xlu0 %992
    %v995 = vadd.f32 %v897, %v993
    %v996 = vtanh.pop %v995
    %v997 = vsub.f32 1.0, %v976
    %999 = vrot.lane.b32.xlu0 %v996, 96
    %v1000 = vpop.permute.xlu0 %999
    %v1002 = vmul.f32 %v997, %v1000
    %v1003 = vmul.f32 %v976, 0.0
    %v1004 = vadd.f32 %v1002, %v1003
    %v1006 = vlaneseq
    %v1007 = vshrl.u32 %v1006, 7
    %v1008 = vsub.s32 0, %v1007
    %v1009 = vrot.slane %v102, %v1008
    %1012 = vrot.lane.b32.xlu0 %v1004, 96
    %v1013 = vpop.permute.xlu0 %1012
    %v1014 = vsel %vm710, %v1013, 0
    %1016 = vmatprep.subr.mxu0 0.0
    %1017 = vmatpush1.msra.mxu0 %v98
    %1018 = vmatprep.subr.mxu0 0.0
    %1019 = vmatpush1.msra.mxu0 %v99
    %1020 = vmatprep.subr.mxu0 0.0
    %1021 = vmatpush1.msra.mxu0 %v100
    %1022 = vmatprep.subr.mxu0 0.0
    %1023 = vmatpush1.msra.mxu0 %v101
    %1024 = vmatprep.subr.mxu0 0.0
    %1025 = vmatpush1.msra.mxu0 0.0
    %1026 = vmatprep.subr.mxu0 0.0
    %1027 = vmatpush1.msra.mxu0 0.0
    %1028 = vmatprep.subr.mxu0 0.0
    %1029 = vmatpush1.msra.mxu0 0.0
    %1030 = vmatprep.subr.mxu0 0.0
    %1031 = vmatpush1.msra.mxu0 0.0
    %1032 = vmatprep.subr.mxu0 0.0
    %1033 = vmatpush1.msra.mxu0 0.0
    %1034 = vmatprep.subr.mxu0 0.0
    %1035 = vmatpush1.msra.mxu0 0.0
    %1036 = vmatprep.subr.mxu0 0.0
    %1037 = vmatpush1.msra.mxu0 0.0
    %1038 = vmatprep.subr.mxu0 0.0
    %1039 = vmatpush1.msra.mxu0 0.0
    %1040 = vmatprep.subr.mxu0 0.0
    %1041 = vmatpush1.msra.mxu0 0.0
    %1042 = vmatprep.subr.mxu0 0.0
    %1043 = vmatpush1.msra.mxu0 0.0
    %1044 = vmatprep.subr.mxu0 0.0
    %1045 = vmatpush1.msra.mxu0 0.0
    %1046 = vmatprep.subr.mxu0 0.0
    %1047 = vmatpush1.msra.mxu0 0.0
    %1048 = vmatprep.subr.mxu0 0.0
    %1049 = vmatpush1.msra.mxu0 0.0
    %1050 = vmatprep.subr.mxu0 0.0
    %1051 = vmatpush1.msra.mxu0 0.0
    %1052 = vmatprep.subr.mxu0 0.0
    %1053 = vmatpush1.msra.mxu0 0.0
    %1054 = vmatprep.subr.mxu0 0.0
    %1055 = vmatpush1.msra.mxu0 0.0
    %1056 = vmatprep.subr.mxu0 0.0
    %1057 = vmatpush1.msra.mxu0 0.0
    %1058 = vmatprep.subr.mxu0 0.0
    %1059 = vmatpush1.msra.mxu0 0.0
    %1060 = vmatprep.subr.mxu0 0.0
    %1061 = vmatpush1.msra.mxu0 0.0
    %1062 = vmatprep.subr.mxu0 0.0
    %1063 = vmatpush1.msra.mxu0 0.0
    %1064 = vmatprep.subr.mxu0 0.0
    %1065 = vmatpush1.msra.mxu0 0.0
    %1066 = vmatprep.subr.mxu0 0.0
    %1067 = vmatpush1.msra.mxu0 0.0
    %1068 = vmatprep.subr.mxu0 0.0
    %1069 = vmatpush1.msra.mxu0 0.0
    %1070 = vmatprep.subr.mxu0 0.0
    %1071 = vmatpush1.msra.mxu0 0.0
    %1072 = vmatprep.subr.mxu0 0.0
    %1073 = vmatpush1.msra.mxu0 0.0
    %1074 = vmatprep.subr.mxu0 0.0
    %1075 = vmatpush1.msra.mxu0 0.0
    %1076 = vmatprep.subr.mxu0 0.0
    %1077 = vmatpush1.msra.mxu0 0.0
    %1078 = vmatprep.subr.mxu0 0.0
    %1079 = vmatpush1.msra.mxu0 0.0
    %1080 = vmatprep.mubr.f32.mxu0 0.0
    %1081 = vmatmul.mubr.f32.gmra.mrb[0].mxu0 %v1014
    %v1082 = vpop.f32.mrb[0].mxu0
    %v1083 = vadd.f32 %v1009, %v1082
    %v1084 = vpop.f32.mrb[0].mxu0
    %1085 = vdwg.mxu0
    %1086 = vst.msk [vmem:[%s14 + $0x8] sm:$0xff] %vm443, %v1083
    %1087 = vmatprep.subr.mxu0 0.0
    %1088 = vmatpush1.msra.mxu0 %v82
    %1089 = vmatprep.subr.mxu0 0.0
    %1090 = vmatpush1.msra.mxu0 %v83
    %1091 = vmatprep.subr.mxu0 0.0
    %1092 = vmatpush1.msra.mxu0 %v84
    %1093 = vmatprep.subr.mxu0 0.0
    %1094 = vmatpush1.msra.mxu0 %v85
    %1095 = vmatprep.subr.mxu0 0.0
    %1096 = vmatpush1.msra.mxu0 0.0
    %1097 = vmatprep.subr.mxu0 0.0
    %1098 = vmatpush1.msra.mxu0 0.0
    %1099 = vmatprep.subr.mxu0 0.0
    %1100 = vmatpush1.msra.mxu0 0.0
    %1101 = vmatprep.subr.mxu0 0.0
    %1102 = vmatpush1.msra.mxu0 0.0
    %1103 = vmatprep.subr.mxu0 0.0
    %1104 = vmatpush1.msra.mxu0 0.0
    %1105 = vmatprep.subr.mxu0 0.0
    %1106 = vmatpush1.msra.mxu0 0.0
    %1107 = vmatprep.subr.mxu0 0.0
    %1108 = vmatpush1.msra.mxu0 0.0
    %1109 = vmatprep.subr.mxu0 0.0
    %1110 = vmatpush1.msra.mxu0 0.0
    %1111 = vmatprep.subr.mxu0 0.0
    %1112 = vmatpush1.msra.mxu0 0.0
    %1113 = vmatprep.subr.mxu0 0.0
    %1114 = vmatpush1.msra.mxu0 0.0
    %1115 = vmatprep.subr.mxu0 0.0
    %1116 = vmatpush1.msra.mxu0 0.0
    %1117 = vmatprep.subr.mxu0 0.0
    %1118 = vmatpush1.msra.mxu0 0.0
    %1119 = vmatprep.subr.mxu0 0.0
    %1120 = vmatpush1.msra.mxu0 0.0
    %1121 = vmatprep.subr.mxu0 0.0
    %1122 = vmatpush1.msra.mxu0 0.0
    %1123 = vmatprep.subr.mxu0 0.0
    %1124 = vmatpush1.msra.mxu0 0.0
    %1125 = vmatprep.subr.mxu0 0.0
    %1126 = vmatpush1.msra.mxu0 0.0
    %1127 = vmatprep.subr.mxu0 0.0
    %1128 = vmatpush1.msra.mxu0 0.0
    %1129 = vmatprep.subr.mxu0 0.0
    %1130 = vmatpush1.msra.mxu0 0.0
    %1131 = vmatprep.subr.mxu0 0.0
    %1132 = vmatpush1.msra.mxu0 0.0
    %1133 = vmatprep.subr.mxu0 0.0
    %1134 = vmatpush1.msra.mxu0 0.0
    %1135 = vmatprep.subr.mxu0 0.0
    %1136 = vmatpush1.msra.mxu0 0.0
    %1137 = vmatprep.subr.mxu0 0.0
    %1138 = vmatpush1.msra.mxu0 0.0
    %1139 = vmatprep.subr.mxu0 0.0
    %1140 = vmatpush1.msra.mxu0 0.0
    %1141 = vmatprep.subr.mxu0 0.0
    %1142 = vmatpush1.msra.mxu0 0.0
    %1143 = vmatprep.subr.mxu0 0.0
    %1144 = vmatpush1.msra.mxu0 0.0
    %1145 = vmatprep.subr.mxu0 0.0
    %1146 = vmatpush1.msra.mxu0 0.0
    %1147 = vmatprep.subr.mxu0 0.0
    %1148 = vmatpush1.msra.mxu0 0.0
    %1149 = vmatprep.subr.mxu0 0.0
    %1150 = vmatpush1.msra.mxu0 0.0
    %1151 = vmatprep.mubr.f32.mxu0 0.0
    %1152 = vmatmul.mubr.f32.gmra.mrb[0].mxu0 %v828
    %v1153 = vpop.f32.mrb[0].mxu0
    %v1154 = vadd.f32 0.0, %v1153
    %v1155 = vpop.f32.mrb[0].mxu0
    %1156 = vdwg.mxu0
    %v1157 = vadd.f32 %v681, %v1154
    %v1158 = vxor.u32 %v1157, 2147483648
    %v1159 = vmul.f32 %v1158, 1.442695
    %v1160 = vpow.pop %v1159
    %v1161 = vadd.f32 %v1160, 1.0
    %v1162 = vrcp.pop %v1161
    %v1163 = vmul.f32 1.0, %v1162
    %v1164 = vadd.f32 %v1154, %v797
    %1166 = vrot.lane.b32.xlu0 %v1164, 64
    %v1167 = vpop.permute.xlu0 %1166
    %v1169 = vmul.f32 %v1163, %v1167
    %1171 = vrot.lane.b32.xlu0 %v1169, 64
    %v1172 = vpop.permute.xlu0 %1171
    %v1174 = vadd.f32 %v681, %v1172
    %v1175 = vtanh.pop %v1174
    %v1176 = vsub.f32 1.0, %v1163
    %1178 = vrot.lane.b32.xlu0 %v1175, 96
    %v1179 = vpop.permute.xlu0 %1178
    %v1181 = vmul.f32 %v1176, %v1179
    %v1182 = vmul.f32 %v1163, %v818
    %v1183 = vadd.f32 %v1181, %v1182
    %1185 = vrot.lane.b32.xlu0 %v1183, 96
    %v1186 = vpop.permute.xlu0 %1185
    %v1187 = vsel %vm710, %v1186, 0
    %1189 = vmatprep.subr.mxu0 0.0
    %1190 = vmatpush1.msra.mxu0 %v90
    %1191 = vmatprep.subr.mxu0 0.0
    %1192 = vmatpush1.msra.mxu0 %v91
    %1193 = vmatprep.subr.mxu0 0.0
    %1194 = vmatpush1.msra.mxu0 %v92
    %1195 = vmatprep.subr.mxu0 0.0
    %1196 = vmatpush1.msra.mxu0 %v93
    %1197 = vmatprep.subr.mxu0 0.0
    %1198 = vmatpush1.msra.mxu0 0.0
    %1199 = vmatprep.subr.mxu0 0.0
    %1200 = vmatpush1.msra.mxu0 0.0
    %1201 = vmatprep.subr.mxu0 0.0
    %1202 = vmatpush1.msra.mxu0 0.0
    %1203 = vmatprep.subr.mxu0 0.0
    %1204 = vmatpush1.msra.mxu0 0.0
    %1205 = vmatprep.subr.mxu0 0.0
    %1206 = vmatpush1.msra.mxu0 0.0
    %1207 = vmatprep.subr.mxu0 0.0
    %1208 = vmatpush1.msra.mxu0 0.0
    %1209 = vmatprep.subr.mxu0 0.0
    %1210 = vmatpush1.msra.mxu0 0.0
    %1211 = vmatprep.subr.mxu0 0.0
    %1212 = vmatpush1.msra.mxu0 0.0
    %1213 = vmatprep.subr.mxu0 0.0
    %1214 = vmatpush1.msra.mxu0 0.0
    %1215 = vmatprep.subr.mxu0 0.0
    %1216 = vmatpush1.msra.mxu0 0.0
    %1217 = vmatprep.subr.mxu0 0.0
    %1218 = vmatpush1.msra.mxu0 0.0
    %1219 = vmatprep.subr.mxu0 0.0
    %1220 = vmatpush1.msra.mxu0 0.0
    %1221 = vmatprep.subr.mxu0 0.0
    %1222 = vmatpush1.msra.mxu0 0.0
    %1223 = vmatprep.subr.mxu0 0.0
    %1224 = vmatpush1.msra.mxu0 0.0
    %1225 = vmatprep.subr.mxu0 0.0
    %1226 = vmatpush1.msra.mxu0 0.0
    %1227 = vmatprep.subr.mxu0 0.0
    %1228 = vmatpush1.msra.mxu0 0.0
    %1229 = vmatprep.subr.mxu0 0.0
    %1230 = vmatpush1.msra.mxu0 0.0
    %1231 = vmatprep.subr.mxu0 0.0
    %1232 = vmatpush1.msra.mxu0 0.0
    %1233 = vmatprep.subr.mxu0 0.0
    %1234 = vmatpush1.msra.mxu0 0.0
    %1235 = vmatprep.subr.mxu0 0.0
    %1236 = vmatpush1.msra.mxu0 0.0
    %1237 = vmatprep.subr.mxu0 0.0
    %1238 = vmatpush1.msra.mxu0 0.0
    %1239 = vmatprep.subr.mxu0 0.0
    %1240 = vmatpush1.msra.mxu0 0.0
    %1241 = vmatprep.subr.mxu0 0.0
    %1242 = vmatpush1.msra.mxu0 0.0
    %1243 = vmatprep.subr.mxu0 0.0
    %1244 = vmatpush1.msra.mxu0 0.0
    %1245 = vmatprep.subr.mxu0 0.0
    %1246 = vmatpush1.msra.mxu0 0.0
    %1247 = vmatprep.subr.mxu0 0.0
    %1248 = vmatpush1.msra.mxu0 0.0
    %1249 = vmatprep.subr.mxu0 0.0
    %1250 = vmatpush1.msra.mxu0 0.0
    %1251 = vmatprep.subr.mxu0 0.0
    %1252 = vmatpush1.msra.mxu0 0.0
    %1253 = vmatprep.mubr.f32.mxu0 0.0
    %1254 = vmatmul.mubr.f32.gmra.mrb[0].mxu0 %v1187
    %v1255 = vpop.f32.mrb[0].mxu0
    %v1256 = vadd.f32 %v823, %v1255
    %v1257 = vpop.f32.mrb[0].mxu0
    %1258 = vdwg.mxu0
    %1259 = vmatprep.subr.mxu0 0.0
    %1260 = vmatpush1.msra.mxu0 %v86
    %1261 = vmatprep.subr.mxu0 0.0
    %1262 = vmatpush1.msra.mxu0 %v87
    %1263 = vmatprep.subr.mxu0 0.0
    %1264 = vmatpush1.msra.mxu0 %v88
    %1265 = vmatprep.subr.mxu0 0.0
    %1266 = vmatpush1.msra.mxu0 %v89
    %1267 = vmatprep.subr.mxu0 0.0
    %1268 = vmatpush1.msra.mxu0 0.0
    %1269 = vmatprep.subr.mxu0 0.0
    %1270 = vmatpush1.msra.mxu0 0.0
    %1271 = vmatprep.subr.mxu0 0.0
    %1272 = vmatpush1.msra.mxu0 0.0
    %1273 = vmatprep.subr.mxu0 0.0
    %1274 = vmatpush1.msra.mxu0 0.0
    %1275 = vmatprep.subr.mxu0 0.0
    %1276 = vmatpush1.msra.mxu0 0.0
    %1277 = vmatprep.subr.mxu0 0.0
    %1278 = vmatpush1.msra.mxu0 0.0
    %1279 = vmatprep.subr.mxu0 0.0
    %1280 = vmatpush1.msra.mxu0 0.0
    %1281 = vmatprep.subr.mxu0 0.0
    %1282 = vmatpush1.msra.mxu0 0.0
    %1283 = vmatprep.subr.mxu0 0.0
    %1284 = vmatpush1.msra.mxu0 0.0
    %1285 = vmatprep.subr.mxu0 0.0
    %1286 = vmatpush1.msra.mxu0 0.0
    %1287 = vmatprep.subr.mxu0 0.0
    %1288 = vmatpush1.msra.mxu0 0.0
    %1289 = vmatprep.subr.mxu0 0.0
    %1290 = vmatpush1.msra.mxu0 0.0
    %1291 = vmatprep.subr.mxu0 0.0
    %1292 = vmatpush1.msra.mxu0 0.0
    %1293 = vmatprep.subr.mxu0 0.0
    %1294 = vmatpush1.msra.mxu0 0.0
    %1295 = vmatprep.subr.mxu0 0.0
    %1296 = vmatpush1.msra.mxu0 0.0
    %1297 = vmatprep.subr.mxu0 0.0
    %1298 = vmatpush1.msra.mxu0 0.0
    %1299 = vmatprep.subr.mxu0 0.0
    %1300 = vmatpush1.msra.mxu0 0.0
    %1301 = vmatprep.subr.mxu0 0.0
    %1302 = vmatpush1.msra.mxu0 0.0
    %1303 = vmatprep.subr.mxu0 0.0
    %1304 = vmatpush1.msra.mxu0 0.0
    %1305 = vmatprep.subr.mxu0 0.0
    %1306 = vmatpush1.msra.mxu0 0.0
    %1307 = vmatprep.subr.mxu0 0.0
    %1308 = vmatpush1.msra.mxu0 0.0
    %1309 = vmatprep.subr.mxu0 0.0
    %1310 = vmatpush1.msra.mxu0 0.0
    %1311 = vmatprep.subr.mxu0 0.0
    %1312 = vmatpush1.msra.mxu0 0.0
    %1313 = vmatprep.subr.mxu0 0.0
    %1314 = vmatpush1.msra.mxu0 0.0
    %1315 = vmatprep.subr.mxu0 0.0
    %1316 = vmatpush1.msra.mxu0 0.0
    %1317 = vmatprep.subr.mxu0 0.0
    %1318 = vmatpush1.msra.mxu0 0.0
    %1319 = vmatprep.subr.mxu0 0.0
    %1320 = vmatpush1.msra.mxu0 0.0
    %1321 = vmatprep.subr.mxu0 0.0
    %1322 = vmatpush1.msra.mxu0 0.0
    %1323 = vmatprep.mubr.f32.mxu0 0.0
    %1324 = vmatmul.mubr.f32.gmra.mrb[0].mxu0 %v1014
    %v1325 = vpop.f32.mrb[0].mxu0
    %v1326 = vadd.f32 0.0, %v1325
    %v1327 = vpop.f32.mrb[0].mxu0
    %1328 = vdwg.mxu0
    %v1329 = vadd.f32 %v1256, %v1326
    %v1330 = vxor.u32 %v1329, 2147483648
    %v1331 = vmul.f32 %v1330, 1.442695
    %v1332 = vpow.pop %v1331
    %v1333 = vadd.f32 %v1332, 1.0
    %v1334 = vrcp.pop %v1333
    %v1335 = vmul.f32 1.0, %v1334
    %v1336 = vadd.f32 %v1326, %v983
    %1338 = vrot.lane.b32.xlu0 %v1336, 64
    %v1339 = vpop.permute.xlu0 %1338
    %v1341 = vmul.f32 %v1335, %v1339
    %1343 = vrot.lane.b32.xlu0 %v1341, 64
    %v1344 = vpop.permute.xlu0 %1343
    %v1346 = vadd.f32 %v1256, %v1344
    %v1347 = vtanh.pop %v1346
    %v1348 = vsub.f32 1.0, %v1335
    %1350 = vrot.lane.b32.xlu0 %v1347, 96
    %v1351 = vpop.permute.xlu0 %1350
    %v1353 = vmul.f32 %v1348, %v1351
    %v1354 = vmul.f32 %v1335, %v1004
    %v1355 = vadd.f32 %v1353, %v1354
    %1357 = vrot.lane.b32.xlu0 %v1355, 96
    %v1358 = vpop.permute.xlu0 %1357
    %v1359 = vsel %vm710, %v1358, 0
    %1361 = vmatprep.subr.mxu0 0.0
    %1362 = vmatpush1.msra.mxu0 %v98
    %1363 = vmatprep.subr.mxu0 0.0
    %1364 = vmatpush1.msra.mxu0 %v99
    %1365 = vmatprep.subr.mxu0 0.0
    %1366 = vmatpush1.msra.mxu0 %v100
    %1367 = vmatprep.subr.mxu0 0.0
    %1368 = vmatpush1.msra.mxu0 %v101
    %1369 = vmatprep.subr.mxu0 0.0
    %1370 = vmatpush1.msra.mxu0 0.0
    %1371 = vmatprep.subr.mxu0 0.0
    %1372 = vmatpush1.msra.mxu0 0.0
    %1373 = vmatprep.subr.mxu0 0.0
    %1374 = vmatpush1.msra.mxu0 0.0
    %1375 = vmatprep.subr.mxu0 0.0
    %1376 = vmatpush1.msra.mxu0 0.0
    %1377 = vmatprep.subr.mxu0 0.0
    %1378 = vmatpush1.msra.mxu0 0.0
    %1379 = vmatprep.subr.mxu0 0.0
    %1380 = vmatpush1.msra.mxu0 0.0
    %1381 = vmatprep.subr.mxu0 0.0
    %1382 = vmatpush1.msra.mxu0 0.0
    %1383 = vmatprep.subr.mxu0 0.0
    %1384 = vmatpush1.msra.mxu0 0.0
    %1385 = vmatprep.subr.mxu0 0.0
    %1386 = vmatpush1.msra.mxu0 0.0
    %1387 = vmatprep.subr.mxu0 0.0
    %1388 = vmatpush1.msra.mxu0 0.0
    %1389 = vmatprep.subr.mxu0 0.0
    %1390 = vmatpush1.msra.mxu0 0.0
    %1391 = vmatprep.subr.mxu0 0.0
    %1392 = vmatpush1.msra.mxu0 0.0
    %1393 = vmatprep.subr.mxu0 0.0
    %1394 = vmatpush1.msra.mxu0 0.0
    %1395 = vmatprep.subr.mxu0 0.0
    %1396 = vmatpush1.msra.mxu0 0.0
    %1397 = vmatprep.subr.mxu0 0.0
    %1398 = vmatpush1.msra.mxu0 0.0
    %1399 = vmatprep.subr.mxu0 0.0
    %1400 = vmatpush1.msra.mxu0 0.0
    %1401 = vmatprep.subr.mxu0 0.0
    %1402 = vmatpush1.msra.mxu0 0.0
    %1403 = vmatprep.subr.mxu0 0.0
    %1404 = vmatpush1.msra.mxu0 0.0
    %1405 = vmatprep.subr.mxu0 0.0
    %1406 = vmatpush1.msra.mxu0 0.0
    %1407 = vmatprep.subr.mxu0 0.0
    %1408 = vmatpush1.msra.mxu0 0.0
    %1409 = vmatprep.subr.mxu0 0.0
    %1410 = vmatpush1.msra.mxu0 0.0
    %1411 = vmatprep.subr.mxu0 0.0
    %1412 = vmatpush1.msra.mxu0 0.0
    %1413 = vmatprep.subr.mxu0 0.0
    %1414 = vmatpush1.msra.mxu0 0.0
    %1415 = vmatprep.subr.mxu0 0.0
    %1416 = vmatpush1.msra.mxu0 0.0
    %1417 = vmatprep.subr.mxu0 0.0
    %1418 = vmatpush1.msra.mxu0 0.0
    %1419 = vmatprep.subr.mxu0 0.0
    %1420 = vmatpush1.msra.mxu0 0.0
    %1421 = vmatprep.subr.mxu0 0.0
    %1422 = vmatpush1.msra.mxu0 0.0
    %1423 = vmatprep.subr.mxu0 0.0
    %1424 = vmatpush1.msra.mxu0 0.0
    %1425 = vmatprep.mubr.f32.mxu0 0.0
    %1426 = vmatmul.mubr.f32.gmra.mrb[0].mxu0 %v1359
    %v1427 = vpop.f32.mrb[0].mxu0
    %v1428 = vadd.f32 %v1009, %v1427
    %v1429 = vpop.f32.mrb[0].mxu0
    %1430 = vdwg.mxu0
    %1431 = vst.msk [vmem:[%s14 + $0x10] sm:$0xff] %vm443, %v1428
    %1432 = vmatprep.subr.mxu0 0.0
    %1433 = vmatpush1.msra.mxu0 %v82
    %1434 = vmatprep.subr.mxu0 0.0
    %1435 = vmatpush1.msra.mxu0 %v83
    %1436 = vmatprep.subr.mxu0 0.0
    %1437 = vmatpush1.msra.mxu0 %v84
    %1438 = vmatprep.subr.mxu0 0.0
    %1439 = vmatpush1.msra.mxu0 %v85
    %1440 = vmatprep.subr.mxu0 0.0
    %1441 = vmatpush1.msra.mxu0 0.0
    %1442 = vmatprep.subr.mxu0 0.0
    %1443 = vmatpush1.msra.mxu0 0.0
    %1444 = vmatprep.subr.mxu0 0.0
    %1445 = vmatpush1.msra.mxu0 0.0
    %1446 = vmatprep.subr.mxu0 0.0
    %1447 = vmatpush1.msra.mxu0 0.0
    %1448 = vmatprep.subr.mxu0 0.0
    %1449 = vmatpush1.msra.mxu0 0.0
    %1450 = vmatprep.subr.mxu0 0.0
    %1451 = vmatpush1.msra.mxu0 0.0
    %1452 = vmatprep.subr.mxu0 0.0
    %1453 = vmatpush1.msra.mxu0 0.0
    %1454 = vmatprep.subr.mxu0 0.0
    %1455 = vmatpush1.msra.mxu0 0.0
    %1456 = vmatprep.subr.mxu0 0.0
    %1457 = vmatpush1.msra.mxu0 0.0
    %1458 = vmatprep.subr.mxu0 0.0
    %1459 = vmatpush1.msra.mxu0 0.0
    %1460 = vmatprep.subr.mxu0 0.0
    %1461 = vmatpush1.msra.mxu0 0.0
    %1462 = vmatprep.subr.mxu0 0.0
    %1463 = vmatpush1.msra.mxu0 0.0
    %1464 = vmatprep.subr.mxu0 0.0
    %1465 = vmatpush1.msra.mxu0 0.0
    %1466 = vmatprep.subr.mxu0 0.0
    %1467 = vmatpush1.msra.mxu0 0.0
    %1468 = vmatprep.subr.mxu0 0.0
    %1469 = vmatpush1.msra.mxu0 0.0
    %1470 = vmatprep.subr.mxu0 0.0
    %1471 = vmatpush1.msra.mxu0 0.0
    %1472 = vmatprep.subr.mxu0 0.0
    %1473 = vmatpush1.msra.mxu0 0.0
    %1474 = vmatprep.subr.mxu0 0.0
    %1475 = vmatpush1.msra.mxu0 0.0
    %1476 = vmatprep.subr.mxu0 0.0
    %1477 = vmatpush1.msra.mxu0 0.0
    %1478 = vmatprep.subr.mxu0 0.0
    %1479 = vmatpush1.msra.mxu0 0.0
    %1480 = vmatprep.subr.mxu0 0.0
    %1481 = vmatpush1.msra.mxu0 0.0
    %1482 = vmatprep.subr.mxu0 0.0
    %1483 = vmatpush1.msra.mxu0 0.0
    %1484 = vmatprep.subr.mxu0 0.0
    %1485 = vmatpush1.msra.mxu0 0.0
    %1486 = vmatprep.subr.mxu0 0.0
    %1487 = vmatpush1.msra.mxu0 0.0
    %1488 = vmatprep.subr.mxu0 0.0
    %1489 = vmatpush1.msra.mxu0 0.0
    %1490 = vmatprep.subr.mxu0 0.0
    %1491 = vmatpush1.msra.mxu0 0.0
    %1492 = vmatprep.subr.mxu0 0.0
    %1493 = vmatpush1.msra.mxu0 0.0
    %1494 = vmatprep.subr.mxu0 0.0
    %1495 = vmatpush1.msra.mxu0 0.0
    %1496 = vmatprep.mubr.f32.mxu0 0.0
    %1497 = vmatmul.mubr.f32.gmra.mrb[0].mxu0 %v1187
    %v1498 = vpop.f32.mrb[0].mxu0
    %v1499 = vadd.f32 0.0, %v1498
    %v1500 = vpop.f32.mrb[0].mxu0
    %1501 = vdwg.mxu0
    %v1502 = vadd.f32 %v686, %v1499
    %v1503 = vxor.u32 %v1502, 2147483648
    %v1504 = vmul.f32 %v1503, 1.442695
    %v1505 = vpow.pop %v1504
    %v1506 = vadd.f32 %v1505, 1.0
    %v1507 = vrcp.pop %v1506
    %v1508 = vmul.f32 1.0, %v1507
    %v1509 = vadd.f32 %v1499, %v797
    %1511 = vrot.lane.b32.xlu0 %v1509, 64
    %v1512 = vpop.permute.xlu0 %1511
    %v1514 = vmul.f32 %v1508, %v1512
    %1516 = vrot.lane.b32.xlu0 %v1514, 64
    %v1517 = vpop.permute.xlu0 %1516
    %v1519 = vadd.f32 %v686, %v1517
    %v1520 = vtanh.pop %v1519
    %v1521 = vsub.f32 1.0, %v1508
    %1523 = vrot.lane.b32.xlu0 %v1520, 96
    %v1524 = vpop.permute.xlu0 %1523
    %v1526 = vmul.f32 %v1521, %v1524
    %v1527 = vmul.f32 %v1508, %v1183
    %v1528 = vadd.f32 %v1526, %v1527
    %1530 = vrot.lane.b32.xlu0 %v1528, 96
    %v1531 = vpop.permute.xlu0 %1530
    %v1532 = vsel %vm710, %v1531, 0
    %1534 = vmatprep.subr.mxu0 0.0
    %1535 = vmatpush1.msra.mxu0 %v90
    %1536 = vmatprep.subr.mxu0 0.0
    %1537 = vmatpush1.msra.mxu0 %v91
    %1538 = vmatprep.subr.mxu0 0.0
    %1539 = vmatpush1.msra.mxu0 %v92
    %1540 = vmatprep.subr.mxu0 0.0
    %1541 = vmatpush1.msra.mxu0 %v93
    %1542 = vmatprep.subr.mxu0 0.0
    %1543 = vmatpush1.msra.mxu0 0.0
    %1544 = vmatprep.subr.mxu0 0.0
    %1545 = vmatpush1.msra.mxu0 0.0
    %1546 = vmatprep.subr.mxu0 0.0
    %1547 = vmatpush1.msra.mxu0 0.0
    %1548 = vmatprep.subr.mxu0 0.0
    %1549 = vmatpush1.msra.mxu0 0.0
    %1550 = vmatprep.subr.mxu0 0.0
    %1551 = vmatpush1.msra.mxu0 0.0
    %1552 = vmatprep.subr.mxu0 0.0
    %1553 = vmatpush1.msra.mxu0 0.0
    %1554 = vmatprep.subr.mxu0 0.0
    %1555 = vmatpush1.msra.mxu0 0.0
    %1556 = vmatprep.subr.mxu0 0.0
    %1557 = vmatpush1.msra.mxu0 0.0
    %1558 = vmatprep.subr.mxu0 0.0
    %1559 = vmatpush1.msra.mxu0 0.0
    %1560 = vmatprep.subr.mxu0 0.0
    %1561 = vmatpush1.msra.mxu0 0.0
    %1562 = vmatprep.subr.mxu0 0.0
    %1563 = vmatpush1.msra.mxu0 0.0
    %1564 = vmatprep.subr.mxu0 0.0
    %1565 = vmatpush1.msra.mxu0 0.0
    %1566 = vmatprep.subr.mxu0 0.0
    %1567 = vmatpush1.msra.mxu0 0.0
    %1568 = vmatprep.subr.mxu0 0.0
    %1569 = vmatpush1.msra.mxu0 0.0
    %1570 = vmatprep.subr.mxu0 0.0
    %1571 = vmatpush1.msra.mxu0 0.0
    %1572 = vmatprep.subr.mxu0 0.0
    %1573 = vmatpush1.msra.mxu0 0.0
    %1574 = vmatprep.subr.mxu0 0.0
    %1575 = vmatpush1.msra.mxu0 0.0
    %1576 = vmatprep.subr.mxu0 0.0
    %1577 = vmatpush1.msra.mxu0 0.0
    %1578 = vmatprep.subr.mxu0 0.0
    %1579 = vmatpush1.msra.mxu0 0.0
    %1580 = vmatprep.subr.mxu0 0.0
    %1581 = vmatpush1.msra.mxu0 0.0
    %1582 = vmatprep.subr.mxu0 0.0
    %1583 = vmatpush1.msra.mxu0 0.0
    %1584 = vmatprep.subr.mxu0 0.0
    %1585 = vmatpush1.msra.mxu0 0.0
    %1586 = vmatprep.subr.mxu0 0.0
    %1587 = vmatpush1.msra.mxu0 0.0
    %1588 = vmatprep.subr.mxu0 0.0
    %1589 = vmatpush1.msra.mxu0 0.0
    %1590 = vmatprep.subr.mxu0 0.0
    %1591 = vmatpush1.msra.mxu0 0.0
    %1592 = vmatprep.subr.mxu0 0.0
    %1593 = vmatpush1.msra.mxu0 0.0
    %1594 = vmatprep.subr.mxu0 0.0
    %1595 = vmatpush1.msra.mxu0 0.0
    %1596 = vmatprep.subr.mxu0 0.0
    %1597 = vmatpush1.msra.mxu0 0.0
    %1598 = vmatprep.mubr.f32.mxu0 0.0
    %1599 = vmatmul.mubr.f32.gmra.mrb[0].mxu0 %v1532
    %v1600 = vpop.f32.mrb[0].mxu0
    %v1601 = vadd.f32 %v823, %v1600
    %v1602 = vpop.f32.mrb[0].mxu0
    %1603 = vdwg.mxu0
    %1604 = vmatprep.subr.mxu0 0.0
    %1605 = vmatpush1.msra.mxu0 %v86
    %1606 = vmatprep.subr.mxu0 0.0
    %1607 = vmatpush1.msra.mxu0 %v87
    %1608 = vmatprep.subr.mxu0 0.0
    %1609 = vmatpush1.msra.mxu0 %v88
    %1610 = vmatprep.subr.mxu0 0.0
    %1611 = vmatpush1.msra.mxu0 %v89
    %1612 = vmatprep.subr.mxu0 0.0
    %1613 = vmatpush1.msra.mxu0 0.0
    %1614 = vmatprep.subr.mxu0 0.0
    %1615 = vmatpush1.msra.mxu0 0.0
    %1616 = vmatprep.subr.mxu0 0.0
    %1617 = vmatpush1.msra.mxu0 0.0
    %1618 = vmatprep.subr.mxu0 0.0
    %1619 = vmatpush1.msra.mxu0 0.0
    %1620 = vmatprep.subr.mxu0 0.0
    %1621 = vmatpush1.msra.mxu0 0.0
    %1622 = vmatprep.subr.mxu0 0.0
    %1623 = vmatpush1.msra.mxu0 0.0
    %1624 = vmatprep.subr.mxu0 0.0
    %1625 = vmatpush1.msra.mxu0 0.0
    %1626 = vmatprep.subr.mxu0 0.0
    %1627 = vmatpush1.msra.mxu0 0.0
    %1628 = vmatprep.subr.mxu0 0.0
    %1629 = vmatpush1.msra.mxu0 0.0
    %1630 = vmatprep.subr.mxu0 0.0
    %1631 = vmatpush1.msra.mxu0 0.0
    %1632 = vmatprep.subr.mxu0 0.0
    %1633 = vmatpush1.msra.mxu0 0.0
    %1634 = vmatprep.subr.mxu0 0.0
    %1635 = vmatpush1.msra.mxu0 0.0
    %1636 = vmatprep.subr.mxu0 0.0
    %1637 = vmatpush1.msra.mxu0 0.0
    %1638 = vmatprep.subr.mxu0 0.0
    %1639 = vmatpush1.msra.mxu0 0.0
    %1640 = vmatprep.subr.mxu0 0.0
    %1641 = vmatpush1.msra.mxu0 0.0
    %1642 = vmatprep.subr.mxu0 0.0
    %1643 = vmatpush1.msra.mxu0 0.0
    %1644 = vmatprep.subr.mxu0 0.0
    %1645 = vmatpush1.msra.mxu0 0.0
    %1646 = vmatprep.subr.mxu0 0.0
    %1647 = vmatpush1.msra.mxu0 0.0
    %1648 = vmatprep.subr.mxu0 0.0
    %1649 = vmatpush1.msra.mxu0 0.0
    %1650 = vmatprep.subr.mxu0 0.0
    %1651 = vmatpush1.msra.mxu0 0.0
    %1652 = vmatprep.subr.mxu0 0.0
    %1653 = vmatpush1.msra.mxu0 0.0
    %1654 = vmatprep.subr.mxu0 0.0
    %1655 = vmatpush1.msra.mxu0 0.0
    %1656 = vmatprep.subr.mxu0 0.0
    %1657 = vmatpush1.msra.mxu0 0.0
    %1658 = vmatprep.subr.mxu0 0.0
    %1659 = vmatpush1.msra.mxu0 0.0
    %1660 = vmatprep.subr.mxu0 0.0
    %1661 = vmatpush1.msra.mxu0 0.0
    %1662 = vmatprep.subr.mxu0 0.0
    %1663 = vmatpush1.msra.mxu0 0.0
    %1664 = vmatprep.subr.mxu0 0.0
    %1665 = vmatpush1.msra.mxu0 0.0
    %1666 = vmatprep.subr.mxu0 0.0
    %1667 = vmatpush1.msra.mxu0 0.0
    %1668 = vmatprep.mubr.f32.mxu0 0.0
    %1669 = vmatmul.mubr.f32.gmra.mrb[0].mxu0 %v1359
    %v1670 = vpop.f32.mrb[0].mxu0
    %v1671 = vadd.f32 0.0, %v1670
    %v1672 = vpop.f32.mrb[0].mxu0
    %1673 = vdwg.mxu0
    %v1674 = vadd.f32 %v1601, %v1671
    %v1675 = vxor.u32 %v1674, 2147483648
    %v1676 = vmul.f32 %v1675, 1.442695
    %v1677 = vpow.pop %v1676
    %v1678 = vadd.f32 %v1677, 1.0
    %v1679 = vrcp.pop %v1678
    %v1680 = vmul.f32 1.0, %v1679
    %v1681 = vadd.f32 %v1671, %v983
    %1683 = vrot.lane.b32.xlu0 %v1681, 64
    %v1684 = vpop.permute.xlu0 %1683
    %v1686 = vmul.f32 %v1680, %v1684
    %1688 = vrot.lane.b32.xlu0 %v1686, 64
    %v1689 = vpop.permute.xlu0 %1688
    %v1691 = vadd.f32 %v1601, %v1689
    %v1692 = vtanh.pop %v1691
    %v1693 = vsub.f32 1.0, %v1680
    %1695 = vrot.lane.b32.xlu0 %v1692, 96
    %v1696 = vpop.permute.xlu0 %1695
    %v1698 = vmul.f32 %v1693, %v1696
    %v1699 = vmul.f32 %v1680, %v1355
    %v1700 = vadd.f32 %v1698, %v1699
    %1702 = vrot.lane.b32.xlu0 %v1700, 96
    %v1703 = vpop.permute.xlu0 %1702
    %v1704 = vsel %vm710, %v1703, 0
    %1706 = vmatprep.subr.mxu0 0.0
    %1707 = vmatpush1.msra.mxu0 %v98
    %1708 = vmatprep.subr.mxu0 0.0
    %1709 = vmatpush1.msra.mxu0 %v99
    %1710 = vmatprep.subr.mxu0 0.0
    %1711 = vmatpush1.msra.mxu0 %v100
    %1712 = vmatprep.subr.mxu0 0.0
    %1713 = vmatpush1.msra.mxu0 %v101
    %1714 = vmatprep.subr.mxu0 0.0
    %1715 = vmatpush1.msra.mxu0 0.0
    %1716 = vmatprep.subr.mxu0 0.0
    %1717 = vmatpush1.msra.mxu0 0.0
    %1718 = vmatprep.subr.mxu0 0.0
    %1719 = vmatpush1.msra.mxu0 0.0
    %1720 = vmatprep.subr.mxu0 0.0
    %1721 = vmatpush1.msra.mxu0 0.0
    %1722 = vmatprep.subr.mxu0 0.0
    %1723 = vmatpush1.msra.mxu0 0.0
    %1724 = vmatprep.subr.mxu0 0.0
    %1725 = vmatpush1.msra.mxu0 0.0
    %1726 = vmatprep.subr.mxu0 0.0
    %1727 = vmatpush1.msra.mxu0 0.0
    %1728 = vmatprep.subr.mxu0 0.0
    %1729 = vmatpush1.msra.mxu0 0.0
    %1730 = vmatprep.subr.mxu0 0.0
    %1731 = vmatpush1.msra.mxu0 0.0
    %1732 = vmatprep.subr.mxu0 0.0
    %1733 = vmatpush1.msra.mxu0 0.0
    %1734 = vmatprep.subr.mxu0 0.0
    %1735 = vmatpush1.msra.mxu0 0.0
    %1736 = vmatprep.subr.mxu0 0.0
    %1737 = vmatpush1.msra.mxu0 0.0
    %1738 = vmatprep.subr.mxu0 0.0
    %1739 = vmatpush1.msra.mxu0 0.0
    %1740 = vmatprep.subr.mxu0 0.0
    %1741 = vmatpush1.msra.mxu0 0.0
    %1742 = vmatprep.subr.mxu0 0.0
    %1743 = vmatpush1.msra.mxu0 0.0
    %1744 = vmatprep.subr.mxu0 0.0
    %1745 = vmatpush1.msra.mxu0 0.0
    %1746 = vmatprep.subr.mxu0 0.0
    %1747 = vmatpush1.msra.mxu0 0.0
    %1748 = vmatprep.subr.mxu0 0.0
    %1749 = vmatpush1.msra.mxu0 0.0
    %1750 = vmatprep.subr.mxu0 0.0
    %1751 = vmatpush1.msra.mxu0 0.0
    %1752 = vmatprep.subr.mxu0 0.0
    %1753 = vmatpush1.msra.mxu0 0.0
    %1754 = vmatprep.subr.mxu0 0.0
    %1755 = vmatpush1.msra.mxu0 0.0
    %1756 = vmatprep.subr.mxu0 0.0
    %1757 = vmatpush1.msra.mxu0 0.0
    %1758 = vmatprep.subr.mxu0 0.0
    %1759 = vmatpush1.msra.mxu0 0.0
    %1760 = vmatprep.subr.mxu0 0.0
    %1761 = vmatpush1.msra.mxu0 0.0
    %1762 = vmatprep.subr.mxu0 0.0
    %1763 = vmatpush1.msra.mxu0 0.0
    %1764 = vmatprep.subr.mxu0 0.0
    %1765 = vmatpush1.msra.mxu0 0.0
    %1766 = vmatprep.subr.mxu0 0.0
    %1767 = vmatpush1.msra.mxu0 0.0
    %1768 = vmatprep.subr.mxu0 0.0
    %1769 = vmatpush1.msra.mxu0 0.0
    %1770 = vmatprep.mubr.f32.mxu0 0.0
    %1771 = vmatmul.mubr.f32.gmra.mrb[0].mxu0 %v1704
    %v1772 = vpop.f32.mrb[0].mxu0
    %v1773 = vadd.f32 %v1009, %v1772
    %v1774 = vpop.f32.mrb[0].mxu0
    %1775 = vdwg.mxu0
    %1776 = vst.msk [vmem:[%s14 + $0x18] sm:$0xff] %vm443, %v1773
    %1777 = vmatprep.subr.mxu0 0.0
    %1778 = vmatpush1.msra.mxu0 %v82
    %1779 = vmatprep.subr.mxu0 0.0
    %1780 = vmatpush1.msra.mxu0 %v83
    %1781 = vmatprep.subr.mxu0 0.0
    %1782 = vmatpush1.msra.mxu0 %v84
    %1783 = vmatprep.subr.mxu0 0.0
    %1784 = vmatpush1.msra.mxu0 %v85
    %1785 = vmatprep.subr.mxu0 0.0
    %1786 = vmatpush1.msra.mxu0 0.0
    %1787 = vmatprep.subr.mxu0 0.0
    %1788 = vmatpush1.msra.mxu0 0.0
    %1789 = vmatprep.subr.mxu0 0.0
    %1790 = vmatpush1.msra.mxu0 0.0
    %1791 = vmatprep.subr.mxu0 0.0
    %1792 = vmatpush1.msra.mxu0 0.0
    %1793 = vmatprep.subr.mxu0 0.0
    %1794 = vmatpush1.msra.mxu0 0.0
    %1795 = vmatprep.subr.mxu0 0.0
    %1796 = vmatpush1.msra.mxu0 0.0
    %1797 = vmatprep.subr.mxu0 0.0
    %1798 = vmatpush1.msra.mxu0 0.0
    %1799 = vmatprep.subr.mxu0 0.0
    %1800 = vmatpush1.msra.mxu0 0.0
    %1801 = vmatprep.subr.mxu0 0.0
    %1802 = vmatpush1.msra.mxu0 0.0
    %1803 = vmatprep.subr.mxu0 0.0
    %1804 = vmatpush1.msra.mxu0 0.0
    %1805 = vmatprep.subr.mxu0 0.0
    %1806 = vmatpush1.msra.mxu0 0.0
    %1807 = vmatprep.subr.mxu0 0.0
    %1808 = vmatpush1.msra.mxu0 0.0
    %1809 = vmatprep.subr.mxu0 0.0
    %1810 = vmatpush1.msra.mxu0 0.0
    %1811 = vmatprep.subr.mxu0 0.0
    %1812 = vmatpush1.msra.mxu0 0.0
    %1813 = vmatprep.subr.mxu0 0.0
    %1814 = vmatpush1.msra.mxu0 0.0
    %1815 = vmatprep.subr.mxu0 0.0
    %1816 = vmatpush1.msra.mxu0 0.0
    %1817 = vmatprep.subr.mxu0 0.0
    %1818 = vmatpush1.msra.mxu0 0.0
    %1819 = vmatprep.subr.mxu0 0.0
    %1820 = vmatpush1.msra.mxu0 0.0
    %1821 = vmatprep.subr.mxu0 0.0
    %1822 = vmatpush1.msra.mxu0 0.0
    %1823 = vmatprep.subr.mxu0 0.0
    %1824 = vmatpush1.msra.mxu0 0.0
    %1825 = vmatprep.subr.mxu0 0.0
    %1826 = vmatpush1.msra.mxu0 0.0
    %1827 = vmatprep.subr.mxu0 0.0
    %1828 = vmatpush1.msra.mxu0 0.0
    %1829 = vmatprep.subr.mxu0 0.0
    %1830 = vmatpush1.msra.mxu0 0.0
    %1831 = vmatprep.subr.mxu0 0.0
    %1832 = vmatpush1.msra.mxu0 0.0
    %1833 = vmatprep.subr.mxu0 0.0
    %1834 = vmatpush1.msra.mxu0 0.0
    %1835 = vmatprep.subr.mxu0 0.0
    %1836 = vmatpush1.msra.mxu0 0.0
    %1837 = vmatprep.subr.mxu0 0.0
    %1838 = vmatpush1.msra.mxu0 0.0
    %1839 = vmatprep.subr.mxu0 0.0
    %1840 = vmatpush1.msra.mxu0 0.0
    %1841 = vmatprep.mubr.f32.mxu0 0.0
    %1842 = vmatmul.mubr.f32.gmra.mrb[0].mxu0 %v1532
    %v1843 = vpop.f32.mrb[0].mxu0
    %v1844 = vadd.f32 0.0, %v1843
    %v1845 = vpop.f32.mrb[0].mxu0
    %1846 = vdwg.mxu0
    %v1847 = vadd.f32 %v691, %v1844
    %v1848 = vxor.u32 %v1847, 2147483648
    %v1849 = vmul.f32 %v1848, 1.442695
    %v1850 = vpow.pop %v1849
    %v1851 = vadd.f32 %v1850, 1.0
    %v1852 = vrcp.pop %v1851
    %v1853 = vmul.f32 1.0, %v1852
    %v1854 = vadd.f32 %v1844, %v797
    %1856 = vrot.lane.b32.xlu0 %v1854, 64
    %v1857 = vpop.permute.xlu0 %1856
    %v1859 = vmul.f32 %v1853, %v1857
    %1861 = vrot.lane.b32.xlu0 %v1859, 64
    %v1862 = vpop.permute.xlu0 %1861
    %v1864 = vadd.f32 %v691, %v1862
    %v1865 = vtanh.pop %v1864
    %v1866 = vsub.f32 1.0, %v1853
    %1868 = vrot.lane.b32.xlu0 %v1865, 96
    %v1869 = vpop.permute.xlu0 %1868
    %v1871 = vmul.f32 %v1866, %v1869
    %v1872 = vmul.f32 %v1853, %v1528
    %v1873 = vadd.f32 %v1871, %v1872
    %1875 = vrot.lane.b32.xlu0 %v1873, 96
    %v1876 = vpop.permute.xlu0 %1875
    %v1877 = vsel %vm710, %v1876, 0
    %1879 = vmatprep.subr.mxu0 0.0
    %1880 = vmatpush1.msra.mxu0 %v90
    %1881 = vmatprep.subr.mxu0 0.0
    %1882 = vmatpush1.msra.mxu0 %v91
    %1883 = vmatprep.subr.mxu0 0.0
    %1884 = vmatpush1.msra.mxu0 %v92
    %1885 = vmatprep.subr.mxu0 0.0
    %1886 = vmatpush1.msra.mxu0 %v93
    %1887 = vmatprep.subr.mxu0 0.0
    %1888 = vmatpush1.msra.mxu0 0.0
    %1889 = vmatprep.subr.mxu0 0.0
    %1890 = vmatpush1.msra.mxu0 0.0
    %1891 = vmatprep.subr.mxu0 0.0
    %1892 = vmatpush1.msra.mxu0 0.0
    %1893 = vmatprep.subr.mxu0 0.0
    %1894 = vmatpush1.msra.mxu0 0.0
    %1895 = vmatprep.subr.mxu0 0.0
    %1896 = vmatpush1.msra.mxu0 0.0
    %1897 = vmatprep.subr.mxu0 0.0
    %1898 = vmatpush1.msra.mxu0 0.0
    %1899 = vmatprep.subr.mxu0 0.0
    %1900 = vmatpush1.msra.mxu0 0.0
    %1901 = vmatprep.subr.mxu0 0.0
    %1902 = vmatpush1.msra.mxu0 0.0
    %1903 = vmatprep.subr.mxu0 0.0
    %1904 = vmatpush1.msra.mxu0 0.0
    %1905 = vmatprep.subr.mxu0 0.0
    %1906 = vmatpush1.msra.mxu0 0.0
    %1907 = vmatprep.subr.mxu0 0.0
    %1908 = vmatpush1.msra.mxu0 0.0
    %1909 = vmatprep.subr.mxu0 0.0
    %1910 = vmatpush1.msra.mxu0 0.0
    %1911 = vmatprep.subr.mxu0 0.0
    %1912 = vmatpush1.msra.mxu0 0.0
    %1913 = vmatprep.subr.mxu0 0.0
    %1914 = vmatpush1.msra.mxu0 0.0
    %1915 = vmatprep.subr.mxu0 0.0
    %1916 = vmatpush1.msra.mxu0 0.0
    %1917 = vmatprep.subr.mxu0 0.0
    %1918 = vmatpush1.msra.mxu0 0.0
    %1919 = vmatprep.subr.mxu0 0.0
    %1920 = vmatpush1.msra.mxu0 0.0
    %1921 = vmatprep.subr.mxu0 0.0
    %1922 = vmatpush1.msra.mxu0 0.0
    %1923 = vmatprep.subr.mxu0 0.0
    %1924 = vmatpush1.msra.mxu0 0.0
    %1925 = vmatprep.subr.mxu0 0.0
    %1926 = vmatpush1.msra.mxu0 0.0
    %1927 = vmatprep.subr.mxu0 0.0
    %1928 = vmatpush1.msra.mxu0 0.0
    %1929 = vmatprep.subr.mxu0 0.0
    %1930 = vmatpush1.msra.mxu0 0.0
    %1931 = vmatprep.subr.mxu0 0.0
    %1932 = vmatpush1.msra.mxu0 0.0
    %1933 = vmatprep.subr.mxu0 0.0
    %1934 = vmatpush1.msra.mxu0 0.0
    %1935 = vmatprep.subr.mxu0 0.0
    %1936 = vmatpush1.msra.mxu0 0.0
    %1937 = vmatprep.subr.mxu0 0.0
    %1938 = vmatpush1.msra.mxu0 0.0
    %1939 = vmatprep.subr.mxu0 0.0
    %1940 = vmatpush1.msra.mxu0 0.0
    %1941 = vmatprep.subr.mxu0 0.0
    %1942 = vmatpush1.msra.mxu0 0.0
    %1943 = vmatprep.mubr.f32.mxu0 0.0
    %1944 = vmatmul.mubr.f32.gmra.mrb[0].mxu0 %v1877
    %v1945 = vpop.f32.mrb[0].mxu0
    %v1946 = vadd.f32 %v823, %v1945
    %v1947 = vpop.f32.mrb[0].mxu0
    %1948 = vdwg.mxu0
    %1949 = vmatprep.subr.mxu0 0.0
    %1950 = vmatpush1.msra.mxu0 %v86
    %1951 = vmatprep.subr.mxu0 0.0
    %1952 = vmatpush1.msra.mxu0 %v87
    %1953 = vmatprep.subr.mxu0 0.0
    %1954 = vmatpush1.msra.mxu0 %v88
    %1955 = vmatprep.subr.mxu0 0.0
    %1956 = vmatpush1.msra.mxu0 %v89
    %1957 = vmatprep.subr.mxu0 0.0
    %1958 = vmatpush1.msra.mxu0 0.0
    %1959 = vmatprep.subr.mxu0 0.0
    %1960 = vmatpush1.msra.mxu0 0.0
    %1961 = vmatprep.subr.mxu0 0.0
    %1962 = vmatpush1.msra.mxu0 0.0
    %1963 = vmatprep.subr.mxu0 0.0
    %1964 = vmatpush1.msra.mxu0 0.0
    %1965 = vmatprep.subr.mxu0 0.0
    %1966 = vmatpush1.msra.mxu0 0.0
    %1967 = vmatprep.subr.mxu0 0.0
    %1968 = vmatpush1.msra.mxu0 0.0
    %1969 = vmatprep.subr.mxu0 0.0
    %1970 = vmatpush1.msra.mxu0 0.0
    %1971 = vmatprep.subr.mxu0 0.0
    %1972 = vmatpush1.msra.mxu0 0.0
    %1973 = vmatprep.subr.mxu0 0.0
    %1974 = vmatpush1.msra.mxu0 0.0
    %1975 = vmatprep.subr.mxu0 0.0
    %1976 = vmatpush1.msra.mxu0 0.0
    %1977 = vmatprep.subr.mxu0 0.0
    %1978 = vmatpush1.msra.mxu0 0.0
    %1979 = vmatprep.subr.mxu0 0.0
    %1980 = vmatpush1.msra.mxu0 0.0
    %1981 = vmatprep.subr.mxu0 0.0
    %1982 = vmatpush1.msra.mxu0 0.0
    %1983 = vmatprep.subr.mxu0 0.0
    %1984 = vmatpush1.msra.mxu0 0.0
    %1985 = vmatprep.subr.mxu0 0.0
    %1986 = vmatpush1.msra.mxu0 0.0
    %1987 = vmatprep.subr.mxu0 0.0
    %1988 = vmatpush1.msra.mxu0 0.0
    %1989 = vmatprep.subr.mxu0 0.0
    %1990 = vmatpush1.msra.mxu0 0.0
    %1991 = vmatprep.subr.mxu0 0.0
    %1992 = vmatpush1.msra.mxu0 0.0
    %1993 = vmatprep.subr.mxu0 0.0
    %1994 = vmatpush1.msra.mxu0 0.0
    %1995 = vmatprep.subr.mxu0 0.0
    %1996 = vmatpush1.msra.mxu0 0.0
    %1997 = vmatprep.subr.mxu0 0.0
    %1998 = vmatpush1.msra.mxu0 0.0
    %1999 = vmatprep.subr.mxu0 0.0
    %2000 = vmatpush1.msra.mxu0 0.0
    %2001 = vmatprep.subr.mxu0 0.0
    %2002 = vmatpush1.msra.mxu0 0.0
    %2003 = vmatprep.subr.mxu0 0.0
    %2004 = vmatpush1.msra.mxu0 0.0
    %2005 = vmatprep.subr.mxu0 0.0
    %2006 = vmatpush1.msra.mxu0 0.0
    %2007 = vmatprep.subr.mxu0 0.0
    %2008 = vmatpush1.msra.mxu0 0.0
    %2009 = vmatprep.subr.mxu0 0.0
    %2010 = vmatpush1.msra.mxu0 0.0
    %2011 = vmatprep.subr.mxu0 0.0
    %2012 = vmatpush1.msra.mxu0 0.0
    %2013 = vmatprep.mubr.f32.mxu0 0.0
    %2014 = vmatmul.mubr.f32.gmra.mrb[0].mxu0 %v1704
    %v2015 = vpop.f32.mrb[0].mxu0
    %v2016 = vadd.f32 0.0, %v2015
    %v2017 = vpop.f32.mrb[0].mxu0
    %2018 = vdwg.mxu0
    %v2019 = vadd.f32 %v1946, %v2016
    %v2020 = vxor.u32 %v2019, 2147483648
    %v2021 = vmul.f32 %v2020, 1.442695
    %v2022 = vpow.pop %v2021
    %v2023 = vadd.f32 %v2022, 1.0
    %v2024 = vrcp.pop %v2023
    %v2025 = vmul.f32 1.0, %v2024
    %v2026 = vadd.f32 %v2016, %v983
    %2028 = vrot.lane.b32.xlu0 %v2026, 64
    %v2029 = vpop.permute.xlu0 %2028
    %v2031 = vmul.f32 %v2025, %v2029
    %2033 = vrot.lane.b32.xlu0 %v2031, 64
    %v2034 = vpop.permute.xlu0 %2033
    %v2036 = vadd.f32 %v1946, %v2034
    %v2037 = vtanh.pop %v2036
    %v2038 = vsub.f32 1.0, %v2025
    %2040 = vrot.lane.b32.xlu0 %v2037, 96
    %v2041 = vpop.permute.xlu0 %2040
    %v2043 = vmul.f32 %v2038, %v2041
    %v2044 = vmul.f32 %v2025, %v1700
    %v2045 = vadd.f32 %v2043, %v2044
    %2047 = vrot.lane.b32.xlu0 %v2045, 96
    %v2048 = vpop.permute.xlu0 %2047
    %v2049 = vsel %vm710, %v2048, 0
    %2051 = vmatprep.subr.mxu0 0.0
    %2052 = vmatpush1.msra.mxu0 %v98
    %2053 = vmatprep.subr.mxu0 0.0
    %2054 = vmatpush1.msra.mxu0 %v99
    %2055 = vmatprep.subr.mxu0 0.0
    %2056 = vmatpush1.msra.mxu0 %v100
    %2057 = vmatprep.subr.mxu0 0.0
    %2058 = vmatpush1.msra.mxu0 %v101
    %2059 = vmatprep.subr.mxu0 0.0
    %2060 = vmatpush1.msra.mxu0 0.0
    %2061 = vmatprep.subr.mxu0 0.0
    %2062 = vmatpush1.msra.mxu0 0.0
    %2063 = vmatprep.subr.mxu0 0.0
    %2064 = vmatpush1.msra.mxu0 0.0
    %2065 = vmatprep.subr.mxu0 0.0
    %2066 = vmatpush1.msra.mxu0 0.0
    %2067 = vmatprep.subr.mxu0 0.0
    %2068 = vmatpush1.msra.mxu0 0.0
    %2069 = vmatprep.subr.mxu0 0.0
    %2070 = vmatpush1.msra.mxu0 0.0
    %2071 = vmatprep.subr.mxu0 0.0
    %2072 = vmatpush1.msra.mxu0 0.0
    %2073 = vmatprep.subr.mxu0 0.0
    %2074 = vmatpush1.msra.mxu0 0.0
    %2075 = vmatprep.subr.mxu0 0.0
    %2076 = vmatpush1.msra.mxu0 0.0
    %2077 = vmatprep.subr.mxu0 0.0
    %2078 = vmatpush1.msra.mxu0 0.0
    %2079 = vmatprep.subr.mxu0 0.0
    %2080 = vmatpush1.msra.mxu0 0.0
    %2081 = vmatprep.subr.mxu0 0.0
    %2082 = vmatpush1.msra.mxu0 0.0
    %2083 = vmatprep.subr.mxu0 0.0
    %2084 = vmatpush1.msra.mxu0 0.0
    %2085 = vmatprep.subr.mxu0 0.0
    %2086 = vmatpush1.msra.mxu0 0.0
    %2087 = vmatprep.subr.mxu0 0.0
    %2088 = vmatpush1.msra.mxu0 0.0
    %2089 = vmatprep.subr.mxu0 0.0
    %2090 = vmatpush1.msra.mxu0 0.0
    %2091 = vmatprep.subr.mxu0 0.0
    %2092 = vmatpush1.msra.mxu0 0.0
    %2093 = vmatprep.subr.mxu0 0.0
    %2094 = vmatpush1.msra.mxu0 0.0
    %2095 = vmatprep.subr.mxu0 0.0
    %2096 = vmatpush1.msra.mxu0 0.0
    %2097 = vmatprep.subr.mxu0 0.0
    %2098 = vmatpush1.msra.mxu0 0.0
    %2099 = vmatprep.subr.mxu0 0.0
    %2100 = vmatpush1.msra.mxu0 0.0
    %2101 = vmatprep.subr.mxu0 0.0
    %2102 = vmatpush1.msra.mxu0 0.0
    %2103 = vmatprep.subr.mxu0 0.0
    %2104 = vmatpush1.msra.mxu0 0.0
    %2105 = vmatprep.subr.mxu0 0.0
    %2106 = vmatpush1.msra.mxu0 0.0
    %2107 = vmatprep.subr.mxu0 0.0
    %2108 = vmatpush1.msra.mxu0 0.0
    %2109 = vmatprep.subr.mxu0 0.0
    %2110 = vmatpush1.msra.mxu0 0.0
    %2111 = vmatprep.subr.mxu0 0.0
    %2112 = vmatpush1.msra.mxu0 0.0
    %2113 = vmatprep.subr.mxu0 0.0
    %2114 = vmatpush1.msra.mxu0 0.0
    %2115 = vmatprep.mubr.f32.mxu0 0.0
    %2116 = vmatmul.mubr.f32.gmra.mrb[0].mxu0 %v2049
    %v2117 = vpop.f32.mrb[0].mxu0
    %v2118 = vadd.f32 %v1009, %v2117
    %v2119 = vpop.f32.mrb[0].mxu0
    %2120 = vdwg.mxu0
    %2121 = vst.msk [vmem:[%s14 + $0x20] sm:$0xff] %vm443, %v2118
    %2122 = vmatprep.subr.mxu0 0.0
    %2123 = vmatpush1.msra.mxu0 %v82
    %2124 = vmatprep.subr.mxu0 0.0
    %2125 = vmatpush1.msra.mxu0 %v83
    %2126 = vmatprep.subr.mxu0 0.0
    %2127 = vmatpush1.msra.mxu0 %v84
    %2128 = vmatprep.subr.mxu0 0.0
    %2129 = vmatpush1.msra.mxu0 %v85
    %2130 = vmatprep.subr.mxu0 0.0
    %2131 = vmatpush1.msra.mxu0 0.0
    %2132 = vmatprep.subr.mxu0 0.0
    %2133 = vmatpush1.msra.mxu0 0.0
    %2134 = vmatprep.subr.mxu0 0.0
    %2135 = vmatpush1.msra.mxu0 0.0
    %2136 = vmatprep.subr.mxu0 0.0
    %2137 = vmatpush1.msra.mxu0 0.0
    %2138 = vmatprep.subr.mxu0 0.0
    %2139 = vmatpush1.msra.mxu0 0.0
    %2140 = vmatprep.subr.mxu0 0.0
    %2141 = vmatpush1.msra.mxu0 0.0
    %2142 = vmatprep.subr.mxu0 0.0
    %2143 = vmatpush1.msra.mxu0 0.0
    %2144 = vmatprep.subr.mxu0 0.0
    %2145 = vmatpush1.msra.mxu0 0.0
    %2146 = vmatprep.subr.mxu0 0.0
    %2147 = vmatpush1.msra.mxu0 0.0
    %2148 = vmatprep.subr.mxu0 0.0
    %2149 = vmatpush1.msra.mxu0 0.0
    %2150 = vmatprep.subr.mxu0 0.0
    %2151 = vmatpush1.msra.mxu0 0.0
    %2152 = vmatprep.subr.mxu0 0.0
    %2153 = vmatpush1.msra.mxu0 0.0
    %2154 = vmatprep.subr.mxu0 0.0
    %2155 = vmatpush1.msra.mxu0 0.0
    %2156 = vmatprep.subr.mxu0 0.0
    %2157 = vmatpush1.msra.mxu0 0.0
    %2158 = vmatprep.subr.mxu0 0.0
    %2159 = vmatpush1.msra.mxu0 0.0
    %2160 = vmatprep.subr.mxu0 0.0
    %2161 = vmatpush1.msra.mxu0 0.0
    %2162 = vmatprep.subr.mxu0 0.0
    %2163 = vmatpush1.msra.mxu0 0.0
    %2164 = vmatprep.subr.mxu0 0.0
    %2165 = vmatpush1.msra.mxu0 0.0
    %2166 = vmatprep.subr.mxu0 0.0
    %2167 = vmatpush1.msra.mxu0 0.0
    %2168 = vmatprep.subr.mxu0 0.0
    %2169 = vmatpush1.msra.mxu0 0.0
    %2170 = vmatprep.subr.mxu0 0.0
    %2171 = vmatpush1.msra.mxu0 0.0
    %2172 = vmatprep.subr.mxu0 0.0
    %2173 = vmatpush1.msra.mxu0 0.0
    %2174 = vmatprep.subr.mxu0 0.0
    %2175 = vmatpush1.msra.mxu0 0.0
    %2176 = vmatprep.subr.mxu0 0.0
    %2177 = vmatpush1.msra.mxu0 0.0
    %2178 = vmatprep.subr.mxu0 0.0
    %2179 = vmatpush1.msra.mxu0 0.0
    %2180 = vmatprep.subr.mxu0 0.0
    %2181 = vmatpush1.msra.mxu0 0.0
    %2182 = vmatprep.subr.mxu0 0.0
    %2183 = vmatpush1.msra.mxu0 0.0
    %2184 = vmatprep.subr.mxu0 0.0
    %2185 = vmatpush1.msra.mxu0 0.0
    %2186 = vmatprep.mubr.f32.mxu0 0.0
    %2187 = vmatmul.mubr.f32.gmra.mrb[0].mxu0 %v1877
    %v2188 = vpop.f32.mrb[0].mxu0
    %v2189 = vadd.f32 0.0, %v2188
    %v2190 = vpop.f32.mrb[0].mxu0
    %2191 = vdwg.mxu0
    %v2192 = vadd.f32 %v696, %v2189
    %v2193 = vxor.u32 %v2192, 2147483648
    %v2194 = vmul.f32 %v2193, 1.442695
    %v2195 = vpow.pop %v2194
    %v2196 = vadd.f32 %v2195, 1.0
    %v2197 = vrcp.pop %v2196
    %v2198 = vmul.f32 1.0, %v2197
    %v2199 = vadd.f32 %v2189, %v797
    %2201 = vrot.lane.b32.xlu0 %v2199, 64
    %v2202 = vpop.permute.xlu0 %2201
    %v2204 = vmul.f32 %v2198, %v2202
    %2206 = vrot.lane.b32.xlu0 %v2204, 64
    %v2207 = vpop.permute.xlu0 %2206
    %v2209 = vadd.f32 %v696, %v2207
    %v2210 = vtanh.pop %v2209
    %v2211 = vsub.f32 1.0, %v2198
    %2213 = vrot.lane.b32.xlu0 %v2210, 96
    %v2214 = vpop.permute.xlu0 %2213
    %v2216 = vmul.f32 %v2211, %v2214
    %v2217 = vmul.f32 %v2198, %v1873
    %v2218 = vadd.f32 %v2216, %v2217
    %2220 = vrot.lane.b32.xlu0 %v2218, 96
    %v2221 = vpop.permute.xlu0 %2220
    %v2222 = vsel %vm710, %v2221, 0
    %2224 = vmatprep.subr.mxu0 0.0
    %2225 = vmatpush1.msra.mxu0 %v90
    %2226 = vmatprep.subr.mxu0 0.0
    %2227 = vmatpush1.msra.mxu0 %v91
    %2228 = vmatprep.subr.mxu0 0.0
    %2229 = vmatpush1.msra.mxu0 %v92
    %2230 = vmatprep.subr.mxu0 0.0
    %2231 = vmatpush1.msra.mxu0 %v93
    %2232 = vmatprep.subr.mxu0 0.0
    %2233 = vmatpush1.msra.mxu0 0.0
    %2234 = vmatprep.subr.mxu0 0.0
    %2235 = vmatpush1.msra.mxu0 0.0
    %2236 = vmatprep.subr.mxu0 0.0
    %2237 = vmatpush1.msra.mxu0 0.0
    %2238 = vmatprep.subr.mxu0 0.0
    %2239 = vmatpush1.msra.mxu0 0.0
    %2240 = vmatprep.subr.mxu0 0.0
    %2241 = vmatpush1.msra.mxu0 0.0
    %2242 = vmatprep.subr.mxu0 0.0
    %2243 = vmatpush1.msra.mxu0 0.0
    %2244 = vmatprep.subr.mxu0 0.0
    %2245 = vmatpush1.msra.mxu0 0.0
    %2246 = vmatprep.subr.mxu0 0.0
    %2247 = vmatpush1.msra.mxu0 0.0
    %2248 = vmatprep.subr.mxu0 0.0
    %2249 = vmatpush1.msra.mxu0 0.0
    %2250 = vmatprep.subr.mxu0 0.0
    %2251 = vmatpush1.msra.mxu0 0.0
    %2252 = vmatprep.subr.mxu0 0.0
    %2253 = vmatpush1.msra.mxu0 0.0
    %2254 = vmatprep.subr.mxu0 0.0
    %2255 = vmatpush1.msra.mxu0 0.0
    %2256 = vmatprep.subr.mxu0 0.0
    %2257 = vmatpush1.msra.mxu0 0.0
    %2258 = vmatprep.subr.mxu0 0.0
    %2259 = vmatpush1.msra.mxu0 0.0
    %2260 = vmatprep.subr.mxu0 0.0
    %2261 = vmatpush1.msra.mxu0 0.0
    %2262 = vmatprep.subr.mxu0 0.0
    %2263 = vmatpush1.msra.mxu0 0.0
    %2264 = vmatprep.subr.mxu0 0.0
    %2265 = vmatpush1.msra.mxu0 0.0
    %2266 = vmatprep.subr.mxu0 0.0
    %2267 = vmatpush1.msra.mxu0 0.0
    %2268 = vmatprep.subr.mxu0 0.0
    %2269 = vmatpush1.msra.mxu0 0.0
    %2270 = vmatprep.subr.mxu0 0.0
    %2271 = vmatpush1.msra.mxu0 0.0
    %2272 = vmatprep.subr.mxu0 0.0
    %2273 = vmatpush1.msra.mxu0 0.0
    %2274 = vmatprep.subr.mxu0 0.0
    %2275 = vmatpush1.msra.mxu0 0.0
    %2276 = vmatprep.subr.mxu0 0.0
    %2277 = vmatpush1.msra.mxu0 0.0
    %2278 = vmatprep.subr.mxu0 0.0
    %2279 = vmatpush1.msra.mxu0 0.0
    %2280 = vmatprep.subr.mxu0 0.0
    %2281 = vmatpush1.msra.mxu0 0.0
    %2282 = vmatprep.subr.mxu0 0.0
    %2283 = vmatpush1.msra.mxu0 0.0
    %2284 = vmatprep.subr.mxu0 0.0
    %2285 = vmatpush1.msra.mxu0 0.0
    %2286 = vmatprep.subr.mxu0 0.0
    %2287 = vmatpush1.msra.mxu0 0.0
    %2288 = vmatprep.mubr.f32.mxu0 0.0
    %2289 = vmatmul.mubr.f32.gmra.mrb[0].mxu0 %v2222
    %v2290 = vpop.f32.mrb[0].mxu0
    %v2291 = vadd.f32 %v823, %v2290
    %v2292 = vpop.f32.mrb[0].mxu0
    %2293 = vdwg.mxu0
    %2294 = vmatprep.subr.mxu0 0.0
    %2295 = vmatpush1.msra.mxu0 %v86
    %2296 = vmatprep.subr.mxu0 0.0
    %2297 = vmatpush1.msra.mxu0 %v87
    %2298 = vmatprep.subr.mxu0 0.0
    %2299 = vmatpush1.msra.mxu0 %v88
    %2300 = vmatprep.subr.mxu0 0.0
    %2301 = vmatpush1.msra.mxu0 %v89
    %2302 = vmatprep.subr.mxu0 0.0
    %2303 = vmatpush1.msra.mxu0 0.0
    %2304 = vmatprep.subr.mxu0 0.0
    %2305 = vmatpush1.msra.mxu0 0.0
    %2306 = vmatprep.subr.mxu0 0.0
    %2307 = vmatpush1.msra.mxu0 0.0
    %2308 = vmatprep.subr.mxu0 0.0
    %2309 = vmatpush1.msra.mxu0 0.0
    %2310 = vmatprep.subr.mxu0 0.0
    %2311 = vmatpush1.msra.mxu0 0.0
    %2312 = vmatprep.subr.mxu0 0.0
    %2313 = vmatpush1.msra.mxu0 0.0
    %2314 = vmatprep.subr.mxu0 0.0
    %2315 = vmatpush1.msra.mxu0 0.0
    %2316 = vmatprep.subr.mxu0 0.0
    %2317 = vmatpush1.msra.mxu0 0.0
    %2318 = vmatprep.subr.mxu0 0.0
    %2319 = vmatpush1.msra.mxu0 0.0
    %2320 = vmatprep.subr.mxu0 0.0
    %2321 = vmatpush1.msra.mxu0 0.0
    %2322 = vmatprep.subr.mxu0 0.0
    %2323 = vmatpush1.msra.mxu0 0.0
    %2324 = vmatprep.subr.mxu0 0.0
    %2325 = vmatpush1.msra.mxu0 0.0
    %2326 = vmatprep.subr.mxu0 0.0
    %2327 = vmatpush1.msra.mxu0 0.0
    %2328 = vmatprep.subr.mxu0 0.0
    %2329 = vmatpush1.msra.mxu0 0.0
    %2330 = vmatprep.subr.mxu0 0.0
    %2331 = vmatpush1.msra.mxu0 0.0
    %2332 = vmatprep.subr.mxu0 0.0
    %2333 = vmatpush1.msra.mxu0 0.0
    %2334 = vmatprep.subr.mxu0 0.0
    %2335 = vmatpush1.msra.mxu0 0.0
    %2336 = vmatprep.subr.mxu0 0.0
    %2337 = vmatpush1.msra.mxu0 0.0
    %2338 = vmatprep.subr.mxu0 0.0
    %2339 = vmatpush1.msra.mxu0 0.0
    %2340 = vmatprep.subr.mxu0 0.0
    %2341 = vmatpush1.msra.mxu0 0.0
    %2342 = vmatprep.subr.mxu0 0.0
    %2343 = vmatpush1.msra.mxu0 0.0
    %2344 = vmatprep.subr.mxu0 0.0
    %2345 = vmatpush1.msra.mxu0 0.0
    %2346 = vmatprep.subr.mxu0 0.0
    %2347 = vmatpush1.msra.mxu0 0.0
    %2348 = vmatprep.subr.mxu0 0.0
    %2349 = vmatpush1.msra.mxu0 0.0
    %2350 = vmatprep.subr.mxu0 0.0
    %2351 = vmatpush1.msra.mxu0 0.0
    %2352 = vmatprep.subr.mxu0 0.0
    %2353 = vmatpush1.msra.mxu0 0.0
    %2354 = vmatprep.subr.mxu0 0.0
    %2355 = vmatpush1.msra.mxu0 0.0
    %2356 = vmatprep.subr.mxu0 0.0
    %2357 = vmatpush1.msra.mxu0 0.0
    %2358 = vmatprep.mubr.f32.mxu0 0.0
    %2359 = vmatmul.mubr.f32.gmra.mrb[0].mxu0 %v2049
    %v2360 = vpop.f32.mrb[0].mxu0
    %v2361 = vadd.f32 0.0, %v2360
    %v2362 = vpop.f32.mrb[0].mxu0
    %2363 = vdwg.mxu0
    %v2364 = vadd.f32 %v2291, %v2361
    %v2365 = vxor.u32 %v2364, 2147483648
    %v2366 = vmul.f32 %v2365, 1.442695
    %v2367 = vpow.pop %v2366
    %v2368 = vadd.f32 %v2367, 1.0
    %v2369 = vrcp.pop %v2368
    %v2370 = vmul.f32 1.0, %v2369
    %v2371 = vadd.f32 %v2361, %v983
    %2373 = vrot.lane.b32.xlu0 %v2371, 64
    %v2374 = vpop.permute.xlu0 %2373
    %v2376 = vmul.f32 %v2370, %v2374
    %2378 = vrot.lane.b32.xlu0 %v2376, 64
    %v2379 = vpop.permute.xlu0 %2378
    %v2381 = vadd.f32 %v2291, %v2379
    %v2382 = vtanh.pop %v2381
    %v2383 = vsub.f32 1.0, %v2370
    %2385 = vrot.lane.b32.xlu0 %v2382, 96
    %v2386 = vpop.permute.xlu0 %2385
    %v2388 = vmul.f32 %v2383, %v2386
    %v2389 = vmul.f32 %v2370, %v2045
    %v2390 = vadd.f32 %v2388, %v2389
    %2392 = vrot.lane.b32.xlu0 %v2390, 96
    %v2393 = vpop.permute.xlu0 %2392
    %v2394 = vsel %vm710, %v2393, 0
    %2396 = vmatprep.subr.mxu0 0.0
    %2397 = vmatpush1.msra.mxu0 %v98
    %2398 = vmatprep.subr.mxu0 0.0
    %2399 = vmatpush1.msra.mxu0 %v99
    %2400 = vmatprep.subr.mxu0 0.0
    %2401 = vmatpush1.msra.mxu0 %v100
    %2402 = vmatprep.subr.mxu0 0.0
    %2403 = vmatpush1.msra.mxu0 %v101
    %2404 = vmatprep.subr.mxu0 0.0
    %2405 = vmatpush1.msra.mxu0 0.0
    %2406 = vmatprep.subr.mxu0 0.0
    %2407 = vmatpush1.msra.mxu0 0.0
    %2408 = vmatprep.subr.mxu0 0.0
    %2409 = vmatpush1.msra.mxu0 0.0
    %2410 = vmatprep.subr.mxu0 0.0
    %2411 = vmatpush1.msra.mxu0 0.0
    %2412 = vmatprep.subr.mxu0 0.0
    %2413 = vmatpush1.msra.mxu0 0.0
    %2414 = vmatprep.subr.mxu0 0.0
    %2415 = vmatpush1.msra.mxu0 0.0
    %2416 = vmatprep.subr.mxu0 0.0
    %2417 = vmatpush1.msra.mxu0 0.0
    %2418 = vmatprep.subr.mxu0 0.0
    %2419 = vmatpush1.msra.mxu0 0.0
    %2420 = vmatprep.subr.mxu0 0.0
    %2421 = vmatpush1.msra.mxu0 0.0
    %2422 = vmatprep.subr.mxu0 0.0
    %2423 = vmatpush1.msra.mxu0 0.0
    %2424 = vmatprep.subr.mxu0 0.0
    %2425 = vmatpush1.msra.mxu0 0.0
    %2426 = vmatprep.subr.mxu0 0.0
    %2427 = vmatpush1.msra.mxu0 0.0
    %2428 = vmatprep.subr.mxu0 0.0
    %2429 = vmatpush1.msra.mxu0 0.0
    %2430 = vmatprep.subr.mxu0 0.0
    %2431 = vmatpush1.msra.mxu0 0.0
    %2432 = vmatprep.subr.mxu0 0.0
    %2433 = vmatpush1.msra.mxu0 0.0
    %2434 = vmatprep.subr.mxu0 0.0
    %2435 = vmatpush1.msra.mxu0 0.0
    %2436 = vmatprep.subr.mxu0 0.0
    %2437 = vmatpush1.msra.mxu0 0.0
    %2438 = vmatprep.subr.mxu0 0.0
    %2439 = vmatpush1.msra.mxu0 0.0
    %2440 = vmatprep.subr.mxu0 0.0
    %2441 = vmatpush1.msra.mxu0 0.0
    %2442 = vmatprep.subr.mxu0 0.0
    %2443 = vmatpush1.msra.mxu0 0.0
    %2444 = vmatprep.subr.mxu0 0.0
    %2445 = vmatpush1.msra.mxu0 0.0
    %2446 = vmatprep.subr.mxu0 0.0
    %2447 = vmatpush1.msra.mxu0 0.0
    %2448 = vmatprep.subr.mxu0 0.0
    %2449 = vmatpush1.msra.mxu0 0.0
    %2450 = vmatprep.subr.mxu0 0.0
    %2451 = vmatpush1.msra.mxu0 0.0
    %2452 = vmatprep.subr.mxu0 0.0
    %2453 = vmatpush1.msra.mxu0 0.0
    %2454 = vmatprep.subr.mxu0 0.0
    %2455 = vmatpush1.msra.mxu0 0.0
    %2456 = vmatprep.subr.mxu0 0.0
    %2457 = vmatpush1.msra.mxu0 0.0
    %2458 = vmatprep.subr.mxu0 0.0
    %2459 = vmatpush1.msra.mxu0 0.0
    %2460 = vmatprep.mubr.f32.mxu0 0.0
    %2461 = vmatmul.mubr.f32.gmra.mrb[0].mxu0 %v2394
    %v2462 = vpop.f32.mrb[0].mxu0
    %v2463 = vadd.f32 %v1009, %v2462
    %v2464 = vpop.f32.mrb[0].mxu0
    %2465 = vdwg.mxu0
    %2466 = vst.msk [vmem:[%s14 + $0x28] sm:$0xff] %vm443, %v2463
    %2467 = vmatprep.subr.mxu0 0.0
    %2468 = vmatpush1.msra.mxu0 %v82
    %2469 = vmatprep.subr.mxu0 0.0
    %2470 = vmatpush1.msra.mxu0 %v83
    %2471 = vmatprep.subr.mxu0 0.0
    %2472 = vmatpush1.msra.mxu0 %v84
    %2473 = vmatprep.subr.mxu0 0.0
    %2474 = vmatpush1.msra.mxu0 %v85
    %2475 = vmatprep.subr.mxu0 0.0
    %2476 = vmatpush1.msra.mxu0 0.0
    %2477 = vmatprep.subr.mxu0 0.0
    %2478 = vmatpush1.msra.mxu0 0.0
    %2479 = vmatprep.subr.mxu0 0.0
    %2480 = vmatpush1.msra.mxu0 0.0
    %2481 = vmatprep.subr.mxu0 0.0
    %2482 = vmatpush1.msra.mxu0 0.0
    %2483 = vmatprep.subr.mxu0 0.0
    %2484 = vmatpush1.msra.mxu0 0.0
    %2485 = vmatprep.subr.mxu0 0.0
    %2486 = vmatpush1.msra.mxu0 0.0
    %2487 = vmatprep.subr.mxu0 0.0
    %2488 = vmatpush1.msra.mxu0 0.0
    %2489 = vmatprep.subr.mxu0 0.0
    %2490 = vmatpush1.msra.mxu0 0.0
    %2491 = vmatprep.subr.mxu0 0.0
    %2492 = vmatpush1.msra.mxu0 0.0
    %2493 = vmatprep.subr.mxu0 0.0
    %2494 = vmatpush1.msra.mxu0 0.0
    %2495 = vmatprep.subr.mxu0 0.0
    %2496 = vmatpush1.msra.mxu0 0.0
    %2497 = vmatprep.subr.mxu0 0.0
    %2498 = vmatpush1.msra.mxu0 0.0
    %2499 = vmatprep.subr.mxu0 0.0
    %2500 = vmatpush1.msra.mxu0 0.0
    %2501 = vmatprep.subr.mxu0 0.0
    %2502 = vmatpush1.msra.mxu0 0.0
    %2503 = vmatprep.subr.mxu0 0.0
    %2504 = vmatpush1.msra.mxu0 0.0
    %2505 = vmatprep.subr.mxu0 0.0
    %2506 = vmatpush1.msra.mxu0 0.0
    %2507 = vmatprep.subr.mxu0 0.0
    %2508 = vmatpush1.msra.mxu0 0.0
    %2509 = vmatprep.subr.mxu0 0.0
    %2510 = vmatpush1.msra.mxu0 0.0
    %2511 = vmatprep.subr.mxu0 0.0
    %2512 = vmatpush1.msra.mxu0 0.0
    %2513 = vmatprep.subr.mxu0 0.0
    %2514 = vmatpush1.msra.mxu0 0.0
    %2515 = vmatprep.subr.mxu0 0.0
    %2516 = vmatpush1.msra.mxu0 0.0
    %2517 = vmatprep.subr.mxu0 0.0
    %2518 = vmatpush1.msra.mxu0 0.0
    %2519 = vmatprep.subr.mxu0 0.0
    %2520 = vmatpush1.msra.mxu0 0.0
    %2521 = vmatprep.subr.mxu0 0.0
    %2522 = vmatpush1.msra.mxu0 0.0
    %2523 = vmatprep.subr.mxu0 0.0
    %2524 = vmatpush1.msra.mxu0 0.0
    %2525 = vmatprep.subr.mxu0 0.0
    %2526 = vmatpush1.msra.mxu0 0.0
    %2527 = vmatprep.subr.mxu0 0.0
    %2528 = vmatpush1.msra.mxu0 0.0
    %2529 = vmatprep.subr.mxu0 0.0
    %2530 = vmatpush1.msra.mxu0 0.0
    %2531 = vmatprep.mubr.f32.mxu0 0.0
    %2532 = vmatmul.mubr.f32.gmra.mrb[0].mxu0 %v2222
    %v2533 = vpop.f32.mrb[0].mxu0
    %v2534 = vadd.f32 0.0, %v2533
    %v2535 = vpop.f32.mrb[0].mxu0
    %2536 = vdwg.mxu0
    %v2537 = vadd.f32 %v701, %v2534
    %v2538 = vxor.u32 %v2537, 2147483648
    %v2539 = vmul.f32 %v2538, 1.442695
    %v2540 = vpow.pop %v2539
    %v2541 = vadd.f32 %v2540, 1.0
    %v2542 = vrcp.pop %v2541
    %v2543 = vmul.f32 1.0, %v2542
    %v2544 = vadd.f32 %v2534, %v797
    %2546 = vrot.lane.b32.xlu0 %v2544, 64
    %v2547 = vpop.permute.xlu0 %2546
    %v2549 = vmul.f32 %v2543, %v2547
    %2551 = vrot.lane.b32.xlu0 %v2549, 64
    %v2552 = vpop.permute.xlu0 %2551
    %v2554 = vadd.f32 %v701, %v2552
    %v2555 = vtanh.pop %v2554
    %v2556 = vsub.f32 1.0, %v2543
    %2558 = vrot.lane.b32.xlu0 %v2555, 96
    %v2559 = vpop.permute.xlu0 %2558
    %v2561 = vmul.f32 %v2556, %v2559
    %v2562 = vmul.f32 %v2543, %v2218
    %v2563 = vadd.f32 %v2561, %v2562
    %2565 = vrot.lane.b32.xlu0 %v2563, 96
    %v2566 = vpop.permute.xlu0 %2565
    %v2567 = vsel %vm710, %v2566, 0
    %2569 = vmatprep.subr.mxu0 0.0
    %2570 = vmatpush1.msra.mxu0 %v90
    %2571 = vmatprep.subr.mxu0 0.0
    %2572 = vmatpush1.msra.mxu0 %v91
    %2573 = vmatprep.subr.mxu0 0.0
    %2574 = vmatpush1.msra.mxu0 %v92
    %2575 = vmatprep.subr.mxu0 0.0
    %2576 = vmatpush1.msra.mxu0 %v93
    %2577 = vmatprep.subr.mxu0 0.0
    %2578 = vmatpush1.msra.mxu0 0.0
    %2579 = vmatprep.subr.mxu0 0.0
    %2580 = vmatpush1.msra.mxu0 0.0
    %2581 = vmatprep.subr.mxu0 0.0
    %2582 = vmatpush1.msra.mxu0 0.0
    %2583 = vmatprep.subr.mxu0 0.0
    %2584 = vmatpush1.msra.mxu0 0.0
    %2585 = vmatprep.subr.mxu0 0.0
    %2586 = vmatpush1.msra.mxu0 0.0
    %2587 = vmatprep.subr.mxu0 0.0
    %2588 = vmatpush1.msra.mxu0 0.0
    %2589 = vmatprep.subr.mxu0 0.0
    %2590 = vmatpush1.msra.mxu0 0.0
    %2591 = vmatprep.subr.mxu0 0.0
    %2592 = vmatpush1.msra.mxu0 0.0
    %2593 = vmatprep.subr.mxu0 0.0
    %2594 = vmatpush1.msra.mxu0 0.0
    %2595 = vmatprep.subr.mxu0 0.0
    %2596 = vmatpush1.msra.mxu0 0.0
    %2597 = vmatprep.subr.mxu0 0.0
    %2598 = vmatpush1.msra.mxu0 0.0
    %2599 = vmatprep.subr.mxu0 0.0
    %2600 = vmatpush1.msra.mxu0 0.0
    %2601 = vmatprep.subr.mxu0 0.0
    %2602 = vmatpush1.msra.mxu0 0.0
    %2603 = vmatprep.subr.mxu0 0.0
    %2604 = vmatpush1.msra.mxu0 0.0
    %2605 = vmatprep.subr.mxu0 0.0
    %2606 = vmatpush1.msra.mxu0 0.0
    %2607 = vmatprep.subr.mxu0 0.0
    %2608 = vmatpush1.msra.mxu0 0.0
    %2609 = vmatprep.subr.mxu0 0.0
    %2610 = vmatpush1.msra.mxu0 0.0
    %2611 = vmatprep.subr.mxu0 0.0
    %2612 = vmatpush1.msra.mxu0 0.0
    %2613 = vmatprep.subr.mxu0 0.0
    %2614 = vmatpush1.msra.mxu0 0.0
    %2615 = vmatprep.subr.mxu0 0.0
    %2616 = vmatpush1.msra.mxu0 0.0
    %2617 = vmatprep.subr.mxu0 0.0
    %2618 = vmatpush1.msra.mxu0 0.0
    %2619 = vmatprep.subr.mxu0 0.0
    %2620 = vmatpush1.msra.mxu0 0.0
    %2621 = vmatprep.subr.mxu0 0.0
    %2622 = vmatpush1.msra.mxu0 0.0
    %2623 = vmatprep.subr.mxu0 0.0
    %2624 = vmatpush1.msra.mxu0 0.0
    %2625 = vmatprep.subr.mxu0 0.0
    %2626 = vmatpush1.msra.mxu0 0.0
    %2627 = vmatprep.subr.mxu0 0.0
    %2628 = vmatpush1.msra.mxu0 0.0
    %2629 = vmatprep.subr.mxu0 0.0
    %2630 = vmatpush1.msra.mxu0 0.0
    %2631 = vmatprep.subr.mxu0 0.0
    %2632 = vmatpush1.msra.mxu0 0.0
    %2633 = vmatprep.mubr.f32.mxu0 0.0
    %2634 = vmatmul.mubr.f32.gmra.mrb[0].mxu0 %v2567
    %v2635 = vpop.f32.mrb[0].mxu0
    %v2636 = vadd.f32 %v823, %v2635
    %v2637 = vpop.f32.mrb[0].mxu0
    %2638 = vdwg.mxu0
    %2639 = vmatprep.subr.mxu0 0.0
    %2640 = vmatpush1.msra.mxu0 %v86
    %2641 = vmatprep.subr.mxu0 0.0
    %2642 = vmatpush1.msra.mxu0 %v87
    %2643 = vmatprep.subr.mxu0 0.0
    %2644 = vmatpush1.msra.mxu0 %v88
    %2645 = vmatprep.subr.mxu0 0.0
    %2646 = vmatpush1.msra.mxu0 %v89
    %2647 = vmatprep.subr.mxu0 0.0
    %2648 = vmatpush1.msra.mxu0 0.0
    %2649 = vmatprep.subr.mxu0 0.0
    %2650 = vmatpush1.msra.mxu0 0.0
    %2651 = vmatprep.subr.mxu0 0.0
    %2652 = vmatpush1.msra.mxu0 0.0
    %2653 = vmatprep.subr.mxu0 0.0
    %2654 = vmatpush1.msra.mxu0 0.0
    %2655 = vmatprep.subr.mxu0 0.0
    %2656 = vmatpush1.msra.mxu0 0.0
    %2657 = vmatprep.subr.mxu0 0.0
    %2658 = vmatpush1.msra.mxu0 0.0
    %2659 = vmatprep.subr.mxu0 0.0
    %2660 = vmatpush1.msra.mxu0 0.0
    %2661 = vmatprep.subr.mxu0 0.0
    %2662 = vmatpush1.msra.mxu0 0.0
    %2663 = vmatprep.subr.mxu0 0.0
    %2664 = vmatpush1.msra.mxu0 0.0
    %2665 = vmatprep.subr.mxu0 0.0
    %2666 = vmatpush1.msra.mxu0 0.0
    %2667 = vmatprep.subr.mxu0 0.0
    %2668 = vmatpush1.msra.mxu0 0.0
    %2669 = vmatprep.subr.mxu0 0.0
    %2670 = vmatpush1.msra.mxu0 0.0
    %2671 = vmatprep.subr.mxu0 0.0
    %2672 = vmatpush1.msra.mxu0 0.0
    %2673 = vmatprep.subr.mxu0 0.0
    %2674 = vmatpush1.msra.mxu0 0.0
    %2675 = vmatprep.subr.mxu0 0.0
    %2676 = vmatpush1.msra.mxu0 0.0
    %2677 = vmatprep.subr.mxu0 0.0
    %2678 = vmatpush1.msra.mxu0 0.0
    %2679 = vmatprep.subr.mxu0 0.0
    %2680 = vmatpush1.msra.mxu0 0.0
    %2681 = vmatprep.subr.mxu0 0.0
    %2682 = vmatpush1.msra.mxu0 0.0
    %2683 = vmatprep.subr.mxu0 0.0
    %2684 = vmatpush1.msra.mxu0 0.0
    %2685 = vmatprep.subr.mxu0 0.0
    %2686 = vmatpush1.msra.mxu0 0.0
    %2687 = vmatprep.subr.mxu0 0.0
    %2688 = vmatpush1.msra.mxu0 0.0
    %2689 = vmatprep.subr.mxu0 0.0
    %2690 = vmatpush1.msra.mxu0 0.0
    %2691 = vmatprep.subr.mxu0 0.0
    %2692 = vmatpush1.msra.mxu0 0.0
    %2693 = vmatprep.subr.mxu0 0.0
    %2694 = vmatpush1.msra.mxu0 0.0
    %2695 = vmatprep.subr.mxu0 0.0
    %2696 = vmatpush1.msra.mxu0 0.0
    %2697 = vmatprep.subr.mxu0 0.0
    %2698 = vmatpush1.msra.mxu0 0.0
    %2699 = vmatprep.subr.mxu0 0.0
    %2700 = vmatpush1.msra.mxu0 0.0
    %2701 = vmatprep.subr.mxu0 0.0
    %2702 = vmatpush1.msra.mxu0 0.0
    %2703 = vmatprep.mubr.f32.mxu0 0.0
    %2704 = vmatmul.mubr.f32.gmra.mrb[0].mxu0 %v2394
    %v2705 = vpop.f32.mrb[0].mxu0
    %v2706 = vadd.f32 0.0, %v2705
    %v2707 = vpop.f32.mrb[0].mxu0
    %2708 = vdwg.mxu0
    %v2709 = vadd.f32 %v2636, %v2706
    %v2710 = vxor.u32 %v2709, 2147483648
    %v2711 = vmul.f32 %v2710, 1.442695
    %v2712 = vpow.pop %v2711
    %v2713 = vadd.f32 %v2712, 1.0
    %v2714 = vrcp.pop %v2713
    %v2715 = vmul.f32 1.0, %v2714
    %v2716 = vadd.f32 %v2706, %v983
    %2718 = vrot.lane.b32.xlu0 %v2716, 64
    %v2719 = vpop.permute.xlu0 %2718
    %v2721 = vmul.f32 %v2715, %v2719
    %2723 = vrot.lane.b32.xlu0 %v2721, 64
    %v2724 = vpop.permute.xlu0 %2723
    %v2726 = vadd.f32 %v2636, %v2724
    %v2727 = vtanh.pop %v2726
    %v2728 = vsub.f32 1.0, %v2715
    %2730 = vrot.lane.b32.xlu0 %v2727, 96
    %v2731 = vpop.permute.xlu0 %2730
    %v2733 = vmul.f32 %v2728, %v2731
    %v2734 = vmul.f32 %v2715, %v2390
    %v2735 = vadd.f32 %v2733, %v2734
    %2737 = vrot.lane.b32.xlu0 %v2735, 96
    %v2738 = vpop.permute.xlu0 %2737
    %v2739 = vsel %vm710, %v2738, 0
    %2741 = vmatprep.subr.mxu0 0.0
    %2742 = vmatpush1.msra.mxu0 %v98
    %2743 = vmatprep.subr.mxu0 0.0
    %2744 = vmatpush1.msra.mxu0 %v99
    %2745 = vmatprep.subr.mxu0 0.0
    %2746 = vmatpush1.msra.mxu0 %v100
    %2747 = vmatprep.subr.mxu0 0.0
    %2748 = vmatpush1.msra.mxu0 %v101
    %2749 = vmatprep.subr.mxu0 0.0
    %2750 = vmatpush1.msra.mxu0 0.0
    %2751 = vmatprep.subr.mxu0 0.0
    %2752 = vmatpush1.msra.mxu0 0.0
    %2753 = vmatprep.subr.mxu0 0.0
    %2754 = vmatpush1.msra.mxu0 0.0
    %2755 = vmatprep.subr.mxu0 0.0
    %2756 = vmatpush1.msra.mxu0 0.0
    %2757 = vmatprep.subr.mxu0 0.0
    %2758 = vmatpush1.msra.mxu0 0.0
    %2759 = vmatprep.subr.mxu0 0.0
    %2760 = vmatpush1.msra.mxu0 0.0
    %2761 = vmatprep.subr.mxu0 0.0
    %2762 = vmatpush1.msra.mxu0 0.0
    %2763 = vmatprep.subr.mxu0 0.0
    %2764 = vmatpush1.msra.mxu0 0.0
    %2765 = vmatprep.subr.mxu0 0.0
    %2766 = vmatpush1.msra.mxu0 0.0
    %2767 = vmatprep.subr.mxu0 0.0
    %2768 = vmatpush1.msra.mxu0 0.0
    %2769 = vmatprep.subr.mxu0 0.0
    %2770 = vmatpush1.msra.mxu0 0.0
    %2771 = vmatprep.subr.mxu0 0.0
    %2772 = vmatpush1.msra.mxu0 0.0
    %2773 = vmatprep.subr.mxu0 0.0
    %2774 = vmatpush1.msra.mxu0 0.0
    %2775 = vmatprep.subr.mxu0 0.0
    %2776 = vmatpush1.msra.mxu0 0.0
    %2777 = vmatprep.subr.mxu0 0.0
    %2778 = vmatpush1.msra.mxu0 0.0
    %2779 = vmatprep.subr.mxu0 0.0
    %2780 = vmatpush1.msra.mxu0 0.0
    %2781 = vmatprep.subr.mxu0 0.0
    %2782 = vmatpush1.msra.mxu0 0.0
    %2783 = vmatprep.subr.mxu0 0.0
    %2784 = vmatpush1.msra.mxu0 0.0
    %2785 = vmatprep.subr.mxu0 0.0
    %2786 = vmatpush1.msra.mxu0 0.0
    %2787 = vmatprep.subr.mxu0 0.0
    %2788 = vmatpush1.msra.mxu0 0.0
    %2789 = vmatprep.subr.mxu0 0.0
    %2790 = vmatpush1.msra.mxu0 0.0
    %2791 = vmatprep.subr.mxu0 0.0
    %2792 = vmatpush1.msra.mxu0 0.0
    %2793 = vmatprep.subr.mxu0 0.0
    %2794 = vmatpush1.msra.mxu0 0.0
    %2795 = vmatprep.subr.mxu0 0.0
    %2796 = vmatpush1.msra.mxu0 0.0
    %2797 = vmatprep.subr.mxu0 0.0
    %2798 = vmatpush1.msra.mxu0 0.0
    %2799 = vmatprep.subr.mxu0 0.0
    %2800 = vmatpush1.msra.mxu0 0.0
    %2801 = vmatprep.subr.mxu0 0.0
    %2802 = vmatpush1.msra.mxu0 0.0
    %2803 = vmatprep.subr.mxu0 0.0
    %2804 = vmatpush1.msra.mxu0 0.0
    %2805 = vmatprep.mubr.f32.mxu0 0.0
    %2806 = vmatmul.mubr.f32.gmra.mrb[0].mxu0 %v2739
    %v2807 = vpop.f32.mrb[0].mxu0
    %v2808 = vadd.f32 %v1009, %v2807
    %v2809 = vpop.f32.mrb[0].mxu0
    %2810 = vdwg.mxu0
    %2811 = vst.msk [vmem:[%s14 + $0x30] sm:$0xff] %vm443, %v2808
    %2812 = vmatprep.subr.mxu0 0.0
    %2813 = vmatpush1.msra.mxu0 %v82
    %2814 = vmatprep.subr.mxu0 0.0
    %2815 = vmatpush1.msra.mxu0 %v83
    %2816 = vmatprep.subr.mxu0 0.0
    %2817 = vmatpush1.msra.mxu0 %v84
    %2818 = vmatprep.subr.mxu0 0.0
    %2819 = vmatpush1.msra.mxu0 %v85
    %2820 = vmatprep.subr.mxu0 0.0
    %2821 = vmatpush1.msra.mxu0 0.0
    %2822 = vmatprep.subr.mxu0 0.0
    %2823 = vmatpush1.msra.mxu0 0.0
    %2824 = vmatprep.subr.mxu0 0.0
    %2825 = vmatpush1.msra.mxu0 0.0
    %2826 = vmatprep.subr.mxu0 0.0
    %2827 = vmatpush1.msra.mxu0 0.0
    %2828 = vmatprep.subr.mxu0 0.0
    %2829 = vmatpush1.msra.mxu0 0.0
    %2830 = vmatprep.subr.mxu0 0.0
    %2831 = vmatpush1.msra.mxu0 0.0
    %2832 = vmatprep.subr.mxu0 0.0
    %2833 = vmatpush1.msra.mxu0 0.0
    %2834 = vmatprep.subr.mxu0 0.0
    %2835 = vmatpush1.msra.mxu0 0.0
    %2836 = vmatprep.subr.mxu0 0.0
    %2837 = vmatpush1.msra.mxu0 0.0
    %2838 = vmatprep.subr.mxu0 0.0
    %2839 = vmatpush1.msra.mxu0 0.0
    %2840 = vmatprep.subr.mxu0 0.0
    %2841 = vmatpush1.msra.mxu0 0.0
    %2842 = vmatprep.subr.mxu0 0.0
    %2843 = vmatpush1.msra.mxu0 0.0
    %2844 = vmatprep.subr.mxu0 0.0
    %2845 = vmatpush1.msra.mxu0 0.0
    %2846 = vmatprep.subr.mxu0 0.0
    %2847 = vmatpush1.msra.mxu0 0.0
    %2848 = vmatprep.subr.mxu0 0.0
    %2849 = vmatpush1.msra.mxu0 0.0
    %2850 = vmatprep.subr.mxu0 0.0
    %2851 = vmatpush1.msra.mxu0 0.0
    %2852 = vmatprep.subr.mxu0 0.0
    %2853 = vmatpush1.msra.mxu0 0.0
    %2854 = vmatprep.subr.mxu0 0.0
    %2855 = vmatpush1.msra.mxu0 0.0
    %2856 = vmatprep.subr.mxu0 0.0
    %2857 = vmatpush1.msra.mxu0 0.0
    %2858 = vmatprep.subr.mxu0 0.0
    %2859 = vmatpush1.msra.mxu0 0.0
    %2860 = vmatprep.subr.mxu0 0.0
    %2861 = vmatpush1.msra.mxu0 0.0
    %2862 = vmatprep.subr.mxu0 0.0
    %2863 = vmatpush1.msra.mxu0 0.0
    %2864 = vmatprep.subr.mxu0 0.0
    %2865 = vmatpush1.msra.mxu0 0.0
    %2866 = vmatprep.subr.mxu0 0.0
    %2867 = vmatpush1.msra.mxu0 0.0
    %2868 = vmatprep.subr.mxu0 0.0
    %2869 = vmatpush1.msra.mxu0 0.0
    %2870 = vmatprep.subr.mxu0 0.0
    %2871 = vmatpush1.msra.mxu0 0.0
    %2872 = vmatprep.subr.mxu0 0.0
    %2873 = vmatpush1.msra.mxu0 0.0
    %2874 = vmatprep.subr.mxu0 0.0
    %2875 = vmatpush1.msra.mxu0 0.0
    %2876 = vmatprep.mubr.f32.mxu0 0.0
    %2877 = vmatmul.mubr.f32.gmra.mrb[0].mxu0 %v2567
    %v2878 = vpop.f32.mrb[0].mxu0
    %v2879 = vadd.f32 0.0, %v2878
    %v2880 = vpop.f32.mrb[0].mxu0
    %2881 = vdwg.mxu0
    %v2882 = vadd.f32 %v706, %v2879
    %v2883 = vxor.u32 %v2882, 2147483648
    %v2884 = vmul.f32 %v2883, 1.442695
    %v2885 = vpow.pop %v2884
    %v2886 = vadd.f32 %v2885, 1.0
    %v2887 = vrcp.pop %v2886
    %v2888 = vmul.f32 1.0, %v2887
    %v2889 = vadd.f32 %v2879, %v797
    %2891 = vrot.lane.b32.xlu0 %v2889, 64
    %v2892 = vpop.permute.xlu0 %2891
    %v2894 = vmul.f32 %v2888, %v2892
    %2896 = vrot.lane.b32.xlu0 %v2894, 64
    %v2897 = vpop.permute.xlu0 %2896
    %v2899 = vadd.f32 %v706, %v2897
    %v2900 = vtanh.pop %v2899
    %v2901 = vsub.f32 1.0, %v2888
    %2903 = vrot.lane.b32.xlu0 %v2900, 96
    %v2904 = vpop.permute.xlu0 %2903
    %v2906 = vmul.f32 %v2901, %v2904
    %v2907 = vmul.f32 %v2888, %v2563
    %v2908 = vadd.f32 %v2906, %v2907
    %2910 = vrot.lane.b32.xlu0 %v2908, 96
    %v2911 = vpop.permute.xlu0 %2910
    %v2912 = vsel %vm710, %v2911, 0
    %2914 = vmatprep.subr.mxu0 0.0
    %2915 = vmatpush1.msra.mxu0 %v90
    %2916 = vmatprep.subr.mxu0 0.0
    %2917 = vmatpush1.msra.mxu0 %v91
    %2918 = vmatprep.subr.mxu0 0.0
    %2919 = vmatpush1.msra.mxu0 %v92
    %2920 = vmatprep.subr.mxu0 0.0
    %2921 = vmatpush1.msra.mxu0 %v93
    %2922 = vmatprep.subr.mxu0 0.0
    %2923 = vmatpush1.msra.mxu0 0.0
    %2924 = vmatprep.subr.mxu0 0.0
    %2925 = vmatpush1.msra.mxu0 0.0
    %2926 = vmatprep.subr.mxu0 0.0
    %2927 = vmatpush1.msra.mxu0 0.0
    %2928 = vmatprep.subr.mxu0 0.0
    %2929 = vmatpush1.msra.mxu0 0.0
    %2930 = vmatprep.subr.mxu0 0.0
    %2931 = vmatpush1.msra.mxu0 0.0
    %2932 = vmatprep.subr.mxu0 0.0
    %2933 = vmatpush1.msra.mxu0 0.0
    %2934 = vmatprep.subr.mxu0 0.0
    %2935 = vmatpush1.msra.mxu0 0.0
    %2936 = vmatprep.subr.mxu0 0.0
    %2937 = vmatpush1.msra.mxu0 0.0
    %2938 = vmatprep.subr.mxu0 0.0
    %2939 = vmatpush1.msra.mxu0 0.0
    %2940 = vmatprep.subr.mxu0 0.0
    %2941 = vmatpush1.msra.mxu0 0.0
    %2942 = vmatprep.subr.mxu0 0.0
    %2943 = vmatpush1.msra.mxu0 0.0
    %2944 = vmatprep.subr.mxu0 0.0
    %2945 = vmatpush1.msra.mxu0 0.0
    %2946 = vmatprep.subr.mxu0 0.0
    %2947 = vmatpush1.msra.mxu0 0.0
    %2948 = vmatprep.subr.mxu0 0.0
    %2949 = vmatpush1.msra.mxu0 0.0
    %2950 = vmatprep.subr.mxu0 0.0
    %2951 = vmatpush1.msra.mxu0 0.0
    %2952 = vmatprep.subr.mxu0 0.0
    %2953 = vmatpush1.msra.mxu0 0.0
    %2954 = vmatprep.subr.mxu0 0.0
    %2955 = vmatpush1.msra.mxu0 0.0
    %2956 = vmatprep.subr.mxu0 0.0
    %2957 = vmatpush1.msra.mxu0 0.0
    %2958 = vmatprep.subr.mxu0 0.0
    %2959 = vmatpush1.msra.mxu0 0.0
    %2960 = vmatprep.subr.mxu0 0.0
    %2961 = vmatpush1.msra.mxu0 0.0
    %2962 = vmatprep.subr.mxu0 0.0
    %2963 = vmatpush1.msra.mxu0 0.0
    %2964 = vmatprep.subr.mxu0 0.0
    %2965 = vmatpush1.msra.mxu0 0.0
    %2966 = vmatprep.subr.mxu0 0.0
    %2967 = vmatpush1.msra.mxu0 0.0
    %2968 = vmatprep.subr.mxu0 0.0
    %2969 = vmatpush1.msra.mxu0 0.0
    %2970 = vmatprep.subr.mxu0 0.0
    %2971 = vmatpush1.msra.mxu0 0.0
    %2972 = vmatprep.subr.mxu0 0.0
    %2973 = vmatpush1.msra.mxu0 0.0
    %2974 = vmatprep.subr.mxu0 0.0
    %2975 = vmatpush1.msra.mxu0 0.0
    %2976 = vmatprep.subr.mxu0 0.0
    %2977 = vmatpush1.msra.mxu0 0.0
    %2978 = vmatprep.mubr.f32.mxu0 0.0
    %2979 = vmatmul.mubr.f32.gmra.mrb[0].mxu0 %v2912
    %v2980 = vpop.f32.mrb[0].mxu0
    %v2981 = vadd.f32 %v823, %v2980
    %v2982 = vpop.f32.mrb[0].mxu0
    %2983 = vdwg.mxu0
    %2984 = vmatprep.subr.mxu0 0.0
    %2985 = vmatpush1.msra.mxu0 %v86
    %2986 = vmatprep.subr.mxu0 0.0
    %2987 = vmatpush1.msra.mxu0 %v87
    %2988 = vmatprep.subr.mxu0 0.0
    %2989 = vmatpush1.msra.mxu0 %v88
    %2990 = vmatprep.subr.mxu0 0.0
    %2991 = vmatpush1.msra.mxu0 %v89
    %2992 = vmatprep.subr.mxu0 0.0
    %2993 = vmatpush1.msra.mxu0 0.0
    %2994 = vmatprep.subr.mxu0 0.0
    %2995 = vmatpush1.msra.mxu0 0.0
    %2996 = vmatprep.subr.mxu0 0.0
    %2997 = vmatpush1.msra.mxu0 0.0
    %2998 = vmatprep.subr.mxu0 0.0
    %2999 = vmatpush1.msra.mxu0 0.0
    %3000 = vmatprep.subr.mxu0 0.0
    %3001 = vmatpush1.msra.mxu0 0.0
    %3002 = vmatprep.subr.mxu0 0.0
    %3003 = vmatpush1.msra.mxu0 0.0
    %3004 = vmatprep.subr.mxu0 0.0
    %3005 = vmatpush1.msra.mxu0 0.0
    %3006 = vmatprep.subr.mxu0 0.0
    %3007 = vmatpush1.msra.mxu0 0.0
    %3008 = vmatprep.subr.mxu0 0.0
    %3009 = vmatpush1.msra.mxu0 0.0
    %3010 = vmatprep.subr.mxu0 0.0
    %3011 = vmatpush1.msra.mxu0 0.0
    %3012 = vmatprep.subr.mxu0 0.0
    %3013 = vmatpush1.msra.mxu0 0.0
    %3014 = vmatprep.subr.mxu0 0.0
    %3015 = vmatpush1.msra.mxu0 0.0
    %3016 = vmatprep.subr.mxu0 0.0
    %3017 = vmatpush1.msra.mxu0 0.0
    %3018 = vmatprep.subr.mxu0 0.0
    %3019 = vmatpush1.msra.mxu0 0.0
    %3020 = vmatprep.subr.mxu0 0.0
    %3021 = vmatpush1.msra.mxu0 0.0
    %3022 = vmatprep.subr.mxu0 0.0
    %3023 = vmatpush1.msra.mxu0 0.0
    %3024 = vmatprep.subr.mxu0 0.0
    %3025 = vmatpush1.msra.mxu0 0.0
    %3026 = vmatprep.subr.mxu0 0.0
    %3027 = vmatpush1.msra.mxu0 0.0
    %3028 = vmatprep.subr.mxu0 0.0
    %3029 = vmatpush1.msra.mxu0 0.0
    %3030 = vmatprep.subr.mxu0 0.0
    %3031 = vmatpush1.msra.mxu0 0.0
    %3032 = vmatprep.subr.mxu0 0.0
    %3033 = vmatpush1.msra.mxu0 0.0
    %3034 = vmatprep.subr.mxu0 0.0
    %3035 = vmatpush1.msra.mxu0 0.0
    %3036 = vmatprep.subr.mxu0 0.0
    %3037 = vmatpush1.msra.mxu0 0.0
    %3038 = vmatprep.subr.mxu0 0.0
    %3039 = vmatpush1.msra.mxu0 0.0
    %3040 = vmatprep.subr.mxu0 0.0
    %3041 = vmatpush1.msra.mxu0 0.0
    %3042 = vmatprep.subr.mxu0 0.0
    %3043 = vmatpush1.msra.mxu0 0.0
    %3044 = vmatprep.subr.mxu0 0.0
    %3045 = vmatpush1.msra.mxu0 0.0
    %3046 = vmatprep.subr.mxu0 0.0
    %3047 = vmatpush1.msra.mxu0 0.0
    %3048 = vmatprep.mubr.f32.mxu0 0.0
    %3049 = vmatmul.mubr.f32.gmra.mrb[0].mxu0 %v2739
    %v3050 = vpop.f32.mrb[0].mxu0
    %v3051 = vadd.f32 0.0, %v3050
    %v3052 = vpop.f32.mrb[0].mxu0
    %3053 = vdwg.mxu0
    %v3054 = vadd.f32 %v2981, %v3051
    %v3055 = vxor.u32 %v3054, 2147483648
    %v3056 = vmul.f32 %v3055, 1.442695
    %v3057 = vpow.pop %v3056
    %v3058 = vadd.f32 %v3057, 1.0
    %v3059 = vrcp.pop %v3058
    %v3060 = vmul.f32 1.0, %v3059
    %v3061 = vadd.f32 %v3051, %v983
    %3063 = vrot.lane.b32.xlu0 %v3061, 64
    %v3064 = vpop.permute.xlu0 %3063
    %v3066 = vmul.f32 %v3060, %v3064
    %3068 = vrot.lane.b32.xlu0 %v3066, 64
    %v3069 = vpop.permute.xlu0 %3068
    %v3071 = vadd.f32 %v2981, %v3069
    %v3072 = vtanh.pop %v3071
    %v3073 = vsub.f32 1.0, %v3060
    %3075 = vrot.lane.b32.xlu0 %v3072, 96
    %v3076 = vpop.permute.xlu0 %3075
    %v3078 = vmul.f32 %v3073, %v3076
    %v3079 = vmul.f32 %v3060, %v2735
    %v3080 = vadd.f32 %v3078, %v3079
    %3082 = vrot.lane.b32.xlu0 %v3080, 96
    %v3083 = vpop.permute.xlu0 %3082
    %v3084 = vsel %vm710, %v3083, 0
    %3086 = vmatprep.subr.mxu0 0.0
    %3087 = vmatpush1.msra.mxu0 %v98
    %3088 = vmatprep.subr.mxu0 0.0
    %3089 = vmatpush1.msra.mxu0 %v99
    %3090 = vmatprep.subr.mxu0 0.0
    %3091 = vmatpush1.msra.mxu0 %v100
    %3092 = vmatprep.subr.mxu0 0.0
    %3093 = vmatpush1.msra.mxu0 %v101
    %3094 = vmatprep.subr.mxu0 0.0
    %3095 = vmatpush1.msra.mxu0 0.0
    %3096 = vmatprep.subr.mxu0 0.0
    %3097 = vmatpush1.msra.mxu0 0.0
    %3098 = vmatprep.subr.mxu0 0.0
    %3099 = vmatpush1.msra.mxu0 0.0
    %3100 = vmatprep.subr.mxu0 0.0
    %3101 = vmatpush1.msra.mxu0 0.0
    %3102 = vmatprep.subr.mxu0 0.0
    %3103 = vmatpush1.msra.mxu0 0.0
    %3104 = vmatprep.subr.mxu0 0.0
    %3105 = vmatpush1.msra.mxu0 0.0
    %3106 = vmatprep.subr.mxu0 0.0
    %3107 = vmatpush1.msra.mxu0 0.0
    %3108 = vmatprep.subr.mxu0 0.0
    %3109 = vmatpush1.msra.mxu0 0.0
    %3110 = vmatprep.subr.mxu0 0.0
    %3111 = vmatpush1.msra.mxu0 0.0
    %3112 = vmatprep.subr.mxu0 0.0
    %3113 = vmatpush1.msra.mxu0 0.0
    %3114 = vmatprep.subr.mxu0 0.0
    %3115 = vmatpush1.msra.mxu0 0.0
    %3116 = vmatprep.subr.mxu0 0.0
    %3117 = vmatpush1.msra.mxu0 0.0
    %3118 = vmatprep.subr.mxu0 0.0
    %3119 = vmatpush1.msra.mxu0 0.0
    %3120 = vmatprep.subr.mxu0 0.0
    %3121 = vmatpush1.msra.mxu0 0.0
    %3122 = vmatprep.subr.mxu0 0.0
    %3123 = vmatpush1.msra.mxu0 0.0
    %3124 = vmatprep.subr.mxu0 0.0
    %3125 = vmatpush1.msra.mxu0 0.0
    %3126 = vmatprep.subr.mxu0 0.0
    %3127 = vmatpush1.msra.mxu0 0.0
    %3128 = vmatprep.subr.mxu0 0.0
    %3129 = vmatpush1.msra.mxu0 0.0
    %3130 = vmatprep.subr.mxu0 0.0
    %3131 = vmatpush1.msra.mxu0 0.0
    %3132 = vmatprep.subr.mxu0 0.0
    %3133 = vmatpush1.msra.mxu0 0.0
    %3134 = vmatprep.subr.mxu0 0.0
    %3135 = vmatpush1.msra.mxu0 0.0
    %3136 = vmatprep.subr.mxu0 0.0
    %3137 = vmatpush1.msra.mxu0 0.0
    %3138 = vmatprep.subr.mxu0 0.0
    %3139 = vmatpush1.msra.mxu0 0.0
    %3140 = vmatprep.subr.mxu0 0.0
    %3141 = vmatpush1.msra.mxu0 0.0
    %3142 = vmatprep.subr.mxu0 0.0
    %3143 = vmatpush1.msra.mxu0 0.0
    %3144 = vmatprep.subr.mxu0 0.0
    %3145 = vmatpush1.msra.mxu0 0.0
    %3146 = vmatprep.subr.mxu0 0.0
    %3147 = vmatpush1.msra.mxu0 0.0
    %3148 = vmatprep.subr.mxu0 0.0
    %3149 = vmatpush1.msra.mxu0 0.0
    %3150 = vmatprep.mubr.f32.mxu0 0.0
    %3151 = vmatmul.mubr.f32.gmra.mrb[0].mxu0 %v3084
    %v3152 = vpop.f32.mrb[0].mxu0
    %v3153 = vadd.f32 %v1009, %v3152
    %v3154 = vpop.f32.mrb[0].mxu0
    %3155 = vdwg.mxu0
    %3156 = vst.msk [vmem:[%s14 + $0x38] sm:$0xff] %vm443, %v3153
    // Predicated region
    $region70: #{tpu_custom_call.1} parent=1 // pred_check
      _
    $region71: #{tpu_custom_call.1} parent=1 // pred_check_branch
      %3158 = sbr.rel (0) target = $region73
    $region72: #{tpu_custom_call.1} parent=1 // pred_region
      _
    $region73: #{tpu_custom_call.1} parent=1 // pred_fallthru
      _
    // Predicated region
    $region74: #{tpu_custom_call.1} parent=1 // pred_check
      _
    $region75: #{tpu_custom_call.1} parent=1 // pred_check_branch
      %3160 = sbr.rel (0) target = $region77
    $region76: #{tpu_custom_call.1} parent=1 // pred_region
      _
    $region77: #{tpu_custom_call.1} parent=1 // pred_fallthru
      _
    %3161 = vsyncpa [#allocation3], 1
    %3162 = vsyncpa [#allocation5], 1

</llo_original>
